<compile_context>
chip_gen: v7x
topology: tpu7x:2x2x1
jax: 0.10.0
libtpu: 0.0.40
codegen_flags: <defaults>
</compile_context>

<pallas_src>
import functools

import jax
import jax.numpy as jnp
import numpy as np
from jax.experimental import pallas as pl
from jax.experimental.pallas import tpu as pltpu


def _block_kernel(x_ref, cos_ref, sin_ref,
                  ln1w_ref, ln1b_ref, wq_ref, wk_ref, wv_ref,
                  wproj_ref, bproj_ref, ln2w_ref, ln2b_ref,
                  w1_ref, b1_ref, w2_ref, b2_ref,
                  o_ref,
                  q_scr, k_scr, v_scr, o_scr,
                  *, num_heads, block_q):
    qi = pl.program_id(1)
    _, N, D = x_ref.shape
    hd = D // num_heads
    hd2 = hd // 2

    def layernorm(v, w, b):                        # w, b: (1, D) -> broadcast
        mu = jnp.mean(v, axis=-1, keepdims=True)
        var = jnp.mean((v - mu) ** 2, axis=-1, keepdims=True)
        return (v - mu) * jax.lax.rsqrt(var + 1e-6) * w + b

    # ---- once per batch element: full-sequence Q/K/V + RoPE into scratch ----
    @pl.when(qi == 0)
    def _():
        xf = x_ref[0]                                                # (N, D) f32
        h = layernorm(xf, ln1w_ref[...], ln1b_ref[...]).astype(jnp.bfloat16)
        # 1/sqrt(hd) already folded into wq at prepare time.
        q = jnp.dot(h, wq_ref[...], preferred_element_type=jnp.float32)
        k = jnp.dot(h, wk_ref[...], preferred_element_type=jnp.float32)
        v = jnp.dot(h, wv_ref[...], preferred_element_type=jnp.float32)
        cos = cos_ref[...]                                           # (N, hd)
        sin = sin_ref[...]                                           # (N, hd) = [-sin,+sin]
        # Per-head rotate-half RoPE: roll by hd/2 along an axis of size hd is
        # direction-independent, so no sign-masked tables are needed.  Setup
        # cost only (runs once per batch element, not per query block).
        for head in range(num_heads):                                # static unroll
            off = head * hd
            qh = q[:, off:off + hd]
            kh = k[:, off:off + hd]
            q_scr[head] = (qh * cos +
                           pltpu.roll(qh, shift=hd2, axis=1) * sin).astype(jnp.bfloat16)
            k_scr[head] = (kh * cos +
                           pltpu.roll(kh, shift=hd2, axis=1) * sin).astype(jnp.bfloat16)
            v_scr[head] = v[:, off:off + hd].astype(jnp.bfloat16)

    # ---------------- per query-block attention ----------------
    row0 = pl.multiple_of(qi * block_q, block_q)
    x_blk = x_ref[0, pl.ds(row0, block_q), :]                        # (TQ, D) f32 residual
    q_blk = q_scr[:, pl.ds(row0, block_q), :]                        # (H, TQ, hd) bf16

    s = jnp.einsum('hqd,hkd->hqk', q_blk, k_scr[...],
                   preferred_element_type=jnp.float32)               # (H, TQ, N)
    s = s - jnp.max(s, axis=-1, keepdims=True)
    p = jnp.exp(s)
    inv = pl.reciprocal(jnp.sum(p, axis=-1, keepdims=True), approx=True)  # EUP; ~1e-3 rel err
    o = jnp.einsum('hqk,hkd->hqd', p.astype(jnp.bfloat16), v_scr[...],
                   preferred_element_type=jnp.float32)               # (H, TQ, hd)
    o = o * inv                                                      # deferred softmax norm

    # Head outputs -> one (TQ, D) bf16 scratch slab, then a single full-width
    # (K = D) output projection (gamma_1 folded into wproj/bproj).
    for head in range(num_heads):
        o_scr[:, head * hd:(head + 1) * hd] = o[head].astype(jnp.bfloat16)
    attn = jnp.dot(o_scr[...], wproj_ref[...],
                   preferred_element_type=jnp.float32) + bproj_ref[...]
    x1 = x_blk + attn

    # ---------------- MLP branch (tiled over the same TQ rows) ----------------
    h2 = layernorm(x1, ln2w_ref[...], ln2b_ref[...]).astype(jnp.bfloat16)
    a1 = jnp.dot(h2, w1_ref[...], preferred_element_type=jnp.float32) + b1_ref[...]
    # exact-erf GELU (matches PyTorch default GELU()).
    # TODO(synk): on v5e consider approximate (tanh) GELU if the VALU saturates.
    a1 = 0.5 * a1 * (1.0 + jax.lax.erf(a1 * 0.7071067811865476))
    a2 = jnp.dot(a1.astype(jnp.bfloat16), w2_ref[...],
                 preferred_element_type=jnp.float32) + b2_ref[...]   # gamma_2 folded

    o_ref[0] = x1 + a2


def prepare_block_params(params, num_heads):
    """One-time parameter prep (hoisted out of the forward path):
       * wqkv split into wq/wk/wv, columns permuted per head from the
         interleaved-pair RoPE layout to rotate-half layout,
       * 1/sqrt(hd) softmax scale folded into wq,
       * LayerScale gamma_1 folded into wproj/bproj, gamma_2 into w2/b2
         (bias folds kept in f32),
       * weights cast to bf16, 1-D params reshaped to (1, D) f32 rows."""
    D = params['wproj'].shape[0]
    hd = D // num_heads
    perm_head = np.concatenate([np.arange(0, hd, 2), np.arange(1, hd, 2)])
    perm = np.concatenate([h * hd + perm_head for h in range(num_heads)])

    wqkv = params['wqkv']
    scale = jnp.float32(hd) ** -0.5
    wq = wqkv[:, :D][:, perm] * scale            # fold softmax scale into q
    wk = wqkv[:, D:2 * D][:, perm]
    wv = wqkv[:, 2 * D:]
    g1 = params['gamma_1'][None, :]              # (1, D)
    g2 = params['gamma_2'][None, :]

    def r2(p):                                   # 1-D param -> (1, -1) f32 row
        return p.reshape(1, -1).astype(jnp.float32)

    return dict(
        wq=wq.astype(jnp.bfloat16),
        wk=wk.astype(jnp.bfloat16),
        wv=wv.astype(jnp.bfloat16),
        wproj=(params['wproj'] * g1).astype(jnp.bfloat16),
        bproj=r2(params['bproj'] * params['gamma_1']),
        w1=params['w1'].astype(jnp.bfloat16), b1=r2(params['b1']),
        w2=(params['w2'] * g2).astype(jnp.bfloat16),
        b2=r2(params['b2'] * params['gamma_2']),
        ln1_w=r2(params['ln1_w']), ln1_b=r2(params['ln1_b']),
        ln2_w=r2(params['ln2_w']), ln2_b=r2(params['ln2_b']),
    )


def prepare_rope_tables(freqs_cos, freqs_sin, num_heads, dim):
    """(N, hd/2) cos/sin -> (N, hd) rotate-half tables: [cos, cos] and
    [-sin, +sin] (applied per head inside the kernel)."""
    hd = dim // num_heads
    assert freqs_cos.shape[-1] * 2 == hd
    cos_t = jnp.concatenate([freqs_cos, freqs_cos], axis=-1).astype(jnp.float32)
    sin_t = jnp.concatenate([-freqs_sin, freqs_sin], axis=-1).astype(jnp.float32)
    return cos_t, sin_t


def _pick_block_q(n):
    # Largest "nice" query tile that divides N (128 default; tune 256 on v6e).
    for tq in (128, 64, 32, 16, 8):
        if n % tq == 0:
            return tq
    return n


def rope_layerscale_block(x, rope_tables, prepared, num_heads, block_q=None):
    B, N, D = x.shape
    assert D % num_heads == 0
    hd = D // num_heads
    assert hd % 2 == 0
    cos_t, sin_t = rope_tables
    assert cos_t.shape == (N, hd) and sin_t.shape == (N, hd)

    if block_q is None:
        block_q = _pick_block_q(N)
    assert N % block_q == 0
    nq = N // block_q

    # Generation-aware VMEM budget: ~80% of per-core VMEM (v7x: ~51 MiB,
    # v5e/v6e: ~102 MiB), never the full physical capacity.
    try:
        vmem_cap = int(pltpu.get_tpu_info().vmem_capacity_bytes)
    except Exception:
        vmem_cap = 64 * 1024 * 1024
    vmem_limit = min(int(vmem_cap * 0.8), 112 * 1024 * 1024)

    # Constant-index operands live whole-array in VMEM (no double buffering).
    vmem_ws = pl.BlockSpec(memory_space=pltpu.MemorySpace.VMEM)

    kernel = functools.partial(_block_kernel, num_heads=num_heads,
                               block_q=block_q)
    return pl.pallas_call(
        kernel,
        out_shape=jax.ShapeDtypeStruct((B, N, D), jnp.float32),
        grid=(B, nq),
        in_specs=[pl.BlockSpec((1, N, D), lambda b, q: (b, 0, 0))]   # x: full seq per batch
                 + [vmem_ws] * 15,                                   # tables / weights / rows
        out_specs=pl.BlockSpec((1, block_q, D), lambda b, q: (b, q, 0)),
        scratch_shapes=[
            pltpu.VMEM((num_heads, N, hd), jnp.bfloat16),            # q (rotated, scaled)
            pltpu.VMEM((num_heads, N, hd), jnp.bfloat16),            # k (rotated)
            pltpu.VMEM((num_heads, N, hd), jnp.bfloat16),            # v
            pltpu.VMEM((block_q, D), jnp.bfloat16),                  # per-block head outputs
        ],
        compiler_params=pltpu.CompilerParams(
            dimension_semantics=("parallel", "arbitrary"),
            vmem_limit_bytes=vmem_limit),
    )(x, cos_t, sin_t,
      prepared['ln1_w'], prepared['ln1_b'],
      prepared['wq'], prepared['wk'], prepared['wv'],
      prepared['wproj'], prepared['bproj'],
      prepared['ln2_w'], prepared['ln2_b'],
      prepared['w1'], prepared['b1'], prepared['w2'], prepared['b2'])


def reference(x, freqs_cos, freqs_sin, params, num_heads):
    """Pure-JAX f32 reference matching the PyTorch forward (interleaved complex RoPE)."""
    B, N, D = x.shape
    hd = D // num_heads

    def layernorm(v, w, b):
        mu = jnp.mean(v, axis=-1, keepdims=True)
        var = jnp.mean((v - mu) ** 2, axis=-1, keepdims=True)
        return (v - mu) / jnp.sqrt(var + 1e-6) * w + b

    h = layernorm(x, params['ln1_w'], params['ln1_b'])
    qkv = h @ params['wqkv']
    q = qkv[..., :D].reshape(B, N, num_heads, hd)
    k = qkv[..., D:2 * D].reshape(B, N, num_heads, hd)
    v = qkv[..., 2 * D:].reshape(B, N, num_heads, hd)

    def rope(t):
        t2 = t.reshape(B, N, num_heads, hd // 2, 2)
        te, to = t2[..., 0], t2[..., 1]
        c = freqs_cos[None, :, None, :]
        s = freqs_sin[None, :, None, :]
        return jnp.stack([te * c - to * s, te * s + to * c],
                         axis=-1).reshape(B, N, num_heads, hd)

    q = rope(q)
    k = rope(k)
    scale = hd ** -0.5
    s = jnp.einsum('bnhd,bmhd->bhnm', q, k) * scale
    p = jax.nn.softmax(s, axis=-1)
    o = jnp.einsum('bhnm,bmhd->bnhd', p, v).reshape(B, N, D)
    o = o @ params['wproj'] + params['bproj']
    x = x + params['gamma_1'] * o

    h2 = layernorm(x, params['ln2_w'], params['ln2_b'])
    h2 = h2 @ params['w1'] + params['b1']
    h2 = 0.5 * h2 * (1.0 + jax.lax.erf(h2 / jnp.sqrt(2.0)))
    h2 = h2 @ params['w2'] + params['b2']
    return x + params['gamma_2'] * h2


if __name__ == "__main__":
    B, N, D = 2, 32, 64
    num_heads = 4
    hd = D // num_heads
    hidden = int(D * 4.0)
    init_values = 1e-4

    key = jax.random.PRNGKey(0)
    ks = jax.random.split(key, 8)
    x = jax.random.normal(ks[0], (B, N, D), jnp.float32)
    params = dict(
        ln1_w=jnp.ones((D,), jnp.float32),
        ln1_b=jnp.zeros((D,), jnp.float32),
        wqkv=0.02 * jax.random.normal(ks[1], (D, 3 * D), jnp.float32),   # qkv_bias=False
        wproj=0.02 * jax.random.normal(ks[2], (D, D), jnp.float32),
        bproj=0.02 * jax.random.normal(ks[3], (D,), jnp.float32),
        ln2_w=jnp.ones((D,), jnp.float32),
        ln2_b=jnp.zeros((D,), jnp.float32),
        w1=0.02 * jax.random.normal(ks[4], (D, hidden), jnp.float32),
        b1=0.02 * jax.random.normal(ks[5], (hidden,), jnp.float32),
        w2=0.02 * jax.random.normal(ks[6], (hidden, D), jnp.float32),
        b2=0.02 * jax.random.normal(ks[7], (D,), jnp.float32),
        gamma_1=init_values * jnp.ones((D,), jnp.float32),
        gamma_2=init_values * jnp.ones((D,), jnp.float32),
    )

    # Rotary frequency table (1-D RoPE over token index), shape (N, head_dim//2).
    theta = 100.0
    idx = jnp.arange(hd // 2, dtype=jnp.float32)
    inv_freq = 1.0 / (theta ** (2.0 * idx / hd))
    t = jnp.arange(N, dtype=jnp.float32)
    angles = jnp.outer(t, inv_freq)
    freqs_cos = jnp.cos(angles)
    freqs_sin = jnp.sin(angles)

    # One-time prep (hoisted out of the forward call path).
    prepared = prepare_block_params(params, num_heads)
    rope_tables = prepare_rope_tables(freqs_cos, freqs_sin, num_heads, D)

    # block_q=16 -> 2 query blocks per batch element, exercising the scratch
    # K/V reuse across the "arbitrary" grid axis.  (Benchmark / tune at
    # production shapes, e.g. D>=768, N>=197 — this toy size is for
    # correctness only.)
    out = jax.block_until_ready(
        rope_layerscale_block(x, rope_tables, prepared, num_heads, block_q=16))
    ref = reference(x, freqs_cos, freqs_sin, params, num_heads)
    np.testing.assert_allclose(np.asarray(out), np.asarray(ref),
                               rtol=2e-3, atol=2e-5)
    print("KERNEL_OK")
</pallas_src>

<mosaic_0001>
module attributes {stable_mosaic.version = 11 : i64} {
  func.func @_block_kernel(%arg0: i32, %arg1: i32, %arg2: memref<1x32x64xf32, #tpu.memory_space<vmem>>, %arg3: memref<32x16xf32, #tpu.memory_space<vmem>>, %arg4: memref<32x16xf32, #tpu.memory_space<vmem>>, %arg5: memref<1x64xf32, #tpu.memory_space<vmem>>, %arg6: memref<1x64xf32, #tpu.memory_space<vmem>>, %arg7: memref<64x64xbf16, #tpu.memory_space<vmem>>, %arg8: memref<64x64xbf16, #tpu.memory_space<vmem>>, %arg9: memref<64x64xbf16, #tpu.memory_space<vmem>>, %arg10: memref<64x64xbf16, #tpu.memory_space<vmem>>, %arg11: memref<1x64xf32, #tpu.memory_space<vmem>>, %arg12: memref<1x64xf32, #tpu.memory_space<vmem>>, %arg13: memref<1x64xf32, #tpu.memory_space<vmem>>, %arg14: memref<64x256xbf16, #tpu.memory_space<vmem>>, %arg15: memref<1x256xf32, #tpu.memory_space<vmem>>, %arg16: memref<256x64xbf16, #tpu.memory_space<vmem>>, %arg17: memref<1x64xf32, #tpu.memory_space<vmem>>, %arg18: memref<1x16x64xf32, #tpu.memory_space<vmem>>, %arg19: memref<4x32x16xbf16, #tpu.memory_space<vmem>>, %arg20: memref<4x32x16xbf16, #tpu.memory_space<vmem>>, %arg21: memref<4x32x16xbf16, #tpu.memory_space<vmem>>, %arg22: memref<16x64xbf16, #tpu.memory_space<vmem>>) attributes {dimension_semantics = [#tpu.dimension_semantics<parallel>, #tpu.dimension_semantics<arbitrary>], iteration_bounds = array<i64: 2, 2>, scalar_prefetch = 0 : i64, scratch_operands = 4 : i64, tpu.core_type = #tpu.core_type<tc>, window_params = [{transform_indices = @transform_0, window_bounds = array<i64: 1, 32, 64>}, {pipeline_mode = #tpu.pipeline_mode<synchronous>, transform_indices = @transform_1, window_bounds = array<i64: 32, 16>}, {pipeline_mode = #tpu.pipeline_mode<synchronous>, transform_indices = @transform_2, window_bounds = array<i64: 32, 16>}, {pipeline_mode = #tpu.pipeline_mode<synchronous>, transform_indices = @transform_3, window_bounds = array<i64: 1, 64>}, {pipeline_mode = #tpu.pipeline_mode<synchronous>, transform_indices = @transform_4, window_bounds = array<i64: 1, 64>}, {pipeline_mode = #tpu.pipeline_mode<synchronous>, transform_indices = @transform_5, window_bounds = array<i64: 64, 64>}, {pipeline_mode = #tpu.pipeline_mode<synchronous>, transform_indices = @transform_6, window_bounds = array<i64: 64, 64>}, {pipeline_mode = #tpu.pipeline_mode<synchronous>, transform_indices = @transform_7, window_bounds = array<i64: 64, 64>}, {pipeline_mode = #tpu.pipeline_mode<synchronous>, transform_indices = @transform_8, window_bounds = array<i64: 64, 64>}, {pipeline_mode = #tpu.pipeline_mode<synchronous>, transform_indices = @transform_9, window_bounds = array<i64: 1, 64>}, {pipeline_mode = #tpu.pipeline_mode<synchronous>, transform_indices = @transform_10, window_bounds = array<i64: 1, 64>}, {pipeline_mode = #tpu.pipeline_mode<synchronous>, transform_indices = @transform_11, window_bounds = array<i64: 1, 64>}, {pipeline_mode = #tpu.pipeline_mode<synchronous>, transform_indices = @transform_12, window_bounds = array<i64: 64, 256>}, {pipeline_mode = #tpu.pipeline_mode<synchronous>, transform_indices = @transform_13, window_bounds = array<i64: 1, 256>}, {pipeline_mode = #tpu.pipeline_mode<synchronous>, transform_indices = @transform_14, window_bounds = array<i64: 256, 64>}, {pipeline_mode = #tpu.pipeline_mode<synchronous>, transform_indices = @transform_15, window_bounds = array<i64: 1, 64>}, {transform_indices = @transform_16, window_bounds = array<i64: 1, 16, 64>}]} {
    %c0_i32 = arith.constant 0 : i32
    %0 = arith.cmpi eq, %arg1, %c0_i32 : i32
    %1 = arith.extui %0 : i1 to i32
    %c0_i32_0 = arith.constant 0 : i32
    %2 = arith.cmpi ne, %1, %c0_i32_0 : i32
    scf.if %2 {
      %c0_50 = arith.constant 0 : index
      %c0_51 = arith.constant 0 : index
      %c0_52 = arith.constant 0 : index
      %96 = vector.load %arg2[%c0_50, %c0_51, %c0_52] : memref<1x32x64xf32, #tpu.memory_space<vmem>>, vector<1x32x64xf32>
      %97 = vector.shape_cast %96 : vector<1x32x64xf32> to vector<32x64xf32>
      %c0_53 = arith.constant 0 : index
      %c0_54 = arith.constant 0 : index
      %98 = vector.load %arg5[%c0_53, %c0_54] : memref<1x64xf32, #tpu.memory_space<vmem>>, vector<1x64xf32>
      %c0_55 = arith.constant 0 : index
      %c0_56 = arith.constant 0 : index
      %99 = vector.load %arg6[%c0_55, %c0_56] : memref<1x64xf32, #tpu.memory_space<vmem>>, vector<1x64xf32>
      %cst_57 = arith.constant dense<0.000000e+00> : vector<32xf32>
      %100 = vector.multi_reduction <add>, %97, %cst_57 [1] : vector<32x64xf32> to vector<32xf32>
      %101 = vector.shape_cast %100 : vector<32xf32> to vector<32x1xf32>
      %cst_58 = arith.constant 6.400000e+01 : f32
      %102 = vector.broadcast %cst_58 : f32 to vector<32x1xf32>
      %103 = arith.divf %101, %102 : vector<32x1xf32>
      %104 = vector.broadcast %103 : vector<32x1xf32> to vector<32x64xf32>
      %105 = arith.subf %97, %104 : vector<32x64xf32>
      %106 = arith.mulf %105, %105 : vector<32x64xf32>
      %cst_59 = arith.constant dense<0.000000e+00> : vector<32xf32>
      %107 = vector.multi_reduction <add>, %106, %cst_59 [1] : vector<32x64xf32> to vector<32xf32>
      %108 = vector.shape_cast %107 : vector<32xf32> to vector<32x1xf32>
      %cst_60 = arith.constant 6.400000e+01 : f32
      %109 = vector.broadcast %cst_60 : f32 to vector<32x1xf32>
      %110 = arith.divf %108, %109 : vector<32x1xf32>
      %111 = vector.broadcast %103 : vector<32x1xf32> to vector<32x64xf32>
      %112 = arith.subf %97, %111 : vector<32x64xf32>
      %cst_61 = arith.constant 9.99999997E-7 : f32
      %113 = vector.broadcast %cst_61 : f32 to vector<32x1xf32>
      %114 = arith.addf %110, %113 : vector<32x1xf32>
      %115 = math.rsqrt %114 : vector<32x1xf32>
      %116 = vector.broadcast %115 : vector<32x1xf32> to vector<32x64xf32>
      %117 = arith.mulf %112, %116 : vector<32x64xf32>
      %118 = vector.broadcast %98 : vector<1x64xf32> to vector<32x64xf32>
      %119 = arith.mulf %117, %118 : vector<32x64xf32>
      %120 = vector.broadcast %99 : vector<1x64xf32> to vector<32x64xf32>
      %121 = arith.addf %119, %120 : vector<32x64xf32>
      %122 = arith.truncf %121 : vector<32x64xf32> to vector<32x64xbf16>
      %c0_62 = arith.constant 0 : index
      %c0_63 = arith.constant 0 : index
      %123 = vector.load %arg7[%c0_62, %c0_63] : memref<64x64xbf16, #tpu.memory_space<vmem>>, vector<64x64xbf16>
      %cst_64 = arith.constant dense<0.000000e+00> : vector<32x64xf32>
      %124 = tpu.matmul %122, %123, %cst_64 {dimension_numbers = #tpu.dot_dimension_numbers<[1], [0], [0], [1], [0, 0, 1, 1], [], []>} : vector<32x64xbf16>, vector<64x64xbf16>, vector<32x64xf32> -> vector<32x64xf32>
      %c0_65 = arith.constant 0 : index
      %c0_66 = arith.constant 0 : index
      %125 = vector.load %arg8[%c0_65, %c0_66] : memref<64x64xbf16, #tpu.memory_space<vmem>>, vector<64x64xbf16>
      %cst_67 = arith.constant dense<0.000000e+00> : vector<32x64xf32>
      %126 = tpu.matmul %122, %125, %cst_67 {dimension_numbers = #tpu.dot_dimension_numbers<[1], [0], [0], [1], [0, 0, 1, 1], [], []>} : vector<32x64xbf16>, vector<64x64xbf16>, vector<32x64xf32> -> vector<32x64xf32>
      %c0_68 = arith.constant 0 : index
      %c0_69 = arith.constant 0 : index
      %127 = vector.load %arg9[%c0_68, %c0_69] : memref<64x64xbf16, #tpu.memory_space<vmem>>, vector<64x64xbf16>
      %cst_70 = arith.constant dense<0.000000e+00> : vector<32x64xf32>
      %128 = tpu.matmul %122, %127, %cst_70 {dimension_numbers = #tpu.dot_dimension_numbers<[1], [0], [0], [1], [0, 0, 1, 1], [], []>} : vector<32x64xbf16>, vector<64x64xbf16>, vector<32x64xf32> -> vector<32x64xf32>
      %c0_71 = arith.constant 0 : index
      %c0_72 = arith.constant 0 : index
      %129 = vector.load %arg3[%c0_71, %c0_72] : memref<32x16xf32, #tpu.memory_space<vmem>>, vector<32x16xf32>
      %c0_73 = arith.constant 0 : index
      %c0_74 = arith.constant 0 : index
      %130 = vector.load %arg4[%c0_73, %c0_74] : memref<32x16xf32, #tpu.memory_space<vmem>>, vector<32x16xf32>
      %131 = vector.extract_strided_slice %124 {offsets = [0, 0], sizes = [32, 16], strides = [1, 1]} : vector<32x64xf32> to vector<32x16xf32>
      %132 = vector.extract_strided_slice %126 {offsets = [0, 0], sizes = [32, 16], strides = [1, 1]} : vector<32x64xf32> to vector<32x16xf32>
      %133 = arith.mulf %131, %129 : vector<32x16xf32>
      %c8_i32 = arith.constant 8 : i32
      %134 = tpu.dynamic_rotate %131 by %c8_i32 dim 1 : vector<32x16xf32>, i32 -> vector<32x16xf32>
      %135 = arith.mulf %134, %130 : vector<32x16xf32>
      %136 = arith.addf %133, %135 : vector<32x16xf32>
      %137 = arith.truncf %136 : vector<32x16xf32> to vector<32x16xbf16>
      %c0_75 = arith.constant 0 : index
      %c0_76 = arith.constant 0 : index
      %c0_77 = arith.constant 0 : index
      %138 = vector.load %arg19[%c0_75, %c0_76, %c0_77] : memref<4x32x16xbf16, #tpu.memory_space<vmem>>, vector<1x32x16xbf16>
      %139 = vector.shape_cast %138 : vector<1x32x16xbf16> to vector<32x16xbf16>
      %140 = vector.shape_cast %137 : vector<32x16xbf16> to vector<1x32x16xbf16>
      tpu.vector_store %arg19[%c0_75, %c0_76, %c0_77], %140 {strides = array<i32>} : memref<4x32x16xbf16, #tpu.memory_space<vmem>>, vector<1x32x16xbf16>,
      %141 = arith.mulf %132, %129 : vector<32x16xf32>
      %c8_i32_78 = arith.constant 8 : i32
      %142 = tpu.dynamic_rotate %132 by %c8_i32_78 dim 1 : vector<32x16xf32>, i32 -> vector<32x16xf32>
      %143 = arith.mulf %142, %130 : vector<32x16xf32>
      %144 = arith.addf %141, %143 : vector<32x16xf32>
      %145 = arith.truncf %144 : vector<32x16xf32> to vector<32x16xbf16>
      %c0_79 = arith.constant 0 : index
      %c0_80 = arith.constant 0 : index
      %c0_81 = arith.constant 0 : index
      %146 = vector.load %arg20[%c0_79, %c0_80, %c0_81] : memref<4x32x16xbf16, #tpu.memory_space<vmem>>, vector<1x32x16xbf16>
      %147 = vector.shape_cast %146 : vector<1x32x16xbf16> to vector<32x16xbf16>
      %148 = vector.shape_cast %145 : vector<32x16xbf16> to vector<1x32x16xbf16>
      tpu.vector_store %arg20[%c0_79, %c0_80, %c0_81], %148 {strides = array<i32>} : memref<4x32x16xbf16, #tpu.memory_space<vmem>>, vector<1x32x16xbf16>,
      %149 = vector.extract_strided_slice %128 {offsets = [0, 0], sizes = [32, 16], strides = [1, 1]} : vector<32x64xf32> to vector<32x16xf32>
      %150 = arith.truncf %149 : vector<32x16xf32> to vector<32x16xbf16>
      %c0_82 = arith.constant 0 : index
      %c0_83 = arith.constant 0 : index
      %c0_84 = arith.constant 0 : index
      %151 = vector.load %arg21[%c0_82, %c0_83, %c0_84] : memref<4x32x16xbf16, #tpu.memory_space<vmem>>, vector<1x32x16xbf16>
      %152 = vector.shape_cast %151 : vector<1x32x16xbf16> to vector<32x16xbf16>
      %153 = vector.shape_cast %150 : vector<32x16xbf16> to vector<1x32x16xbf16>
      tpu.vector_store %arg21[%c0_82, %c0_83, %c0_84], %153 {strides = array<i32>} : memref<4x32x16xbf16, #tpu.memory_space<vmem>>, vector<1x32x16xbf16>,
      %154 = vector.extract_strided_slice %124 {offsets = [0, 16], sizes = [32, 16], strides = [1, 1]} : vector<32x64xf32> to vector<32x16xf32>
      %155 = vector.extract_strided_slice %126 {offsets = [0, 16], sizes = [32, 16], strides = [1, 1]} : vector<32x64xf32> to vector<32x16xf32>
      %156 = arith.mulf %154, %129 : vector<32x16xf32>
      %c8_i32_85 = arith.constant 8 : i32
      %157 = tpu.dynamic_rotate %154 by %c8_i32_85 dim 1 : vector<32x16xf32>, i32 -> vector<32x16xf32>
      %158 = arith.mulf %157, %130 : vector<32x16xf32>
      %159 = arith.addf %156, %158 : vector<32x16xf32>
      %160 = arith.truncf %159 : vector<32x16xf32> to vector<32x16xbf16>
      %c1 = arith.constant 1 : index
      %c0_86 = arith.constant 0 : index
      %c0_87 = arith.constant 0 : index
      %161 = vector.load %arg19[%c1, %c0_86, %c0_87] : memref<4x32x16xbf16, #tpu.memory_space<vmem>>, vector<1x32x16xbf16>
      %162 = vector.shape_cast %161 : vector<1x32x16xbf16> to vector<32x16xbf16>
      %163 = vector.shape_cast %160 : vector<32x16xbf16> to vector<1x32x16xbf16>
      tpu.vector_store %arg19[%c1, %c0_86, %c0_87], %163 {strides = array<i32>} : memref<4x32x16xbf16, #tpu.memory_space<vmem>>, vector<1x32x16xbf16>,
      %164 = arith.mulf %155, %129 : vector<32x16xf32>
      %c8_i32_88 = arith.constant 8 : i32
      %165 = tpu.dynamic_rotate %155 by %c8_i32_88 dim 1 : vector<32x16xf32>, i32 -> vector<32x16xf32>
      %166 = arith.mulf %165, %130 : vector<32x16xf32>
      %167 = arith.addf %164, %166 : vector<32x16xf32>
      %168 = arith.truncf %167 : vector<32x16xf32> to vector<32x16xbf16>
      %c1_89 = arith.constant 1 : index
      %c0_90 = arith.constant 0 : index
      %c0_91 = arith.constant 0 : index
      %169 = vector.load %arg20[%c1_89, %c0_90, %c0_91] : memref<4x32x16xbf16, #tpu.memory_space<vmem>>, vector<1x32x16xbf16>
      %170 = vector.shape_cast %169 : vector<1x32x16xbf16> to vector<32x16xbf16>
      %171 = vector.shape_cast %168 : vector<32x16xbf16> to vector<1x32x16xbf16>
      tpu.vector_store %arg20[%c1_89, %c0_90, %c0_91], %171 {strides = array<i32>} : memref<4x32x16xbf16, #tpu.memory_space<vmem>>, vector<1x32x16xbf16>,
      %172 = vector.extract_strided_slice %128 {offsets = [0, 16], sizes = [32, 16], strides = [1, 1]} : vector<32x64xf32> to vector<32x16xf32>
      %173 = arith.truncf %172 : vector<32x16xf32> to vector<32x16xbf16>
      %c1_92 = arith.constant 1 : index
      %c0_93 = arith.constant 0 : index
      %c0_94 = arith.constant 0 : index
      %174 = vector.load %arg21[%c1_92, %c0_93, %c0_94] : memref<4x32x16xbf16, #tpu.memory_space<vmem>>, vector<1x32x16xbf16>
      %175 = vector.shape_cast %174 : vector<1x32x16xbf16> to vector<32x16xbf16>
      %176 = vector.shape_cast %173 : vector<32x16xbf16> to vector<1x32x16xbf16>
      tpu.vector_store %arg21[%c1_92, %c0_93, %c0_94], %176 {strides = array<i32>} : memref<4x32x16xbf16, #tpu.memory_space<vmem>>, vector<1x32x16xbf16>,
      %177 = vector.extract_strided_slice %124 {offsets = [0, 32], sizes = [32, 16], strides = [1, 1]} : vector<32x64xf32> to vector<32x16xf32>
      %178 = vector.extract_strided_slice %126 {offsets = [0, 32], sizes = [32, 16], strides = [1, 1]} : vector<32x64xf32> to vector<32x16xf32>
      %179 = arith.mulf %177, %129 : vector<32x16xf32>
      %c8_i32_95 = arith.constant 8 : i32
      %180 = tpu.dynamic_rotate %177 by %c8_i32_95 dim 1 : vector<32x16xf32>, i32 -> vector<32x16xf32>
      %181 = arith.mulf %180, %130 : vector<32x16xf32>
      %182 = arith.addf %179, %181 : vector<32x16xf32>
      %183 = arith.truncf %182 : vector<32x16xf32> to vector<32x16xbf16>
      %c2 = arith.constant 2 : index
      %c0_96 = arith.constant 0 : index
      %c0_97 = arith.constant 0 : index
      %184 = vector.load %arg19[%c2, %c0_96, %c0_97] : memref<4x32x16xbf16, #tpu.memory_space<vmem>>, vector<1x32x16xbf16>
      %185 = vector.shape_cast %184 : vector<1x32x16xbf16> to vector<32x16xbf16>
      %186 = vector.shape_cast %183 : vector<32x16xbf16> to vector<1x32x16xbf16>
      tpu.vector_store %arg19[%c2, %c0_96, %c0_97], %186 {strides = array<i32>} : memref<4x32x16xbf16, #tpu.memory_space<vmem>>, vector<1x32x16xbf16>,
      %187 = arith.mulf %178, %129 : vector<32x16xf32>
      %c8_i32_98 = arith.constant 8 : i32
      %188 = tpu.dynamic_rotate %178 by %c8_i32_98 dim 1 : vector<32x16xf32>, i32 -> vector<32x16xf32>
      %189 = arith.mulf %188, %130 : vector<32x16xf32>
      %190 = arith.addf %187, %189 : vector<32x16xf32>
      %191 = arith.truncf %190 : vector<32x16xf32> to vector<32x16xbf16>
      %c2_99 = arith.constant 2 : index
      %c0_100 = arith.constant 0 : index
      %c0_101 = arith.constant 0 : index
      %192 = vector.load %arg20[%c2_99, %c0_100, %c0_101] : memref<4x32x16xbf16, #tpu.memory_space<vmem>>, vector<1x32x16xbf16>
      %193 = vector.shape_cast %192 : vector<1x32x16xbf16> to vector<32x16xbf16>
      %194 = vector.shape_cast %191 : vector<32x16xbf16> to vector<1x32x16xbf16>
      tpu.vector_store %arg20[%c2_99, %c0_100, %c0_101], %194 {strides = array<i32>} : memref<4x32x16xbf16, #tpu.memory_space<vmem>>, vector<1x32x16xbf16>,
      %195 = vector.extract_strided_slice %128 {offsets = [0, 32], sizes = [32, 16], strides = [1, 1]} : vector<32x64xf32> to vector<32x16xf32>
      %196 = arith.truncf %195 : vector<32x16xf32> to vector<32x16xbf16>
      %c2_102 = arith.constant 2 : index
      %c0_103 = arith.constant 0 : index
      %c0_104 = arith.constant 0 : index
      %197 = vector.load %arg21[%c2_102, %c0_103, %c0_104] : memref<4x32x16xbf16, #tpu.memory_space<vmem>>, vector<1x32x16xbf16>
      %198 = vector.shape_cast %197 : vector<1x32x16xbf16> to vector<32x16xbf16>
      %199 = vector.shape_cast %196 : vector<32x16xbf16> to vector<1x32x16xbf16>
      tpu.vector_store %arg21[%c2_102, %c0_103, %c0_104], %199 {strides = array<i32>} : memref<4x32x16xbf16, #tpu.memory_space<vmem>>, vector<1x32x16xbf16>,
      %200 = vector.extract_strided_slice %124 {offsets = [0, 48], sizes = [32, 16], strides = [1, 1]} : vector<32x64xf32> to vector<32x16xf32>
      %201 = vector.extract_strided_slice %126 {offsets = [0, 48], sizes = [32, 16], strides = [1, 1]} : vector<32x64xf32> to vector<32x16xf32>
      %202 = arith.mulf %200, %129 : vector<32x16xf32>
      %c8_i32_105 = arith.constant 8 : i32
      %203 = tpu.dynamic_rotate %200 by %c8_i32_105 dim 1 : vector<32x16xf32>, i32 -> vector<32x16xf32>
      %204 = arith.mulf %203, %130 : vector<32x16xf32>
      %205 = arith.addf %202, %204 : vector<32x16xf32>
      %206 = arith.truncf %205 : vector<32x16xf32> to vector<32x16xbf16>
      %c3 = arith.constant 3 : index
      %c0_106 = arith.constant 0 : index
      %c0_107 = arith.constant 0 : index
      %207 = vector.load %arg19[%c3, %c0_106, %c0_107] : memref<4x32x16xbf16, #tpu.memory_space<vmem>>, vector<1x32x16xbf16>
      %208 = vector.shape_cast %207 : vector<1x32x16xbf16> to vector<32x16xbf16>
      %209 = vector.shape_cast %206 : vector<32x16xbf16> to vector<1x32x16xbf16>
      tpu.vector_store %arg19[%c3, %c0_106, %c0_107], %209 {strides = array<i32>} : memref<4x32x16xbf16, #tpu.memory_space<vmem>>, vector<1x32x16xbf16>,
      %210 = arith.mulf %201, %129 : vector<32x16xf32>
      %c8_i32_108 = arith.constant 8 : i32
      %211 = tpu.dynamic_rotate %201 by %c8_i32_108 dim 1 : vector<32x16xf32>, i32 -> vector<32x16xf32>
      %212 = arith.mulf %211, %130 : vector<32x16xf32>
      %213 = arith.addf %210, %212 : vector<32x16xf32>
      %214 = arith.truncf %213 : vector<32x16xf32> to vector<32x16xbf16>
      %c3_109 = arith.constant 3 : index
      %c0_110 = arith.constant 0 : index
      %c0_111 = arith.constant 0 : index
      %215 = vector.load %arg20[%c3_109, %c0_110, %c0_111] : memref<4x32x16xbf16, #tpu.memory_space<vmem>>, vector<1x32x16xbf16>
      %216 = vector.shape_cast %215 : vector<1x32x16xbf16> to vector<32x16xbf16>
      %217 = vector.shape_cast %214 : vector<32x16xbf16> to vector<1x32x16xbf16>
      tpu.vector_store %arg20[%c3_109, %c0_110, %c0_111], %217 {strides = array<i32>} : memref<4x32x16xbf16, #tpu.memory_space<vmem>>, vector<1x32x16xbf16>,
      %218 = vector.extract_strided_slice %128 {offsets = [0, 48], sizes = [32, 16], strides = [1, 1]} : vector<32x64xf32> to vector<32x16xf32>
      %219 = arith.truncf %218 : vector<32x16xf32> to vector<32x16xbf16>
      %c3_112 = arith.constant 3 : index
      %c0_113 = arith.constant 0 : index
      %c0_114 = arith.constant 0 : index
      %220 = vector.load %arg21[%c3_112, %c0_113, %c0_114] : memref<4x32x16xbf16, #tpu.memory_space<vmem>>, vector<1x32x16xbf16>
      %221 = vector.shape_cast %220 : vector<1x32x16xbf16> to vector<32x16xbf16>
      %222 = vector.shape_cast %219 : vector<32x16xbf16> to vector<1x32x16xbf16>
      tpu.vector_store %arg21[%c3_112, %c0_113, %c0_114], %222 {strides = array<i32>} : memref<4x32x16xbf16, #tpu.memory_space<vmem>>, vector<1x32x16xbf16>,
    } else {
    }
    %c16_i32 = arith.constant 16 : i32
    %3 = arith.muli %arg1, %c16_i32 : i32
    %4 = tpu.assume_multiple %3, 16 : i32
    %c0 = arith.constant 0 : index
    %5 = arith.index_cast %4 : i32 to index
    %c0_1 = arith.constant 0 : index
    %6 = vector.load %arg2[%c0, %5, %c0_1] : memref<1x32x64xf32, #tpu.memory_space<vmem>>, vector<1x16x64xf32>
    %7 = vector.shape_cast %6 : vector<1x16x64xf32> to vector<16x64xf32>
    %c0_2 = arith.constant 0 : index
    %8 = arith.index_cast %4 : i32 to index
    %c0_3 = arith.constant 0 : index
    %9 = vector.load %arg19[%c0_2, %8, %c0_3] : memref<4x32x16xbf16, #tpu.memory_space<vmem>>, vector<4x16x16xbf16>
    %c0_4 = arith.constant 0 : index
    %c0_5 = arith.constant 0 : index
    %c0_6 = arith.constant 0 : index
    %10 = vector.load %arg20[%c0_4, %c0_5, %c0_6] : memref<4x32x16xbf16, #tpu.memory_space<vmem>>, vector<4x32x16xbf16>
    "tpu.trace_start"() <{level = 10 : i32, message = "hqd,hkd->hqk"}> : () -> ()
    %cst = arith.constant dense<0.000000e+00> : vector<4x16x32xf32>
    %11 = tpu.matmul %9, %10, %cst {dimension_numbers = #tpu.dot_dimension_numbers<[2], [2], [1], [1], [0, 0, 0, 1, 1, 1], [0], [0]>} : vector<4x16x16xbf16>, vector<4x32x16xbf16>, vector<4x16x32xf32> -> vector<4x16x32xf32>
    "tpu.trace_stop"() : () -> ()
    %cst_7 = arith.constant dense<0xFF800000> : vector<4x16xf32>
    %12 = vector.multi_reduction <maximumf>, %11, %cst_7 [2] : vector<4x16x32xf32> to vector<4x16xf32>
    %13 = vector.shape_cast %12 : vector<4x16xf32> to vector<4x16x1xf32>
    %14 = vector.broadcast %13 : vector<4x16x1xf32> to vector<4x16x32xf32>
    %15 = arith.subf %11, %14 : vector<4x16x32xf32>
    %16 = math.exp %15 : vector<4x16x32xf32>
    %cst_8 = arith.constant dense<0.000000e+00> : vector<4x16xf32>
    %17 = vector.multi_reduction <add>, %16, %cst_8 [2] : vector<4x16x32xf32> to vector<4x16xf32>
    %18 = vector.shape_cast %17 : vector<4x16xf32> to vector<4x16x1xf32>
    %19 = tpu.reciprocal %18 {approx = true} : vector<4x16x1xf32> -> vector<4x16x1xf32>
    %20 = arith.truncf %16 : vector<4x16x32xf32> to vector<4x16x32xbf16>
    %c0_9 = arith.constant 0 : index
    %c0_10 = arith.constant 0 : index
    %c0_11 = arith.constant 0 : index
    %21 = vector.load %arg21[%c0_9, %c0_10, %c0_11] : memref<4x32x16xbf16, #tpu.memory_space<vmem>>, vector<4x32x16xbf16>
    "tpu.trace_start"() <{level = 10 : i32, message = "hqk,hkd->hqd"}> : () -> ()
    %cst_12 = arith.constant dense<0.000000e+00> : vector<4x16x16xf32>
    %22 = tpu.matmul %20, %21, %cst_12 {dimension_numbers = #tpu.dot_dimension_numbers<[2], [1], [1], [2], [0, 0, 0, 1, 1, 2], [0], [0]>} : vector<4x16x32xbf16>, vector<4x32x16xbf16>, vector<4x16x16xf32> -> vector<4x16x16xf32>
    "tpu.trace_stop"() : () -> ()
    %23 = vector.broadcast %19 : vector<4x16x1xf32> to vector<4x16x16xf32>
    %24 = arith.mulf %22, %23 : vector<4x16x16xf32>
    %25 = vector.extract_strided_slice %24 {offsets = [0, 0, 0], sizes = [1, 16, 16], strides = [1, 1, 1]} : vector<4x16x16xf32> to vector<1x16x16xf32>
    %26 = vector.shape_cast %25 : vector<1x16x16xf32> to vector<16x16xf32>
    %27 = arith.truncf %26 : vector<16x16xf32> to vector<16x16xbf16>
    %c0_13 = arith.constant 0 : index
    %c0_14 = arith.constant 0 : index
    %28 = vector.load %arg22[%c0_13, %c0_14] : memref<16x64xbf16, #tpu.memory_space<vmem>>, vector<16x16xbf16>
    tpu.vector_store %arg22[%c0_13, %c0_14], %27 {strides = array<i32>} : memref<16x64xbf16, #tpu.memory_space<vmem>>, vector<16x16xbf16>,
    %29 = vector.extract_strided_slice %24 {offsets = [1, 0, 0], sizes = [1, 16, 16], strides = [1, 1, 1]} : vector<4x16x16xf32> to vector<1x16x16xf32>
    %30 = vector.shape_cast %29 : vector<1x16x16xf32> to vector<16x16xf32>
    %31 = arith.truncf %30 : vector<16x16xf32> to vector<16x16xbf16>
    %c0_15 = arith.constant 0 : index
    %c16 = arith.constant 16 : index
    %32 = vector.load %arg22[%c0_15, %c16] : memref<16x64xbf16, #tpu.memory_space<vmem>>, vector<16x16xbf16>
    tpu.vector_store %arg22[%c0_15, %c16], %31 {strides = array<i32>} : memref<16x64xbf16, #tpu.memory_space<vmem>>, vector<16x16xbf16>,
    %33 = vector.extract_strided_slice %24 {offsets = [2, 0, 0], sizes = [1, 16, 16], strides = [1, 1, 1]} : vector<4x16x16xf32> to vector<1x16x16xf32>
    %34 = vector.shape_cast %33 : vector<1x16x16xf32> to vector<16x16xf32>
    %35 = arith.truncf %34 : vector<16x16xf32> to vector<16x16xbf16>
    %c0_16 = arith.constant 0 : index
    %c32 = arith.constant 32 : index
    %36 = vector.load %arg22[%c0_16, %c32] : memref<16x64xbf16, #tpu.memory_space<vmem>>, vector<16x16xbf16>
    tpu.vector_store %arg22[%c0_16, %c32], %35 {strides = array<i32>} : memref<16x64xbf16, #tpu.memory_space<vmem>>, vector<16x16xbf16>,
    %37 = vector.extract_strided_slice %24 {offsets = [3, 0, 0], sizes = [1, 16, 16], strides = [1, 1, 1]} : vector<4x16x16xf32> to vector<1x16x16xf32>
    %38 = vector.shape_cast %37 : vector<1x16x16xf32> to vector<16x16xf32>
    %39 = arith.truncf %38 : vector<16x16xf32> to vector<16x16xbf16>
    %c0_17 = arith.constant 0 : index
    %c48 = arith.constant 48 : index
    %40 = vector.load %arg22[%c0_17, %c48] : memref<16x64xbf16, #tpu.memory_space<vmem>>, vector<16x16xbf16>
    tpu.vector_store %arg22[%c0_17, %c48], %39 {strides = array<i32>} : memref<16x64xbf16, #tpu.memory_space<vmem>>, vector<16x16xbf16>,
    %c0_18 = arith.constant 0 : index
    %c0_19 = arith.constant 0 : index
    %41 = vector.load %arg22[%c0_18, %c0_19] : memref<16x64xbf16, #tpu.memory_space<vmem>>, vector<16x64xbf16>
    %c0_20 = arith.constant 0 : index
    %c0_21 = arith.constant 0 : index
    %42 = vector.load %arg10[%c0_20, %c0_21] : memref<64x64xbf16, #tpu.memory_space<vmem>>, vector<64x64xbf16>
    %cst_22 = arith.constant dense<0.000000e+00> : vector<16x64xf32>
    %43 = tpu.matmul %41, %42, %cst_22 {dimension_numbers = #tpu.dot_dimension_numbers<[1], [0], [0], [1], [0, 0, 1, 1], [], []>} : vector<16x64xbf16>, vector<64x64xbf16>, vector<16x64xf32> -> vector<16x64xf32>
    %c0_23 = arith.constant 0 : index
    %c0_24 = arith.constant 0 : index
    %44 = vector.load %arg11[%c0_23, %c0_24] : memref<1x64xf32, #tpu.memory_space<vmem>>, vector<1x64xf32>
    %45 = vector.broadcast %44 : vector<1x64xf32> to vector<16x64xf32>
    %46 = arith.addf %43, %45 : vector<16x64xf32>
    %47 = arith.addf %7, %46 : vector<16x64xf32>
    %c0_25 = arith.constant 0 : index
    %c0_26 = arith.constant 0 : index
    %48 = vector.load %arg12[%c0_25, %c0_26] : memref<1x64xf32, #tpu.memory_space<vmem>>, vector<1x64xf32>
    %c0_27 = arith.constant 0 : index
    %c0_28 = arith.constant 0 : index
    %49 = vector.load %arg13[%c0_27, %c0_28] : memref<1x64xf32, #tpu.memory_space<vmem>>, vector<1x64xf32>
    %cst_29 = arith.constant dense<0.000000e+00> : vector<16xf32>
    %50 = vector.multi_reduction <add>, %47, %cst_29 [1] : vector<16x64xf32> to vector<16xf32>
    %51 = vector.shape_cast %50 : vector<16xf32> to vector<16x1xf32>
    %cst_30 = arith.constant 6.400000e+01 : f32
    %52 = vector.broadcast %cst_30 : f32 to vector<16x1xf32>
    %53 = arith.divf %51, %52 : vector<16x1xf32>
    %54 = vector.broadcast %53 : vector<16x1xf32> to vector<16x64xf32>
    %55 = arith.subf %47, %54 : vector<16x64xf32>
    %56 = arith.mulf %55, %55 : vector<16x64xf32>
    %cst_31 = arith.constant dense<0.000000e+00> : vector<16xf32>
    %57 = vector.multi_reduction <add>, %56, %cst_31 [1] : vector<16x64xf32> to vector<16xf32>
    %58 = vector.shape_cast %57 : vector<16xf32> to vector<16x1xf32>
    %cst_32 = arith.constant 6.400000e+01 : f32
    %59 = vector.broadcast %cst_32 : f32 to vector<16x1xf32>
    %60 = arith.divf %58, %59 : vector<16x1xf32>
    %61 = vector.broadcast %53 : vector<16x1xf32> to vector<16x64xf32>
    %62 = arith.subf %47, %61 : vector<16x64xf32>
    %cst_33 = arith.constant 9.99999997E-7 : f32
    %63 = vector.broadcast %cst_33 : f32 to vector<16x1xf32>
    %64 = arith.addf %60, %63 : vector<16x1xf32>
    %65 = math.rsqrt %64 : vector<16x1xf32>
    %66 = vector.broadcast %65 : vector<16x1xf32> to vector<16x64xf32>
    %67 = arith.mulf %62, %66 : vector<16x64xf32>
    %68 = vector.broadcast %48 : vector<1x64xf32> to vector<16x64xf32>
    %69 = arith.mulf %67, %68 : vector<16x64xf32>
    %70 = vector.broadcast %49 : vector<1x64xf32> to vector<16x64xf32>
    %71 = arith.addf %69, %70 : vector<16x64xf32>
    %72 = arith.truncf %71 : vector<16x64xf32> to vector<16x64xbf16>
    %c0_34 = arith.constant 0 : index
    %c0_35 = arith.constant 0 : index
    %73 = vector.load %arg14[%c0_34, %c0_35] : memref<64x256xbf16, #tpu.memory_space<vmem>>, vector<64x256xbf16>
    %cst_36 = arith.constant dense<0.000000e+00> : vector<16x256xf32>
    %74 = tpu.matmul %72, %73, %cst_36 {dimension_numbers = #tpu.dot_dimension_numbers<[1], [0], [0], [1], [0, 0, 1, 1], [], []>} : vector<16x64xbf16>, vector<64x256xbf16>, vector<16x256xf32> -> vector<16x256xf32>
    %c0_37 = arith.constant 0 : index
    %c0_38 = arith.constant 0 : index
    %75 = vector.load %arg15[%c0_37, %c0_38] : memref<1x256xf32, #tpu.memory_space<vmem>>, vector<1x256xf32>
    %76 = vector.broadcast %75 : vector<1x256xf32> to vector<16x256xf32>
    %77 = arith.addf %74, %76 : vector<16x256xf32>
    %cst_39 = arith.constant 5.000000e-01 : f32
    %78 = vector.broadcast %cst_39 : f32 to vector<16x256xf32>
    %79 = arith.mulf %78, %77 : vector<16x256xf32>
    %cst_40 = arith.constant 0.707106769 : f32
    %80 = vector.broadcast %cst_40 : f32 to vector<16x256xf32>
    %81 = arith.mulf %77, %80 : vector<16x256xf32>
    %82 = math.erf %81 : vector<16x256xf32>
    %cst_41 = arith.constant 1.000000e+00 : f32
    %83 = vector.broadcast %cst_41 : f32 to vector<16x256xf32>
    %84 = arith.addf %83, %82 : vector<16x256xf32>
    %85 = arith.mulf %79, %84 : vector<16x256xf32>
    %86 = arith.truncf %85 : vector<16x256xf32> to vector<16x256xbf16>
    %c0_42 = arith.constant 0 : index
    %c0_43 = arith.constant 0 : index
    %87 = vector.load %arg16[%c0_42, %c0_43] : memref<256x64xbf16, #tpu.memory_space<vmem>>, vector<256x64xbf16>
    %cst_44 = arith.constant dense<0.000000e+00> : vector<16x64xf32>
    %88 = tpu.matmul %86, %87, %cst_44 {dimension_numbers = #tpu.dot_dimension_numbers<[1], [0], [0], [1], [0, 0, 1, 1], [], []>} : vector<16x256xbf16>, vector<256x64xbf16>, vector<16x64xf32> -> vector<16x64xf32>
    %c0_45 = arith.constant 0 : index
    %c0_46 = arith.constant 0 : index
    %89 = vector.load %arg17[%c0_45, %c0_46] : memref<1x64xf32, #tpu.memory_space<vmem>>, vector<1x64xf32>
    %90 = vector.broadcast %89 : vector<1x64xf32> to vector<16x64xf32>
    %91 = arith.addf %88, %90 : vector<16x64xf32>
    %92 = arith.addf %47, %91 : vector<16x64xf32>
    %c0_47 = arith.constant 0 : index
    %c0_48 = arith.constant 0 : index
    %c0_49 = arith.constant 0 : index
    %93 = vector.load %arg18[%c0_47, %c0_48, %c0_49] : memref<1x16x64xf32, #tpu.memory_space<vmem>>, vector<1x16x64xf32>
    %94 = vector.shape_cast %93 : vector<1x16x64xf32> to vector<16x64xf32>
    %95 = vector.shape_cast %92 : vector<16x64xf32> to vector<1x16x64xf32>
    tpu.vector_store %arg18[%c0_47, %c0_48, %c0_49], %95 {strides = array<i32>} : memref<1x16x64xf32, #tpu.memory_space<vmem>>, vector<1x16x64xf32>,
    return
  }
  func.func @transform_0(%arg0: i32, %arg1: i32) -> (i32, i32, i32) {
    %c0_i32 = arith.constant 0 : i32
    %c0_i32_0 = arith.constant 0 : i32
    %c0_i32_1 = arith.constant 0 : i32
    return %arg0, %c0_i32, %c0_i32_0 : i32, i32, i32
  }
  func.func @transform_1(%arg0: i32, %arg1: i32) -> (i32, i32) {
    %c0_i32 = arith.constant 0 : i32
    %c0_i32_0 = arith.constant 0 : i32
    %c0_i32_1 = arith.constant 0 : i32
    return %c0_i32, %c0_i32_0 : i32, i32
  }
  func.func @transform_2(%arg0: i32, %arg1: i32) -> (i32, i32) {
    %c0_i32 = arith.constant 0 : i32
    %c0_i32_0 = arith.constant 0 : i32
    %c0_i32_1 = arith.constant 0 : i32
    return %c0_i32, %c0_i32_0 : i32, i32
  }
  func.func @transform_3(%arg0: i32, %arg1: i32) -> (i32, i32) {
    %c0_i32 = arith.constant 0 : i32
    %c0_i32_0 = arith.constant 0 : i32
    %c0_i32_1 = arith.constant 0 : i32
    return %c0_i32, %c0_i32_0 : i32, i32
  }
  func.func @transform_4(%arg0: i32, %arg1: i32) -> (i32, i32) {
    %c0_i32 = arith.constant 0 : i32
    %c0_i32_0 = arith.constant 0 : i32
    %c0_i32_1 = arith.constant 0 : i32
    return %c0_i32, %c0_i32_0 : i32, i32
  }
  func.func @transform_5(%arg0: i32, %arg1: i32) -> (i32, i32) {
    %c0_i32 = arith.constant 0 : i32
    %c0_i32_0 = arith.constant 0 : i32
    %c0_i32_1 = arith.constant 0 : i32
    return %c0_i32, %c0_i32_0 : i32, i32
  }
  func.func @transform_6(%arg0: i32, %arg1: i32) -> (i32, i32) {
    %c0_i32 = arith.constant 0 : i32
    %c0_i32_0 = arith.constant 0 : i32
    %c0_i32_1 = arith.constant 0 : i32
    return %c0_i32, %c0_i32_0 : i32, i32
  }
  func.func @transform_7(%arg0: i32, %arg1: i32) -> (i32, i32) {
    %c0_i32 = arith.constant 0 : i32
    %c0_i32_0 = arith.constant 0 : i32
    %c0_i32_1 = arith.constant 0 : i32
    return %c0_i32, %c0_i32_0 : i32, i32
  }
  func.func @transform_8(%arg0: i32, %arg1: i32) -> (i32, i32) {
    %c0_i32 = arith.constant 0 : i32
    %c0_i32_0 = arith.constant 0 : i32
    %c0_i32_1 = arith.constant 0 : i32
    return %c0_i32, %c0_i32_0 : i32, i32
  }
  func.func @transform_9(%arg0: i32, %arg1: i32) -> (i32, i32) {
    %c0_i32 = arith.constant 0 : i32
    %c0_i32_0 = arith.constant 0 : i32
    %c0_i32_1 = arith.constant 0 : i32
    return %c0_i32, %c0_i32_0 : i32, i32
  }
  func.func @transform_10(%arg0: i32, %arg1: i32) -> (i32, i32) {
    %c0_i32 = arith.constant 0 : i32
    %c0_i32_0 = arith.constant 0 : i32
    %c0_i32_1 = arith.constant 0 : i32
    return %c0_i32, %c0_i32_0 : i32, i32
  }
  func.func @transform_11(%arg0: i32, %arg1: i32) -> (i32, i32) {
    %c0_i32 = arith.constant 0 : i32
    %c0_i32_0 = arith.constant 0 : i32
    %c0_i32_1 = arith.constant 0 : i32
    return %c0_i32, %c0_i32_0 : i32, i32
  }
  func.func @transform_12(%arg0: i32, %arg1: i32) -> (i32, i32) {
    %c0_i32 = arith.constant 0 : i32
    %c0_i32_0 = arith.constant 0 : i32
    %c0_i32_1 = arith.constant 0 : i32
    return %c0_i32, %c0_i32_0 : i32, i32
  }
  func.func @transform_13(%arg0: i32, %arg1: i32) -> (i32, i32) {
    %c0_i32 = arith.constant 0 : i32
    %c0_i32_0 = arith.constant 0 : i32
    %c0_i32_1 = arith.constant 0 : i32
    return %c0_i32, %c0_i32_0 : i32, i32
  }
  func.func @transform_14(%arg0: i32, %arg1: i32) -> (i32, i32) {
    %c0_i32 = arith.constant 0 : i32
    %c0_i32_0 = arith.constant 0 : i32
    %c0_i32_1 = arith.constant 0 : i32
    return %c0_i32, %c0_i32_0 : i32, i32
  }
  func.func @transform_15(%arg0: i32, %arg1: i32) -> (i32, i32) {
    %c0_i32 = arith.constant 0 : i32
    %c0_i32_0 = arith.constant 0 : i32
    %c0_i32_1 = arith.constant 0 : i32
    return %c0_i32, %c0_i32_0 : i32, i32
  }
  func.func @transform_16(%arg0: i32, %arg1: i32) -> (i32, i32, i32) {
    %c0_i32 = arith.constant 0 : i32
    %c0_i32_0 = arith.constant 0 : i32
    return %arg0, %arg1, %c0_i32 : i32, i32, i32
  }
}

</mosaic_0001>

<llo_original>
// kernel: tpu_custom_call.1
$region0: #{tpu_custom_call.1}
  #allocation0 [shape = 'u32[]', space=smem, size = 0x4, offset = 0x4, fixed_abs, tag = 'smem constant byte address 0x4 - core index']
  #allocation1 [shape = 'u32[144,128]{1,0:T(1,128)}', space=vmem, size = 0x12000, scoped, tag = 'internal scratch']
  #allocation2 [shape = 'bf16[4,32,16]{2,1,0:T(16,128)(2,1)}', space=vmem, size = 0x8000, scoped, tag = 'scratch operand']
  #allocation3 [shape = 'bf16[4,32,16]{2,1,0:T(16,128)(2,1)}', space=vmem, size = 0x8000, scoped, tag = 'scratch operand']
  #allocation4 [shape = 'bf16[4,32,16]{2,1,0:T(16,128)(2,1)}', space=vmem, size = 0x8000, scoped, tag = 'scratch operand']
  #allocation5 [shape = 'bf16[16,64]{1,0:T(16,128)(2,1)}', space=vmem, size = 0x1000, scoped, tag = 'scratch operand']
  %s0 = inlined_call_operand.vmem [shape: f32[2,32,64], index: 0, kind: input, shape index: {}]
  %s1 = inlined_call_operand.vmem [shape: f32[32,16], index: 1, kind: input, shape index: {}]
  %s2 = inlined_call_operand.vmem [shape: f32[32,16], index: 2, kind: input, shape index: {}]
  %s3 = inlined_call_operand.vmem [shape: f32[1,64], index: 3, kind: input, shape index: {}]
  %s4 = inlined_call_operand.vmem [shape: f32[1,64], index: 4, kind: input, shape index: {}]
  %s5 = inlined_call_operand.vmem [shape: bf16[64,64], index: 5, kind: input, shape index: {}]
  %s6 = inlined_call_operand.vmem [shape: bf16[64,64], index: 6, kind: input, shape index: {}]
  %s7 = inlined_call_operand.vmem [shape: bf16[64,64], index: 7, kind: input, shape index: {}]
  %s8 = inlined_call_operand.hbm [shape: bf16[64,64], index: 8, kind: input, shape index: {}]
  %s9 = inlined_call_operand.vmem [shape: f32[1,64], index: 9, kind: input, shape index: {}]
  %s10 = inlined_call_operand.vmem [shape: f32[1,64], index: 10, kind: input, shape index: {}]
  %s11 = inlined_call_operand.vmem [shape: f32[1,64], index: 11, kind: input, shape index: {}]
  %s12 = inlined_call_operand.vmem [shape: bf16[64,256], index: 12, kind: input, shape index: {}]
  %s13 = inlined_call_operand.vmem [shape: f32[1,256], index: 13, kind: input, shape index: {}]
  %s14 = inlined_call_operand.vmem [shape: bf16[256,64], index: 14, kind: input, shape index: {}]
  %s15 = inlined_call_operand.vmem [shape: f32[1,64], index: 15, kind: input, shape index: {}]
  %s16 = inlined_call_operand.hbm [shape: f32[2,32,64], index: 16, kind: output, shape index: {}]
  %s17 = sld [smem:[#allocation0]]
  $region105: #{tpu_custom_call.1} parent=0
    _
  %s19 = ssub.s32 1, %s17
  %s20 = scalar_select 0, %s19, %s17
  $region1: #{tpu_custom_call.1} parent=0
    #allocation6 [shape = 'u8[16384]{0}', space=vmem, size = 0x4000, scoped, tag = 'input window, operand 8, single buffered']
    #allocation7 [shape = 's32[2]{0}', space=sflag, size = 0x8, scoped, tag = 'scoped memory for tpu_custom_call.1']
    #allocation8 [shape = 's32[2]{0}', space=sflag, size = 0x8, scoped, tag = 'scoped memory for tpu_custom_call.1']
    #allocation9 [shape = 'u8[16384]{0}', space=vmem, size = 0x4000, scoped, tag = 'output window, operand 0']
    %21 = vsyncpa [#allocation7], 0
    %22 = vsyncpa [#allocation8], 0
    %s23 = scalar_lea.sflag [#allocation8], 1
    %24 = vsyncpa %s23, 0
    loop: start=0, step=1, limit=6
    $region2: #{tpu_custom_call.1} parent=1 // loop_pre_header
      _
    $region3: #{tpu_custom_call.1} parent=1 // loop_header
      %s26 = sphi 0, %s30
      %p27 = scmp.ge.s32.totalorder %s26, 6
      %s33 = sphi 0, %s45
      %s34 = sphi 0, %s41
      %s35 = sphi 0, %s33
      %s36 = sphi 0, %s34
      %s37 = sphi 0, %s35
      %s38 = sphi 0, %s36
      %s48 = sphi 0, %s50
      %s51 = sphi 0, %s48
      %s52 = sphi 0, %s51
      %s68 = sphi 0, %s52
      %s72 = sphi 0, %s72
      %s74 = sphi 0, %s72
      %s75 = sphi 0, %s74
      %s89 = sphi 0, %s75
      %s93 = sphi 0, %s93
      %s95 = sphi 0, %s93
      %s96 = sphi 0, %s95
      %s110 = sphi 0, %s96
      %s114 = sphi 0, %s114
      %s116 = sphi 0, %s114
      %s117 = sphi 0, %s116
      %s131 = sphi 0, %s117
      %s135 = sphi 0, %s135
      %s137 = sphi 0, %s135
      %s138 = sphi 0, %s137
      %s152 = sphi 0, %s138
      %s156 = sphi 0, %s156
      %s158 = sphi 0, %s156
      %s159 = sphi 0, %s158
      %s173 = sphi 0, %s159
      %s177 = sphi 0, %s177
      %s179 = sphi 0, %s177
      %s180 = sphi 0, %s179
      %s194 = sphi 0, %s180
      %s198 = sphi 0, %s198
      %s200 = sphi 0, %s198
      %s201 = sphi 0, %s200
      %s215 = sphi 0, %s201
      %s219 = sphi 0, %s219
      %s221 = sphi 0, %s219
      %s222 = sphi 0, %s221
      %s236 = sphi 0, %s222
      %s240 = sphi 0, %s240
      %s242 = sphi 0, %s240
      %s243 = sphi 0, %s242
      %s257 = sphi 0, %s243
      %s261 = sphi 0, %s261
      %s263 = sphi 0, %s261
      %s264 = sphi 0, %s263
      %s278 = sphi 0, %s264
      %s282 = sphi 0, %s282
      %s284 = sphi 0, %s282
      %s285 = sphi 0, %s284
      %s299 = sphi 0, %s285
      %s303 = sphi 0, %s303
      %s305 = sphi 0, %s303
      %s306 = sphi 0, %s305
      %s320 = sphi 0, %s306
      %s324 = sphi 0, %s324
      %s326 = sphi 0, %s324
      %s327 = sphi 0, %s326
      %s341 = sphi 0, %s327
      %s345 = sphi 0, %s345
      %s347 = sphi 0, %s345
      %s348 = sphi 0, %s347
      %s362 = sphi 0, %s348
      %s366 = sphi 0, %s366
      %s368 = sphi 0, %s366
      %s369 = sphi 0, %s368
      %s383 = sphi 0, %s369
      %s391 = sphi 0, %s393
      %s394 = sphi 0, %s391
      %s395 = sphi 0, %s394
      %s411 = sphi 0, %s395
    $region4: #{tpu_custom_call.1} parent=1 // loop_header_branch
      %29 = sbr.rel (%p27) target = $region8
    $region5: #{tpu_custom_call.1} parent=1 // loop_body
      %s31 = ssub.s32 %s26, 1
      %s32 = ssub.s32 %s26, 2
      %s39 = sadd.s32 1, %s34
      %p40 = scmp.ge.s32.totalorder %s39, 2
      %s41 = scalar_select %p40, 0, %s39
      %s42 = sadd.s32 1, %s33
      %s43 = scalar_select %p40, %s42, %s33
      %p44 = scmp.ge.s32.totalorder %s43, 2
      %s45 = scalar_select %p44, 0, %s43
      %s46 = ssub.s32 %s33, %s45
      %p47 = scmp.eq.s32.totalorder %s46, 0
      %s49 = sadd.s32 %s48, 1
      %s50 = scalar_select %p47, %s48, %s49
      %p53 = pneg %p47
      %p54 = scmp.eq.s32.totalorder %s26, 3
      %p55 = por %p53, %p54
      %p56 = scmp.ne.s32.totalorder %s48, %s51
      %p57 = scmp.eq.s32.totalorder %s26, 0
      %p58 = por %p56, %p57
      %p59 = scmp.ne.s32.totalorder %s48, %s51
      %p60 = scmp.eq.s32.totalorder %s31, 3
      %p61 = por %p59, %p60
      %p62 = scmp.ne.s32.totalorder %s51, %s52
      %p63 = scmp.eq.s32.totalorder %s31, 0
      %p64 = por %p62, %p63
      %p65 = scmp.ne.s32.totalorder %s51, %s52
      %p66 = scmp.eq.s32.totalorder %s32, 3
      %p67 = por %p65, %p66
      %p69 = scmp.ne.s32.totalorder %s52, %s68
      %p70 = scmp.eq.s32.totalorder %s32, 0
      %p71 = por %p69, %p70
      %s73 = sadd.s32 %s72, 1
      %p76 = scmp.eq.s32.totalorder %s26, 3
      %p77 = scmp.ne.s32.totalorder %s72, %s74
      %p78 = scmp.eq.s32.totalorder %s26, 0
      %p79 = por %p77, %p78
      %p80 = scmp.ne.s32.totalorder %s72, %s74
      %p81 = scmp.eq.s32.totalorder %s31, 3
      %p82 = por %p80, %p81
      %p83 = scmp.ne.s32.totalorder %s74, %s75
      %p84 = scmp.eq.s32.totalorder %s31, 0
      %p85 = por %p83, %p84
      %p86 = scmp.ne.s32.totalorder %s74, %s75
      %p87 = scmp.eq.s32.totalorder %s32, 3
      %p88 = por %p86, %p87
      %p90 = scmp.ne.s32.totalorder %s75, %s89
      %p91 = scmp.eq.s32.totalorder %s32, 0
      %p92 = por %p90, %p91
      %s94 = sadd.s32 %s93, 1
      %p97 = scmp.eq.s32.totalorder %s26, 3
      %p98 = scmp.ne.s32.totalorder %s93, %s95
      %p99 = scmp.eq.s32.totalorder %s26, 0
      %p100 = por %p98, %p99
      %p101 = scmp.ne.s32.totalorder %s93, %s95
      %p102 = scmp.eq.s32.totalorder %s31, 3
      %p103 = por %p101, %p102
      %p104 = scmp.ne.s32.totalorder %s95, %s96
      %p105 = scmp.eq.s32.totalorder %s31, 0
      %p106 = por %p104, %p105
      %p107 = scmp.ne.s32.totalorder %s95, %s96
      %p108 = scmp.eq.s32.totalorder %s32, 3
      %p109 = por %p107, %p108
      %p111 = scmp.ne.s32.totalorder %s96, %s110
      %p112 = scmp.eq.s32.totalorder %s32, 0
      %p113 = por %p111, %p112
      %s115 = sadd.s32 %s114, 1
      %p118 = scmp.eq.s32.totalorder %s26, 3
      %p119 = scmp.ne.s32.totalorder %s114, %s116
      %p120 = scmp.eq.s32.totalorder %s26, 0
      %p121 = por %p119, %p120
      %p122 = scmp.ne.s32.totalorder %s114, %s116
      %p123 = scmp.eq.s32.totalorder %s31, 3
      %p124 = por %p122, %p123
      %p125 = scmp.ne.s32.totalorder %s116, %s117
      %p126 = scmp.eq.s32.totalorder %s31, 0
      %p127 = por %p125, %p126
      %p128 = scmp.ne.s32.totalorder %s116, %s117
      %p129 = scmp.eq.s32.totalorder %s32, 3
      %p130 = por %p128, %p129
      %p132 = scmp.ne.s32.totalorder %s117, %s131
      %p133 = scmp.eq.s32.totalorder %s32, 0
      %p134 = por %p132, %p133
      %s136 = sadd.s32 %s135, 1
      %p139 = scmp.eq.s32.totalorder %s26, 3
      %p140 = scmp.ne.s32.totalorder %s135, %s137
      %p141 = scmp.eq.s32.totalorder %s26, 0
      %p142 = por %p140, %p141
      %p143 = scmp.ne.s32.totalorder %s135, %s137
      %p144 = scmp.eq.s32.totalorder %s31, 3
      %p145 = por %p143, %p144
      %p146 = scmp.ne.s32.totalorder %s137, %s138
      %p147 = scmp.eq.s32.totalorder %s31, 0
      %p148 = por %p146, %p147
      %p149 = scmp.ne.s32.totalorder %s137, %s138
      %p150 = scmp.eq.s32.totalorder %s32, 3
      %p151 = por %p149, %p150
      %p153 = scmp.ne.s32.totalorder %s138, %s152
      %p154 = scmp.eq.s32.totalorder %s32, 0
      %p155 = por %p153, %p154
      %s157 = sadd.s32 %s156, 1
      %p160 = scmp.eq.s32.totalorder %s26, 3
      %p161 = scmp.ne.s32.totalorder %s156, %s158
      %p162 = scmp.eq.s32.totalorder %s26, 0
      %p163 = por %p161, %p162
      %p164 = scmp.ne.s32.totalorder %s156, %s158
      %p165 = scmp.eq.s32.totalorder %s31, 3
      %p166 = por %p164, %p165
      %p167 = scmp.ne.s32.totalorder %s158, %s159
      %p168 = scmp.eq.s32.totalorder %s31, 0
      %p169 = por %p167, %p168
      %p170 = scmp.ne.s32.totalorder %s158, %s159
      %p171 = scmp.eq.s32.totalorder %s32, 3
      %p172 = por %p170, %p171
      %p174 = scmp.ne.s32.totalorder %s159, %s173
      %p175 = scmp.eq.s32.totalorder %s32, 0
      %p176 = por %p174, %p175
      %s178 = sadd.s32 %s177, 1
      %p181 = scmp.eq.s32.totalorder %s26, 3
      %p182 = scmp.ne.s32.totalorder %s177, %s179
      %p183 = scmp.eq.s32.totalorder %s26, 0
      %p184 = por %p182, %p183
      %p185 = scmp.ne.s32.totalorder %s177, %s179
      %p186 = scmp.eq.s32.totalorder %s31, 3
      %p187 = por %p185, %p186
      %p188 = scmp.ne.s32.totalorder %s179, %s180
      %p189 = scmp.eq.s32.totalorder %s31, 0
      %p190 = por %p188, %p189
      %p191 = scmp.ne.s32.totalorder %s179, %s180
      %p192 = scmp.eq.s32.totalorder %s32, 3
      %p193 = por %p191, %p192
      %p195 = scmp.ne.s32.totalorder %s180, %s194
      %p196 = scmp.eq.s32.totalorder %s32, 0
      %p197 = por %p195, %p196
      %s199 = sadd.s32 %s198, 1
      %p202 = scmp.eq.s32.totalorder %s26, 3
      %p203 = scmp.ne.s32.totalorder %s198, %s200
      %p204 = scmp.eq.s32.totalorder %s26, 0
      %p205 = por %p203, %p204
      %p206 = scmp.ne.s32.totalorder %s198, %s200
      %p207 = scmp.eq.s32.totalorder %s31, 3
      %p208 = por %p206, %p207
      %p209 = scmp.ne.s32.totalorder %s200, %s201
      %p210 = scmp.eq.s32.totalorder %s31, 0
      %p211 = por %p209, %p210
      %p212 = scmp.ne.s32.totalorder %s200, %s201
      %p213 = scmp.eq.s32.totalorder %s32, 3
      %p214 = por %p212, %p213
      %p216 = scmp.ne.s32.totalorder %s201, %s215
      %p217 = scmp.eq.s32.totalorder %s32, 0
      %p218 = por %p216, %p217
      %s220 = sadd.s32 %s219, 1
      %p223 = scmp.eq.s32.totalorder %s26, 3
      %p224 = scmp.ne.s32.totalorder %s219, %s221
      %p225 = scmp.eq.s32.totalorder %s26, 0
      %p226 = por %p224, %p225
      %p227 = scmp.ne.s32.totalorder %s219, %s221
      %p228 = scmp.eq.s32.totalorder %s31, 3
      %p229 = por %p227, %p228
      %p230 = scmp.ne.s32.totalorder %s221, %s222
      %p231 = scmp.eq.s32.totalorder %s31, 0
      %p232 = por %p230, %p231
      %p233 = scmp.ne.s32.totalorder %s221, %s222
      %p234 = scmp.eq.s32.totalorder %s32, 3
      %p235 = por %p233, %p234
      %p237 = scmp.ne.s32.totalorder %s222, %s236
      %p238 = scmp.eq.s32.totalorder %s32, 0
      %p239 = por %p237, %p238
      %s241 = sadd.s32 %s240, 1
      %p244 = scmp.eq.s32.totalorder %s26, 3
      %p245 = scmp.ne.s32.totalorder %s240, %s242
      %p246 = scmp.eq.s32.totalorder %s26, 0
      %p247 = por %p245, %p246
      %p248 = scmp.ne.s32.totalorder %s240, %s242
      %p249 = scmp.eq.s32.totalorder %s31, 3
      %p250 = por %p248, %p249
      %p251 = scmp.ne.s32.totalorder %s242, %s243
      %p252 = scmp.eq.s32.totalorder %s31, 0
      %p253 = por %p251, %p252
      %p254 = scmp.ne.s32.totalorder %s242, %s243
      %p255 = scmp.eq.s32.totalorder %s32, 3
      %p256 = por %p254, %p255
      %p258 = scmp.ne.s32.totalorder %s243, %s257
      %p259 = scmp.eq.s32.totalorder %s32, 0
      %p260 = por %p258, %p259
      %s262 = sadd.s32 %s261, 1
      %p265 = scmp.eq.s32.totalorder %s26, 3
      %p266 = scmp.ne.s32.totalorder %s261, %s263
      %p267 = scmp.eq.s32.totalorder %s26, 0
      %p268 = por %p266, %p267
      %p269 = scmp.ne.s32.totalorder %s261, %s263
      %p270 = scmp.eq.s32.totalorder %s31, 3
      %p271 = por %p269, %p270
      %p272 = scmp.ne.s32.totalorder %s263, %s264
      %p273 = scmp.eq.s32.totalorder %s31, 0
      %p274 = por %p272, %p273
      %p275 = scmp.ne.s32.totalorder %s263, %s264
      %p276 = scmp.eq.s32.totalorder %s32, 3
      %p277 = por %p275, %p276
      %p279 = scmp.ne.s32.totalorder %s264, %s278
      %p280 = scmp.eq.s32.totalorder %s32, 0
      %p281 = por %p279, %p280
      %s283 = sadd.s32 %s282, 1
      %p286 = scmp.eq.s32.totalorder %s26, 3
      %p287 = scmp.ne.s32.totalorder %s282, %s284
      %p288 = scmp.eq.s32.totalorder %s26, 0
      %p289 = por %p287, %p288
      %p290 = scmp.ne.s32.totalorder %s282, %s284
      %p291 = scmp.eq.s32.totalorder %s31, 3
      %p292 = por %p290, %p291
      %p293 = scmp.ne.s32.totalorder %s284, %s285
      %p294 = scmp.eq.s32.totalorder %s31, 0
      %p295 = por %p293, %p294
      %p296 = scmp.ne.s32.totalorder %s284, %s285
      %p297 = scmp.eq.s32.totalorder %s32, 3
      %p298 = por %p296, %p297
      %p300 = scmp.ne.s32.totalorder %s285, %s299
      %p301 = scmp.eq.s32.totalorder %s32, 0
      %p302 = por %p300, %p301
      %s304 = sadd.s32 %s303, 1
      %p307 = scmp.eq.s32.totalorder %s26, 3
      %p308 = scmp.ne.s32.totalorder %s303, %s305
      %p309 = scmp.eq.s32.totalorder %s26, 0
      %p310 = por %p308, %p309
      %p311 = scmp.ne.s32.totalorder %s303, %s305
      %p312 = scmp.eq.s32.totalorder %s31, 3
      %p313 = por %p311, %p312
      %p314 = scmp.ne.s32.totalorder %s305, %s306
      %p315 = scmp.eq.s32.totalorder %s31, 0
      %p316 = por %p314, %p315
      %p317 = scmp.ne.s32.totalorder %s305, %s306
      %p318 = scmp.eq.s32.totalorder %s32, 3
      %p319 = por %p317, %p318
      %p321 = scmp.ne.s32.totalorder %s306, %s320
      %p322 = scmp.eq.s32.totalorder %s32, 0
      %p323 = por %p321, %p322
      %s325 = sadd.s32 %s324, 1
      %p328 = scmp.eq.s32.totalorder %s26, 3
      %p329 = scmp.ne.s32.totalorder %s324, %s326
      %p330 = scmp.eq.s32.totalorder %s26, 0
      %p331 = por %p329, %p330
      %p332 = scmp.ne.s32.totalorder %s324, %s326
      %p333 = scmp.eq.s32.totalorder %s31, 3
      %p334 = por %p332, %p333
      %p335 = scmp.ne.s32.totalorder %s326, %s327
      %p336 = scmp.eq.s32.totalorder %s31, 0
      %p337 = por %p335, %p336
      %p338 = scmp.ne.s32.totalorder %s326, %s327
      %p339 = scmp.eq.s32.totalorder %s32, 3
      %p340 = por %p338, %p339
      %p342 = scmp.ne.s32.totalorder %s327, %s341
      %p343 = scmp.eq.s32.totalorder %s32, 0
      %p344 = por %p342, %p343
      %s346 = sadd.s32 %s345, 1
      %p349 = scmp.eq.s32.totalorder %s26, 3
      %p350 = scmp.ne.s32.totalorder %s345, %s347
      %p351 = scmp.eq.s32.totalorder %s26, 0
      %p352 = por %p350, %p351
      %p353 = scmp.ne.s32.totalorder %s345, %s347
      %p354 = scmp.eq.s32.totalorder %s31, 3
      %p355 = por %p353, %p354
      %p356 = scmp.ne.s32.totalorder %s347, %s348
      %p357 = scmp.eq.s32.totalorder %s31, 0
      %p358 = por %p356, %p357
      %p359 = scmp.ne.s32.totalorder %s347, %s348
      %p360 = scmp.eq.s32.totalorder %s32, 3
      %p361 = por %p359, %p360
      %p363 = scmp.ne.s32.totalorder %s348, %s362
      %p364 = scmp.eq.s32.totalorder %s32, 0
      %p365 = por %p363, %p364
      %s367 = sadd.s32 %s366, 1
      %p370 = scmp.eq.s32.totalorder %s26, 3
      %p371 = scmp.ne.s32.totalorder %s366, %s368
      %p372 = scmp.eq.s32.totalorder %s26, 0
      %p373 = por %p371, %p372
      %p374 = scmp.ne.s32.totalorder %s366, %s368
      %p375 = scmp.eq.s32.totalorder %s31, 3
      %p376 = por %p374, %p375
      %p377 = scmp.ne.s32.totalorder %s368, %s369
      %p378 = scmp.eq.s32.totalorder %s31, 0
      %p379 = por %p377, %p378
      %p380 = scmp.ne.s32.totalorder %s368, %s369
      %p381 = scmp.eq.s32.totalorder %s32, 3
      %p382 = por %p380, %p381
      %p384 = scmp.ne.s32.totalorder %s369, %s383
      %p385 = scmp.eq.s32.totalorder %s32, 0
      %p386 = por %p384, %p385
      %s387 = ssub.s32 %s33, %s45
      %s388 = ssub.s32 %s34, %s41
      %s389 = sor.u32 %s387, %s388
      %p390 = scmp.eq.s32.totalorder %s389, 0
      %s392 = sadd.s32 %s391, 1
      %s393 = scalar_select %p390, %s391, %s392
      %p396 = pneg %p390
      %p397 = scmp.eq.s32.totalorder %s26, 3
      %p398 = por %p396, %p397
      %p399 = scmp.ne.s32.totalorder %s391, %s394
      %p400 = scmp.eq.s32.totalorder %s26, 0
      %p401 = por %p399, %p400
      %p402 = scmp.ne.s32.totalorder %s391, %s394
      %p403 = scmp.eq.s32.totalorder %s31, 3
      %p404 = por %p402, %p403
      %p405 = scmp.ne.s32.totalorder %s394, %s395
      %p406 = scmp.eq.s32.totalorder %s31, 0
      %p407 = por %p405, %p406
      %p408 = scmp.ne.s32.totalorder %s394, %s395
      %p409 = scmp.eq.s32.totalorder %s32, 3
      %p410 = por %p408, %p409
      %p412 = scmp.ne.s32.totalorder %s395, %s411
      %p413 = scmp.eq.s32.totalorder %s32, 0
      %p414 = por %p412, %p413
      %p415 = scmp.le.s32.totalorder 1, %s26
      %p416 = scmp.lt.s32.totalorder %s26, 5
      %p417 = pnand %p415, %p416
      %p418 = pneg %p417
      // Predicated region
      $region9: #{tpu_custom_call.1} parent=5 // pred_check
        _
      $region10: #{tpu_custom_call.1} parent=5 // pred_check_branch
        %420 = sbr.rel (%p417) target = $region12
      $region11: #{tpu_custom_call.1} parent=5 // pred_region
        %s421 = ssub.s32 %s26, 1
        // Predicated region
        $region13: #{tpu_custom_call.1} parent=11 // pred_check
          %p422 = pneg %p85
        $region14: #{tpu_custom_call.1} parent=11 // pred_check_branch
          %424 = sbr.rel (%p422) target = $region16
        $region15: #{tpu_custom_call.1} parent=11 // pred_region
          _
        $region16: #{tpu_custom_call.1} parent=11 // pred_fallthru
          _
        // Predicated region
        $region17: #{tpu_custom_call.1} parent=11 // pred_check
          %p425 = pneg %p106
        $region18: #{tpu_custom_call.1} parent=11 // pred_check_branch
          %427 = sbr.rel (%p425) target = $region20
        $region19: #{tpu_custom_call.1} parent=11 // pred_region
          _
        $region20: #{tpu_custom_call.1} parent=11 // pred_fallthru
          _
        // Predicated region
        $region21: #{tpu_custom_call.1} parent=11 // pred_check
          %p428 = pneg %p127
        $region22: #{tpu_custom_call.1} parent=11 // pred_check_branch
          %430 = sbr.rel (%p428) target = $region24
        $region23: #{tpu_custom_call.1} parent=11 // pred_region
          _
        $region24: #{tpu_custom_call.1} parent=11 // pred_fallthru
          _
        // Predicated region
        $region25: #{tpu_custom_call.1} parent=11 // pred_check
          %p431 = pneg %p148
        $region26: #{tpu_custom_call.1} parent=11 // pred_check_branch
          %433 = sbr.rel (%p431) target = $region28
        $region27: #{tpu_custom_call.1} parent=11 // pred_region
          _
        $region28: #{tpu_custom_call.1} parent=11 // pred_fallthru
          _
        // Predicated region
        $region29: #{tpu_custom_call.1} parent=11 // pred_check
          %p434 = pneg %p169
        $region30: #{tpu_custom_call.1} parent=11 // pred_check_branch
          %436 = sbr.rel (%p434) target = $region32
        $region31: #{tpu_custom_call.1} parent=11 // pred_region
          _
        $region32: #{tpu_custom_call.1} parent=11 // pred_fallthru
          _
        // Predicated region
        $region33: #{tpu_custom_call.1} parent=11 // pred_check
          %p437 = pneg %p190
        $region34: #{tpu_custom_call.1} parent=11 // pred_check_branch
          %439 = sbr.rel (%p437) target = $region36
        $region35: #{tpu_custom_call.1} parent=11 // pred_region
          _
        $region36: #{tpu_custom_call.1} parent=11 // pred_fallthru
          _
        // Predicated region
        $region37: #{tpu_custom_call.1} parent=11 // pred_check
          %p440 = pneg %p211
        $region38: #{tpu_custom_call.1} parent=11 // pred_check_branch
          %442 = sbr.rel (%p440) target = $region40
        $region39: #{tpu_custom_call.1} parent=11 // pred_region
          _
        $region40: #{tpu_custom_call.1} parent=11 // pred_fallthru
          _
        // Predicated region
        $region41: #{tpu_custom_call.1} parent=11 // pred_check
          %p443 = pneg %p232
        $region42: #{tpu_custom_call.1} parent=11 // pred_check_branch
          %445 = sbr.rel (%p443) target = $region44
        $region43: #{tpu_custom_call.1} parent=11 // pred_region
          %s447 = ssub.s32 512, 512
          %448 = vsyncadd [#allocation7], %s447
          %s449 = sshll.u32 [#allocation6], 4
          %s450 = int_to_ptr.vmem [resolvable:$true] %s449
          %455 = dma.hbm_to_vmem [thread:$0]  %s8, 512, %s450, [#allocation7], 64, 64, 4
        $region44: #{tpu_custom_call.1} parent=11 // pred_fallthru
          _
        // Predicated region
        $region45: #{tpu_custom_call.1} parent=11 // pred_check
          %p456 = pneg %p253
        $region46: #{tpu_custom_call.1} parent=11 // pred_check_branch
          %458 = sbr.rel (%p456) target = $region48
        $region47: #{tpu_custom_call.1} parent=11 // pred_region
          _
        $region48: #{tpu_custom_call.1} parent=11 // pred_fallthru
          _
        // Predicated region
        $region49: #{tpu_custom_call.1} parent=11 // pred_check
          %p459 = pneg %p274
        $region50: #{tpu_custom_call.1} parent=11 // pred_check_branch
          %461 = sbr.rel (%p459) target = $region52
        $region51: #{tpu_custom_call.1} parent=11 // pred_region
          _
        $region52: #{tpu_custom_call.1} parent=11 // pred_fallthru
          _
        // Predicated region
        $region53: #{tpu_custom_call.1} parent=11 // pred_check
          %p462 = pneg %p295
        $region54: #{tpu_custom_call.1} parent=11 // pred_check_branch
          %464 = sbr.rel (%p462) target = $region56
        $region55: #{tpu_custom_call.1} parent=11 // pred_region
          _
        $region56: #{tpu_custom_call.1} parent=11 // pred_fallthru
          _
        // Predicated region
        $region57: #{tpu_custom_call.1} parent=11 // pred_check
          %p465 = pneg %p316
        $region58: #{tpu_custom_call.1} parent=11 // pred_check_branch
          %467 = sbr.rel (%p465) target = $region60
        $region59: #{tpu_custom_call.1} parent=11 // pred_region
          _
        $region60: #{tpu_custom_call.1} parent=11 // pred_fallthru
          _
        // Predicated region
        $region61: #{tpu_custom_call.1} parent=11 // pred_check
          %p468 = pneg %p337
        $region62: #{tpu_custom_call.1} parent=11 // pred_check_branch
          %470 = sbr.rel (%p468) target = $region64
        $region63: #{tpu_custom_call.1} parent=11 // pred_region
          _
        $region64: #{tpu_custom_call.1} parent=11 // pred_fallthru
          _
        // Predicated region
        $region65: #{tpu_custom_call.1} parent=11 // pred_check
          %p471 = pneg %p358
        $region66: #{tpu_custom_call.1} parent=11 // pred_check_branch
          %473 = sbr.rel (%p471) target = $region68
        $region67: #{tpu_custom_call.1} parent=11 // pred_region
          _
        $region68: #{tpu_custom_call.1} parent=11 // pred_fallthru
          _
        // Predicated region
        $region69: #{tpu_custom_call.1} parent=11 // pred_check
          %p474 = pneg %p379
        $region70: #{tpu_custom_call.1} parent=11 // pred_check_branch
          %476 = sbr.rel (%p474) target = $region72
        $region71: #{tpu_custom_call.1} parent=11 // pred_region
          _
        $region72: #{tpu_custom_call.1} parent=11 // pred_fallthru
          _
      $region12: #{tpu_custom_call.1} parent=5 // pred_fallthru
        _
      %p477 = scmp.lt.s32.totalorder %s26, 4
      // Predicated region
      $region73: #{tpu_custom_call.1} parent=5 // pred_check
        %p478 = pneg %p477
      $region74: #{tpu_custom_call.1} parent=5 // pred_check_branch
        %480 = sbr.rel (%p478) target = $region76
      $region75: #{tpu_custom_call.1} parent=5 // pred_region
        // Predicated region
        $region77: #{tpu_custom_call.1} parent=75 // pred_check
          %p481 = pneg %p58
        $region78: #{tpu_custom_call.1} parent=75 // pred_check_branch
          %483 = sbr.rel (%p481) target = $region80
        $region79: #{tpu_custom_call.1} parent=75 // pred_region
          %p484 = scmp.lt.s32.totalorder %s33, 1
          %s485 = scalar_select %p484, %s33, 1
          %s486 = smul.addr %s485, 4
          %s487 = smul.addr %s486, 8
          %s488 = scalar_lea.vmem %s0, %s487
        $region80: #{tpu_custom_call.1} parent=75 // pred_fallthru
          _
      $region76: #{tpu_custom_call.1} parent=5 // pred_fallthru
        _
      %p489 = scmp.le.s32.totalorder 1, %s26
      %p490 = scmp.lt.s32.totalorder %s26, 5
      %p491 = pnand %p489, %p490
      %p492 = pneg %p491
      // Predicated region
      $region81: #{tpu_custom_call.1} parent=5 // pred_check
        _
      $region82: #{tpu_custom_call.1} parent=5 // pred_check_branch
        %494 = sbr.rel (%p491) target = $region84
      $region83: #{tpu_custom_call.1} parent=5 // pred_region
        %s495 = ssub.s32 %s26, 1
        // Predicated region
        $region85: #{tpu_custom_call.1} parent=83 // pred_check
          %p496 = pneg %p232
        $region86: #{tpu_custom_call.1} parent=83 // pred_check_branch
          %498 = sbr.rel (%p496) target = $region88
        $region87: #{tpu_custom_call.1} parent=83 // pred_region
          %499 = dma.done [#allocation7], 512
        $region88: #{tpu_custom_call.1} parent=83 // pred_fallthru
          _
        %p500 = scmp.lt.s32.totalorder %s35, 1
        %s501 = scalar_select %p500, %s35, 1
        %s502 = smul.addr %s501, 4
        %s503 = smul.addr %s502, 8
        %s504 = scalar_lea.vmem %s0, %s503
        %p505 = pneg %p64
        %p506 = pneg %p61
        %p507 = pneg %p85
        %p508 = pneg %p82
        %p509 = pneg %p106
        %p510 = pneg %p103
        %p511 = pneg %p127
        %p512 = pneg %p124
        %p513 = pneg %p148
        %p514 = pneg %p145
        %p515 = pneg %p169
        %p516 = pneg %p166
        %p517 = pneg %p190
        %p518 = pneg %p187
        %p519 = pneg %p211
        %p520 = pneg %p208
        %p521 = pneg %p232
        %p522 = pneg %p229
        %p523 = pneg %p253
        %p524 = pneg %p250
        %p525 = pneg %p274
        %p526 = pneg %p271
        %p527 = pneg %p295
        %p528 = pneg %p292
        %p529 = pneg %p316
        %p530 = pneg %p313
        %p531 = pneg %p337
        %p532 = pneg %p334
        %p533 = pneg %p358
        %p534 = pneg %p355
        %p535 = pneg %p379
        %p536 = pneg %p376
        %p537 = pneg %p407
        %p538 = pneg %p404
        %s539 = sand.u32 %s394, 1
        %s540 = scalar_lea.sflag [#allocation8], %s539
        %s541 = sand.u32 %s394, 1
        %s542 = smul.addr %s541, 16
        %s543 = scalar_lea.vmem [#allocation9], %s542
        %p544 = scmp.lt.s32.totalorder %s35, 1
        %s545 = scalar_select %p544, %s35, 1
        %s546 = smul.addr %s545, 4
        %s547 = smul.addr %s546, 8
        %s548 = scalar_lea.vmem %s0, %s547
        %s549 = smul.u32 2, %s36
        %p551 = scmp.eq.s32.totalorder %s36, 0
        // Predicated region
        $region89: #{tpu_custom_call.1} parent=83 // pred_check
          %p552 = pneg %p551
        $region90: #{tpu_custom_call.1} parent=83 // pred_check_branch
          %554 = sbr.rel (%p552) target = $region92
        $region91: #{tpu_custom_call.1} parent=83 // pred_region
          %v555 = vld [vmem:[%s548] sm:$0xff]
          %v556 = vld [vmem:[%s548 + $0x8] sm:$0xff]
          %v557 = vld [vmem:[%s548 + $0x10] sm:$0xff]
          %v558 = vld [vmem:[%s548 + $0x18] sm:$0xff]
          %v559 = vld [vmem:[%s3] sm:$0x1]
          %v560 = vld [vmem:[%s4] sm:$0x1]
          %vm561 = vcmask 523264
          %v562 = vsel %vm561, %v555, 0.0
          %563 = vadd.xlane.f32.xlu0 %v562
          %v564 = vpop.xlane.xlu0 %563
          %v565 = vsel %vm561, %v556, 0.0
          %566 = vadd.xlane.f32.xlu0 %v565
          %v567 = vpop.xlane.xlu0 %566
          %v568 = vsel %vm561, %v557, 0.0
          %569 = vadd.xlane.f32.xlu0 %v568
          %v570 = vpop.xlane.xlu0 %569
          %v571 = vsel %vm561, %v558, 0.0
          %572 = vadd.xlane.f32.xlu0 %v571
          %v573 = vpop.xlane.xlu0 %572
          %v574 = vrcp.pop 64.0
          %v575 = vmul.f32 %v564, %v574
          %v576 = vmul.f32 %v567, %v574
          %v577 = vmul.f32 %v570, %v574
          %v578 = vmul.f32 %v573, %v574
          %v579 = vsub.f32 %v555, %v575
          %v580 = vsub.f32 %v556, %v576
          %v581 = vsub.f32 %v557, %v577
          %v582 = vsub.f32 %v558, %v578
          %v583 = vmul.f32 %v579, %v579
          %v584 = vmul.f32 %v580, %v580
          %v585 = vmul.f32 %v581, %v581
          %v586 = vmul.f32 %v582, %v582
          %v587 = vsel %vm561, %v583, 0.0
          %588 = vadd.xlane.f32.xlu0 %v587
          %v589 = vpop.xlane.xlu0 %588
          %v590 = vsel %vm561, %v584, 0.0
          %591 = vadd.xlane.f32.xlu0 %v590
          %v592 = vpop.xlane.xlu0 %591
          %v593 = vsel %vm561, %v585, 0.0
          %594 = vadd.xlane.f32.xlu0 %v593
          %v595 = vpop.xlane.xlu0 %594
          %v596 = vsel %vm561, %v586, 0.0
          %597 = vadd.xlane.f32.xlu0 %v596
          %v598 = vpop.xlane.xlu0 %597
          %v599 = vmul.f32 %v589, %v574
          %v600 = vmul.f32 %v592, %v574
          %v601 = vmul.f32 %v595, %v574
          %v602 = vmul.f32 %v598, %v574
          %v603 = vadd.f32 %v599, 1e-06
          %v604 = vadd.f32 %v600, 1e-06
          %v605 = vadd.f32 %v601, 1e-06
          %v606 = vadd.f32 %v602, 1e-06
          %v607 = vrsqrt.pop %v603
          %v608 = vrsqrt.pop %v604
          %v609 = vrsqrt.pop %v605
          %v610 = vrsqrt.pop %v606
          %v611 = vmul.f32 %v579, %v607
          %v612 = vmul.f32 %v580, %v608
          %v613 = vmul.f32 %v581, %v609
          %v614 = vmul.f32 %v582, %v610
          %v616 = vlaneseq
          %v617 = vshrl.u32 %v616, 7
          %v618 = vsub.s32 0, %v617
          %v619 = vrot.slane %v559, %v618
          %v621 = vmul.f32 %v611, %v619
          %v622 = vmul.f32 %v612, %v619
          %v623 = vmul.f32 %v613, %v619
          %v624 = vmul.f32 %v614, %v619
          %v626 = vlaneseq
          %v627 = vshrl.u32 %v626, 7
          %v628 = vsub.s32 0, %v627
          %v629 = vrot.slane %v560, %v628
          %v631 = vadd.f32 %v621, %v629
          %v632 = vadd.f32 %v622, %v629
          %v633 = vadd.f32 %v623, %v629
          %v634 = vadd.f32 %v624, %v629
          %v635 = vpack.c.bf16 %v632, %v631
          %v636 = vpack.c.bf16 %v634, %v633
          %v637 = vld [vmem:[%s5] sm:$0xf]
          %v638 = vld [vmem:[%s5 + $0x4] sm:$0xf]
          %v639 = vld [vmem:[%s5 + $0x8] sm:$0xf]
          %v640 = vld [vmem:[%s5 + $0xc] sm:$0xf]
          %v641 = vld [vmem:[%s5 + $0x10] sm:$0xf]
          %v642 = vld [vmem:[%s5 + $0x14] sm:$0xf]
          %v643 = vld [vmem:[%s5 + $0x18] sm:$0xf]
          %v644 = vld [vmem:[%s5 + $0x1c] sm:$0xf]
          %v653 = vunpack.c.l.b16 %v637
          %v654 = vunpack.c.l.b16 %v638
          %v655 = vunpack.c.l.b16 %v639
          %v656 = vunpack.c.l.b16 %v640
          %v657 = vunpack.c.l.b16 %v641
          %v658 = vunpack.c.l.b16 %v642
          %v659 = vunpack.c.l.b16 %v643
          %v660 = vunpack.c.l.b16 %v644
          %v661 = vpack.c.b16 %v654, %v653
          %v662 = vpack.c.b16 %v656, %v655
          %v663 = vpack.c.b16 %v658, %v657
          %v664 = vpack.c.b16 %v660, %v659
          %v670 = vsel %vm561, %v635, 0
          %v673 = vsel %vm561, %v636, 0
          %675 = vmatprep.subr.bf16.mxu0 0
          %676 = vmatpush1.bf16.msra.mxu0 %v661
          %677 = vmatprep.subr.bf16.mxu0 0
          %678 = vmatpush1.bf16.msra.mxu0 %v662
          %679 = vmatprep.subr.bf16.mxu0 0
          %680 = vmatpush1.bf16.msra.mxu0 %v663
          %681 = vmatprep.subr.bf16.mxu0 0
          %682 = vmatpush1.bf16.msra.mxu0 %v664
          %683 = vmatprep.subr.bf16.mxu0 0
          %684 = vmatpush1.bf16.msra.mxu0 0
          %685 = vmatprep.subr.bf16.mxu0 0
          %686 = vmatpush1.bf16.msra.mxu0 0
          %687 = vmatprep.subr.bf16.mxu0 0
          %688 = vmatpush1.bf16.msra.mxu0 0
          %689 = vmatprep.subr.bf16.mxu0 0
          %690 = vmatpush1.bf16.msra.mxu0 0
          %691 = vmatprep.subr.bf16.mxu0 0
          %692 = vmatpush1.bf16.msra.mxu0 0
          %693 = vmatprep.subr.bf16.mxu0 0
          %694 = vmatpush1.bf16.msra.mxu0 0
          %695 = vmatprep.subr.bf16.mxu0 0
          %696 = vmatpush1.bf16.msra.mxu0 0
          %697 = vmatprep.subr.bf16.mxu0 0
          %698 = vmatpush1.bf16.msra.mxu0 0
          %699 = vmatprep.subr.bf16.mxu0 0
          %700 = vmatpush1.bf16.msra.mxu0 0
          %701 = vmatprep.subr.bf16.mxu0 0
          %702 = vmatpush1.bf16.msra.mxu0 0
          %703 = vmatprep.subr.bf16.mxu0 0
          %704 = vmatpush1.bf16.msra.mxu0 0
          %705 = vmatprep.subr.bf16.mxu0 0
          %706 = vmatpush1.bf16.msra.mxu0 0
          %707 = vmatprep.mubr.bf16.mxu0 0
          %708 = vmatmul.mubr.bf16.gmra.mrb[0].mxu0 %v670
          %v709 = vpop.f32.mrb[0].mxu0
          %v710 = vadd.f32 0.0, %v709
          %v711 = vpop.f32.mrb[0].mxu0
          %v712 = vpop.f32.mrb[0].mxu0
          %v713 = vadd.f32 0.0, %v712
          %v714 = vpop.f32.mrb[0].mxu0
          %715 = vmatprep.mubr.bf16.mxu0 0
          %716 = vmatmul.mubr.bf16.gmra.mrb[0].mxu0 %v673
          %v717 = vpop.f32.mrb[0].mxu0
          %v718 = vadd.f32 0.0, %v717
          %v719 = vpop.f32.mrb[0].mxu0
          %v720 = vpop.f32.mrb[0].mxu0
          %v721 = vadd.f32 0.0, %v720
          %v722 = vpop.f32.mrb[0].mxu0
          %723 = vdwg.mxu0
          %v724 = vld [vmem:[%s6] sm:$0xf]
          %v725 = vld [vmem:[%s6 + $0x4] sm:$0xf]
          %v726 = vld [vmem:[%s6 + $0x8] sm:$0xf]
          %v727 = vld [vmem:[%s6 + $0xc] sm:$0xf]
          %v728 = vld [vmem:[%s6 + $0x10] sm:$0xf]
          %v729 = vld [vmem:[%s6 + $0x14] sm:$0xf]
          %v730 = vld [vmem:[%s6 + $0x18] sm:$0xf]
          %v731 = vld [vmem:[%s6 + $0x1c] sm:$0xf]
          %v740 = vunpack.c.l.b16 %v724
          %v741 = vunpack.c.l.b16 %v725
          %v742 = vunpack.c.l.b16 %v726
          %v743 = vunpack.c.l.b16 %v727
          %v744 = vunpack.c.l.b16 %v728
          %v745 = vunpack.c.l.b16 %v729
          %v746 = vunpack.c.l.b16 %v730
          %v747 = vunpack.c.l.b16 %v731
          %v748 = vpack.c.b16 %v741, %v740
          %v749 = vpack.c.b16 %v743, %v742
          %v750 = vpack.c.b16 %v745, %v744
          %v751 = vpack.c.b16 %v747, %v746
          %756 = vmatprep.subr.bf16.mxu0 0
          %757 = vmatpush1.bf16.msra.mxu0 %v748
          %758 = vmatprep.subr.bf16.mxu0 0
          %759 = vmatpush1.bf16.msra.mxu0 %v749
          %760 = vmatprep.subr.bf16.mxu0 0
          %761 = vmatpush1.bf16.msra.mxu0 %v750
          %762 = vmatprep.subr.bf16.mxu0 0
          %763 = vmatpush1.bf16.msra.mxu0 %v751
          %764 = vmatprep.subr.bf16.mxu0 0
          %765 = vmatpush1.bf16.msra.mxu0 0
          %766 = vmatprep.subr.bf16.mxu0 0
          %767 = vmatpush1.bf16.msra.mxu0 0
          %768 = vmatprep.subr.bf16.mxu0 0
          %769 = vmatpush1.bf16.msra.mxu0 0
          %770 = vmatprep.subr.bf16.mxu0 0
          %771 = vmatpush1.bf16.msra.mxu0 0
          %772 = vmatprep.subr.bf16.mxu0 0
          %773 = vmatpush1.bf16.msra.mxu0 0
          %774 = vmatprep.subr.bf16.mxu0 0
          %775 = vmatpush1.bf16.msra.mxu0 0
          %776 = vmatprep.subr.bf16.mxu0 0
          %777 = vmatpush1.bf16.msra.mxu0 0
          %778 = vmatprep.subr.bf16.mxu0 0
          %779 = vmatpush1.bf16.msra.mxu0 0
          %780 = vmatprep.subr.bf16.mxu0 0
          %781 = vmatpush1.bf16.msra.mxu0 0
          %782 = vmatprep.subr.bf16.mxu0 0
          %783 = vmatpush1.bf16.msra.mxu0 0
          %784 = vmatprep.subr.bf16.mxu0 0
          %785 = vmatpush1.bf16.msra.mxu0 0
          %786 = vmatprep.subr.bf16.mxu0 0
          %787 = vmatpush1.bf16.msra.mxu0 0
          %788 = vmatprep.mubr.bf16.mxu0 0
          %789 = vmatmul.mubr.bf16.gmra.mrb[0].mxu0 %v670
          %v790 = vpop.f32.mrb[0].mxu0
          %v791 = vadd.f32 0.0, %v790
          %v792 = vpop.f32.mrb[0].mxu0
          %v793 = vpop.f32.mrb[0].mxu0
          %v794 = vadd.f32 0.0, %v793
          %v795 = vpop.f32.mrb[0].mxu0
          %796 = vmatprep.mubr.bf16.mxu0 0
          %797 = vmatmul.mubr.bf16.gmra.mrb[0].mxu0 %v673
          %v798 = vpop.f32.mrb[0].mxu0
          %v799 = vadd.f32 0.0, %v798
          %v800 = vpop.f32.mrb[0].mxu0
          %v801 = vpop.f32.mrb[0].mxu0
          %v802 = vadd.f32 0.0, %v801
          %v803 = vpop.f32.mrb[0].mxu0
          %804 = vdwg.mxu0
          %v805 = vld [vmem:[%s7] sm:$0xf]
          %v806 = vld [vmem:[%s7 + $0x4] sm:$0xf]
          %v807 = vld [vmem:[%s7 + $0x8] sm:$0xf]
          %v808 = vld [vmem:[%s7 + $0xc] sm:$0xf]
          %v809 = vld [vmem:[%s7 + $0x10] sm:$0xf]
          %v810 = vld [vmem:[%s7 + $0x14] sm:$0xf]
          %v811 = vld [vmem:[%s7 + $0x18] sm:$0xf]
          %v812 = vld [vmem:[%s7 + $0x1c] sm:$0xf]
          %v821 = vunpack.c.l.b16 %v805
          %v822 = vunpack.c.l.b16 %v806
          %v823 = vunpack.c.l.b16 %v807
          %v824 = vunpack.c.l.b16 %v808
          %v825 = vunpack.c.l.b16 %v809
          %v826 = vunpack.c.l.b16 %v810
          %v827 = vunpack.c.l.b16 %v811
          %v828 = vunpack.c.l.b16 %v812
          %v829 = vpack.c.b16 %v822, %v821
          %v830 = vpack.c.b16 %v824, %v823
          %v831 = vpack.c.b16 %v826, %v825
          %v832 = vpack.c.b16 %v828, %v827
          %837 = vmatprep.subr.bf16.mxu0 0
          %838 = vmatpush1.bf16.msra.mxu0 %v829
          %839 = vmatprep.subr.bf16.mxu0 0
          %840 = vmatpush1.bf16.msra.mxu0 %v830
          %841 = vmatprep.subr.bf16.mxu0 0
          %842 = vmatpush1.bf16.msra.mxu0 %v831
          %843 = vmatprep.subr.bf16.mxu0 0
          %844 = vmatpush1.bf16.msra.mxu0 %v832
          %845 = vmatprep.subr.bf16.mxu0 0
          %846 = vmatpush1.bf16.msra.mxu0 0
          %847 = vmatprep.subr.bf16.mxu0 0
          %848 = vmatpush1.bf16.msra.mxu0 0
          %849 = vmatprep.subr.bf16.mxu0 0
          %850 = vmatpush1.bf16.msra.mxu0 0
          %851 = vmatprep.subr.bf16.mxu0 0
          %852 = vmatpush1.bf16.msra.mxu0 0
          %853 = vmatprep.subr.bf16.mxu0 0
          %854 = vmatpush1.bf16.msra.mxu0 0
          %855 = vmatprep.subr.bf16.mxu0 0
          %856 = vmatpush1.bf16.msra.mxu0 0
          %857 = vmatprep.subr.bf16.mxu0 0
          %858 = vmatpush1.bf16.msra.mxu0 0
          %859 = vmatprep.subr.bf16.mxu0 0
          %860 = vmatpush1.bf16.msra.mxu0 0
          %861 = vmatprep.subr.bf16.mxu0 0
          %862 = vmatpush1.bf16.msra.mxu0 0
          %863 = vmatprep.subr.bf16.mxu0 0
          %864 = vmatpush1.bf16.msra.mxu0 0
          %865 = vmatprep.subr.bf16.mxu0 0
          %866 = vmatpush1.bf16.msra.mxu0 0
          %867 = vmatprep.subr.bf16.mxu0 0
          %868 = vmatpush1.bf16.msra.mxu0 0
          %869 = vmatprep.mubr.bf16.mxu0 0
          %870 = vmatmul.mubr.bf16.gmra.mrb[0].mxu0 %v670
          %v871 = vpop.f32.mrb[0].mxu0
          %v872 = vadd.f32 0.0, %v871
          %v873 = vpop.f32.mrb[0].mxu0
          %v874 = vpop.f32.mrb[0].mxu0
          %v875 = vadd.f32 0.0, %v874
          %v876 = vpop.f32.mrb[0].mxu0
          %877 = vmatprep.mubr.bf16.mxu0 0
          %878 = vmatmul.mubr.bf16.gmra.mrb[0].mxu0 %v673
          %v879 = vpop.f32.mrb[0].mxu0
          %v880 = vadd.f32 0.0, %v879
          %v881 = vpop.f32.mrb[0].mxu0
          %v882 = vpop.f32.mrb[0].mxu0
          %v883 = vadd.f32 0.0, %v882
          %v884 = vpop.f32.mrb[0].mxu0
          %885 = vdwg.mxu0
          %v886 = vld [vmem:[%s1] sm:$0xff]
          %v887 = vld [vmem:[%s1 + $0x8] sm:$0xff]
          %v888 = vld [vmem:[%s1 + $0x10] sm:$0xff]
          %v889 = vld [vmem:[%s1 + $0x18] sm:$0xff]
          %v890 = vld [vmem:[%s2] sm:$0xff]
          %v891 = vld [vmem:[%s2 + $0x8] sm:$0xff]
          %v892 = vld [vmem:[%s2 + $0x10] sm:$0xff]
          %v893 = vld [vmem:[%s2 + $0x18] sm:$0xff]
          %v894 = vmul.f32 %v710, %v886
          %v895 = vmul.f32 %v713, %v887
          %v896 = vmul.f32 %v718, %v888
          %v897 = vmul.f32 %v721, %v889
          %vm898 = vcmask 1047680
          %899 = vrot.lane.b32.xlu0 %v710, 16
          %v900 = vpop.permute.xlu0 %899
          %v901 = vsel %vm898, %v900, %v710
          %902 = vrot.lane.b32.xlu0 %v713, 16
          %v903 = vpop.permute.xlu0 %902
          %v904 = vsel %vm898, %v903, %v713
          %905 = vrot.lane.b32.xlu0 %v718, 16
          %v906 = vpop.permute.xlu0 %905
          %v907 = vsel %vm898, %v906, %v718
          %908 = vrot.lane.b32.xlu0 %v721, 16
          %v909 = vpop.permute.xlu0 %908
          %v910 = vsel %vm898, %v909, %v721
          %911 = vrot.lane.b32.xlu0 %v901, 16
          %v912 = vpop.permute.xlu0 %911
          %913 = vrot.lane.b32.xlu0 %v904, 16
          %v914 = vpop.permute.xlu0 %913
          %915 = vrot.lane.b32.xlu0 %v907, 16
          %v916 = vpop.permute.xlu0 %915
          %917 = vrot.lane.b32.xlu0 %v910, 16
          %v918 = vpop.permute.xlu0 %917
          %v919 = vsel %vm898, %v912, %v710
          %v920 = vsel %vm898, %v914, %v713
          %v921 = vsel %vm898, %v916, %v718
          %v922 = vsel %vm898, %v918, %v721
          %927 = vrot.lane.b32.xlu0 %v890, 8
          %v928 = vpop.permute.xlu0 %927
          %929 = vrot.lane.b32.xlu0 %v891, 8
          %v930 = vpop.permute.xlu0 %929
          %931 = vrot.lane.b32.xlu0 %v892, 8
          %v932 = vpop.permute.xlu0 %931
          %933 = vrot.lane.b32.xlu0 %v893, 8
          %v934 = vpop.permute.xlu0 %933
          %v939 = vmul.f32 %v919, %v928
          %v940 = vmul.f32 %v920, %v930
          %v941 = vmul.f32 %v921, %v932
          %v942 = vmul.f32 %v922, %v934
          %947 = vrot.lane.b32.xlu0 %v939, 120
          %v948 = vpop.permute.xlu0 %947
          %949 = vrot.lane.b32.xlu0 %v940, 120
          %v950 = vpop.permute.xlu0 %949
          %951 = vrot.lane.b32.xlu0 %v941, 120
          %v952 = vpop.permute.xlu0 %951
          %953 = vrot.lane.b32.xlu0 %v942, 120
          %v954 = vpop.permute.xlu0 %953
          %v959 = vadd.f32 %v894, %v948
          %v960 = vadd.f32 %v895, %v950
          %v961 = vadd.f32 %v896, %v952
          %v962 = vadd.f32 %v897, %v954
          %v963 = vpack.c.bf16 %v960, %v959
          %v964 = vpack.c.bf16 %v962, %v961
          %vm965 = vcmask 130048
          %966 = vst.msk [vmem:[#allocation2] sm:$0xff] %vm965, %v963
          %967 = vst.msk [vmem:[#allocation2 + $0x8] sm:$0xff] %vm965, %v964
          %v968 = vmul.f32 %v791, %v886
          %v969 = vmul.f32 %v794, %v887
          %v970 = vmul.f32 %v799, %v888
          %v971 = vmul.f32 %v802, %v889
          %972 = vrot.lane.b32.xlu0 %v791, 16
          %v973 = vpop.permute.xlu0 %972
          %v974 = vsel %vm898, %v973, %v791
          %975 = vrot.lane.b32.xlu0 %v794, 16
          %v976 = vpop.permute.xlu0 %975
          %v977 = vsel %vm898, %v976, %v794
          %978 = vrot.lane.b32.xlu0 %v799, 16
          %v979 = vpop.permute.xlu0 %978
          %v980 = vsel %vm898, %v979, %v799
          %981 = vrot.lane.b32.xlu0 %v802, 16
          %v982 = vpop.permute.xlu0 %981
          %v983 = vsel %vm898, %v982, %v802
          %984 = vrot.lane.b32.xlu0 %v974, 16
          %v985 = vpop.permute.xlu0 %984
          %986 = vrot.lane.b32.xlu0 %v977, 16
          %v987 = vpop.permute.xlu0 %986
          %988 = vrot.lane.b32.xlu0 %v980, 16
          %v989 = vpop.permute.xlu0 %988
          %990 = vrot.lane.b32.xlu0 %v983, 16
          %v991 = vpop.permute.xlu0 %990
          %v992 = vsel %vm898, %v985, %v791
          %v993 = vsel %vm898, %v987, %v794
          %v994 = vsel %vm898, %v989, %v799
          %v995 = vsel %vm898, %v991, %v802
          %v996 = vmul.f32 %v992, %v928
          %v997 = vmul.f32 %v993, %v930
          %v998 = vmul.f32 %v994, %v932
          %v999 = vmul.f32 %v995, %v934
          %1004 = vrot.lane.b32.xlu0 %v996, 120
          %v1005 = vpop.permute.xlu0 %1004
          %1006 = vrot.lane.b32.xlu0 %v997, 120
          %v1007 = vpop.permute.xlu0 %1006
          %1008 = vrot.lane.b32.xlu0 %v998, 120
          %v1009 = vpop.permute.xlu0 %1008
          %1010 = vrot.lane.b32.xlu0 %v999, 120
          %v1011 = vpop.permute.xlu0 %1010
          %v1016 = vadd.f32 %v968, %v1005
          %v1017 = vadd.f32 %v969, %v1007
          %v1018 = vadd.f32 %v970, %v1009
          %v1019 = vadd.f32 %v971, %v1011
          %v1020 = vpack.c.bf16 %v1017, %v1016
          %v1021 = vpack.c.bf16 %v1019, %v1018
          %1022 = vst.msk [vmem:[#allocation3] sm:$0xff] %vm965, %v1020
          %1023 = vst.msk [vmem:[#allocation3 + $0x8] sm:$0xff] %vm965, %v1021
          %v1024 = vpack.c.bf16 %v875, %v872
          %v1025 = vpack.c.bf16 %v883, %v880
          %1026 = vst.msk [vmem:[#allocation4] sm:$0xff] %vm965, %v1024
          %1027 = vst.msk [vmem:[#allocation4 + $0x8] sm:$0xff] %vm965, %v1025
          %1032 = vrot.lane.b32.xlu0 %v886, 16
          %v1033 = vpop.permute.xlu0 %1032
          %1034 = vrot.lane.b32.xlu0 %v887, 16
          %v1035 = vpop.permute.xlu0 %1034
          %1036 = vrot.lane.b32.xlu0 %v888, 16
          %v1037 = vpop.permute.xlu0 %1036
          %1038 = vrot.lane.b32.xlu0 %v889, 16
          %v1039 = vpop.permute.xlu0 %1038
          %v1044 = vmul.f32 %v710, %v1033
          %v1045 = vmul.f32 %v713, %v1035
          %v1046 = vmul.f32 %v718, %v1037
          %v1047 = vmul.f32 %v721, %v1039
          %1052 = vrot.lane.b32.xlu0 %v710, 112
          %v1053 = vpop.permute.xlu0 %1052
          %1054 = vrot.lane.b32.xlu0 %v713, 112
          %v1055 = vpop.permute.xlu0 %1054
          %1056 = vrot.lane.b32.xlu0 %v718, 112
          %v1057 = vpop.permute.xlu0 %1056
          %1058 = vrot.lane.b32.xlu0 %v721, 112
          %v1059 = vpop.permute.xlu0 %1058
          %1064 = vrot.lane.b32.xlu0 %v1053, 16
          %v1065 = vpop.permute.xlu0 %1064
          %v1066 = vsel %vm898, %v1065, %v1053
          %1067 = vrot.lane.b32.xlu0 %v1055, 16
          %v1068 = vpop.permute.xlu0 %1067
          %v1069 = vsel %vm898, %v1068, %v1055
          %1070 = vrot.lane.b32.xlu0 %v1057, 16
          %v1071 = vpop.permute.xlu0 %1070
          %v1072 = vsel %vm898, %v1071, %v1057
          %1073 = vrot.lane.b32.xlu0 %v1059, 16
          %v1074 = vpop.permute.xlu0 %1073
          %v1075 = vsel %vm898, %v1074, %v1059
          %1076 = vrot.lane.b32.xlu0 %v1066, 16
          %v1077 = vpop.permute.xlu0 %1076
          %1078 = vrot.lane.b32.xlu0 %v1069, 16
          %v1079 = vpop.permute.xlu0 %1078
          %1080 = vrot.lane.b32.xlu0 %v1072, 16
          %v1081 = vpop.permute.xlu0 %1080
          %1082 = vrot.lane.b32.xlu0 %v1075, 16
          %v1083 = vpop.permute.xlu0 %1082
          %v1084 = vsel %vm898, %v1077, %v1053
          %v1085 = vsel %vm898, %v1079, %v1055
          %v1086 = vsel %vm898, %v1081, %v1057
          %v1087 = vsel %vm898, %v1083, %v1059
          %v1088 = vmul.f32 %v1084, %v928
          %v1089 = vmul.f32 %v1085, %v930
          %v1090 = vmul.f32 %v1086, %v932
          %v1091 = vmul.f32 %v1087, %v934
          %1096 = vrot.lane.b32.xlu0 %v1088, 8
          %v1097 = vpop.permute.xlu0 %1096
          %1098 = vrot.lane.b32.xlu0 %v1089, 8
          %v1099 = vpop.permute.xlu0 %1098
          %1100 = vrot.lane.b32.xlu0 %v1090, 8
          %v1101 = vpop.permute.xlu0 %1100
          %1102 = vrot.lane.b32.xlu0 %v1091, 8
          %v1103 = vpop.permute.xlu0 %1102
          %v1108 = vadd.f32 %v1044, %v1097
          %v1109 = vadd.f32 %v1045, %v1099
          %v1110 = vadd.f32 %v1046, %v1101
          %v1111 = vadd.f32 %v1047, %v1103
          %v1112 = vpack.c.bf16 %v1109, %v1108
          %v1113 = vpack.c.bf16 %v1111, %v1110
          %1116 = vrot.lane.b32.xlu0 %v1112, 112
          %v1117 = vpop.permute.xlu0 %1116
          %1118 = vrot.lane.b32.xlu0 %v1113, 112
          %v1119 = vpop.permute.xlu0 %1118
          %s1122 = scalar_lea.vmem [#allocation2], 16
          %1123 = vst.msk [vmem:[%s1122] sm:$0xff] %vm965, %v1117
          %1124 = vst.msk [vmem:[%s1122 + $0x8] sm:$0xff] %vm965, %v1119
          %v1125 = vmul.f32 %v791, %v1033
          %v1126 = vmul.f32 %v794, %v1035
          %v1127 = vmul.f32 %v799, %v1037
          %v1128 = vmul.f32 %v802, %v1039
          %1133 = vrot.lane.b32.xlu0 %v791, 112
          %v1134 = vpop.permute.xlu0 %1133
          %1135 = vrot.lane.b32.xlu0 %v794, 112
          %v1136 = vpop.permute.xlu0 %1135
          %1137 = vrot.lane.b32.xlu0 %v799, 112
          %v1138 = vpop.permute.xlu0 %1137
          %1139 = vrot.lane.b32.xlu0 %v802, 112
          %v1140 = vpop.permute.xlu0 %1139
          %1145 = vrot.lane.b32.xlu0 %v1134, 16
          %v1146 = vpop.permute.xlu0 %1145
          %v1147 = vsel %vm898, %v1146, %v1134
          %1148 = vrot.lane.b32.xlu0 %v1136, 16
          %v1149 = vpop.permute.xlu0 %1148
          %v1150 = vsel %vm898, %v1149, %v1136
          %1151 = vrot.lane.b32.xlu0 %v1138, 16
          %v1152 = vpop.permute.xlu0 %1151
          %v1153 = vsel %vm898, %v1152, %v1138
          %1154 = vrot.lane.b32.xlu0 %v1140, 16
          %v1155 = vpop.permute.xlu0 %1154
          %v1156 = vsel %vm898, %v1155, %v1140
          %1157 = vrot.lane.b32.xlu0 %v1147, 16
          %v1158 = vpop.permute.xlu0 %1157
          %1159 = vrot.lane.b32.xlu0 %v1150, 16
          %v1160 = vpop.permute.xlu0 %1159
          %1161 = vrot.lane.b32.xlu0 %v1153, 16
          %v1162 = vpop.permute.xlu0 %1161
          %1163 = vrot.lane.b32.xlu0 %v1156, 16
          %v1164 = vpop.permute.xlu0 %1163
          %v1165 = vsel %vm898, %v1158, %v1134
          %v1166 = vsel %vm898, %v1160, %v1136
          %v1167 = vsel %vm898, %v1162, %v1138
          %v1168 = vsel %vm898, %v1164, %v1140
          %v1169 = vmul.f32 %v1165, %v928
          %v1170 = vmul.f32 %v1166, %v930
          %v1171 = vmul.f32 %v1167, %v932
          %v1172 = vmul.f32 %v1168, %v934
          %1177 = vrot.lane.b32.xlu0 %v1169, 8
          %v1178 = vpop.permute.xlu0 %1177
          %1179 = vrot.lane.b32.xlu0 %v1170, 8
          %v1180 = vpop.permute.xlu0 %1179
          %1181 = vrot.lane.b32.xlu0 %v1171, 8
          %v1182 = vpop.permute.xlu0 %1181
          %1183 = vrot.lane.b32.xlu0 %v1172, 8
          %v1184 = vpop.permute.xlu0 %1183
          %v1189 = vadd.f32 %v1125, %v1178
          %v1190 = vadd.f32 %v1126, %v1180
          %v1191 = vadd.f32 %v1127, %v1182
          %v1192 = vadd.f32 %v1128, %v1184
          %v1193 = vpack.c.bf16 %v1190, %v1189
          %v1194 = vpack.c.bf16 %v1192, %v1191
          %1197 = vrot.lane.b32.xlu0 %v1193, 112
          %v1198 = vpop.permute.xlu0 %1197
          %1199 = vrot.lane.b32.xlu0 %v1194, 112
          %v1200 = vpop.permute.xlu0 %1199
          %s1203 = scalar_lea.vmem [#allocation3], 16
          %1204 = vst.msk [vmem:[%s1203] sm:$0xff] %vm965, %v1198
          %1205 = vst.msk [vmem:[%s1203 + $0x8] sm:$0xff] %vm965, %v1200
          %1208 = vrot.lane.b32.xlu0 %v1024, 112
          %v1209 = vpop.permute.xlu0 %1208
          %1210 = vrot.lane.b32.xlu0 %v1025, 112
          %v1211 = vpop.permute.xlu0 %1210
          %s1214 = scalar_lea.vmem [#allocation4], 16
          %1215 = vst.msk [vmem:[%s1214] sm:$0xff] %vm965, %v1209
          %1216 = vst.msk [vmem:[%s1214 + $0x8] sm:$0xff] %vm965, %v1211
          %1217 = vrot.lane.b32.xlu0 %v886, 32
          %v1218 = vpop.permute.xlu0 %1217
          %1219 = vrot.lane.b32.xlu0 %v887, 32
          %v1220 = vpop.permute.xlu0 %1219
          %1221 = vrot.lane.b32.xlu0 %v888, 32
          %v1222 = vpop.permute.xlu0 %1221
          %1223 = vrot.lane.b32.xlu0 %v889, 32
          %v1224 = vpop.permute.xlu0 %1223
          %v1229 = vmul.f32 %v710, %v1218
          %v1230 = vmul.f32 %v713, %v1220
          %v1231 = vmul.f32 %v718, %v1222
          %v1232 = vmul.f32 %v721, %v1224
          %1233 = vrot.lane.b32.xlu0 %v710, 96
          %v1234 = vpop.permute.xlu0 %1233
          %1235 = vrot.lane.b32.xlu0 %v713, 96
          %v1236 = vpop.permute.xlu0 %1235
          %1237 = vrot.lane.b32.xlu0 %v718, 96
          %v1238 = vpop.permute.xlu0 %1237
          %1239 = vrot.lane.b32.xlu0 %v721, 96
          %v1240 = vpop.permute.xlu0 %1239
          %1245 = vrot.lane.b32.xlu0 %v1234, 16
          %v1246 = vpop.permute.xlu0 %1245
          %v1247 = vsel %vm898, %v1246, %v1234
          %1248 = vrot.lane.b32.xlu0 %v1236, 16
          %v1249 = vpop.permute.xlu0 %1248
          %v1250 = vsel %vm898, %v1249, %v1236
          %1251 = vrot.lane.b32.xlu0 %v1238, 16
          %v1252 = vpop.permute.xlu0 %1251
          %v1253 = vsel %vm898, %v1252, %v1238
          %1254 = vrot.lane.b32.xlu0 %v1240, 16
          %v1255 = vpop.permute.xlu0 %1254
          %v1256 = vsel %vm898, %v1255, %v1240
          %1257 = vrot.lane.b32.xlu0 %v1247, 16
          %v1258 = vpop.permute.xlu0 %1257
          %1259 = vrot.lane.b32.xlu0 %v1250, 16
          %v1260 = vpop.permute.xlu0 %1259
          %1261 = vrot.lane.b32.xlu0 %v1253, 16
          %v1262 = vpop.permute.xlu0 %1261
          %1263 = vrot.lane.b32.xlu0 %v1256, 16
          %v1264 = vpop.permute.xlu0 %1263
          %v1265 = vsel %vm898, %v1258, %v1234
          %v1266 = vsel %vm898, %v1260, %v1236
          %v1267 = vsel %vm898, %v1262, %v1238
          %v1268 = vsel %vm898, %v1264, %v1240
          %v1269 = vmul.f32 %v1265, %v928
          %v1270 = vmul.f32 %v1266, %v930
          %v1271 = vmul.f32 %v1267, %v932
          %v1272 = vmul.f32 %v1268, %v934
          %1277 = vrot.lane.b32.xlu0 %v1269, 24
          %v1278 = vpop.permute.xlu0 %1277
          %1279 = vrot.lane.b32.xlu0 %v1270, 24
          %v1280 = vpop.permute.xlu0 %1279
          %1281 = vrot.lane.b32.xlu0 %v1271, 24
          %v1282 = vpop.permute.xlu0 %1281
          %1283 = vrot.lane.b32.xlu0 %v1272, 24
          %v1284 = vpop.permute.xlu0 %1283
          %v1289 = vadd.f32 %v1229, %v1278
          %v1290 = vadd.f32 %v1230, %v1280
          %v1291 = vadd.f32 %v1231, %v1282
          %v1292 = vadd.f32 %v1232, %v1284
          %v1293 = vpack.c.bf16 %v1290, %v1289
          %v1294 = vpack.c.bf16 %v1292, %v1291
          %1297 = vrot.lane.b32.xlu0 %v1293, 96
          %v1298 = vpop.permute.xlu0 %1297
          %1299 = vrot.lane.b32.xlu0 %v1294, 96
          %v1300 = vpop.permute.xlu0 %1299
          %s1303 = scalar_lea.vmem [#allocation2], 32
          %1304 = vst.msk [vmem:[%s1303] sm:$0xff] %vm965, %v1298
          %1305 = vst.msk [vmem:[%s1303 + $0x8] sm:$0xff] %vm965, %v1300
          %v1306 = vmul.f32 %v791, %v1218
          %v1307 = vmul.f32 %v794, %v1220
          %v1308 = vmul.f32 %v799, %v1222
          %v1309 = vmul.f32 %v802, %v1224
          %1310 = vrot.lane.b32.xlu0 %v791, 96
          %v1311 = vpop.permute.xlu0 %1310
          %1312 = vrot.lane.b32.xlu0 %v794, 96
          %v1313 = vpop.permute.xlu0 %1312
          %1314 = vrot.lane.b32.xlu0 %v799, 96
          %v1315 = vpop.permute.xlu0 %1314
          %1316 = vrot.lane.b32.xlu0 %v802, 96
          %v1317 = vpop.permute.xlu0 %1316
          %1322 = vrot.lane.b32.xlu0 %v1311, 16
          %v1323 = vpop.permute.xlu0 %1322
          %v1324 = vsel %vm898, %v1323, %v1311
          %1325 = vrot.lane.b32.xlu0 %v1313, 16
          %v1326 = vpop.permute.xlu0 %1325
          %v1327 = vsel %vm898, %v1326, %v1313
          %1328 = vrot.lane.b32.xlu0 %v1315, 16
          %v1329 = vpop.permute.xlu0 %1328
          %v1330 = vsel %vm898, %v1329, %v1315
          %1331 = vrot.lane.b32.xlu0 %v1317, 16
          %v1332 = vpop.permute.xlu0 %1331
          %v1333 = vsel %vm898, %v1332, %v1317
          %1334 = vrot.lane.b32.xlu0 %v1324, 16
          %v1335 = vpop.permute.xlu0 %1334
          %1336 = vrot.lane.b32.xlu0 %v1327, 16
          %v1337 = vpop.permute.xlu0 %1336
          %1338 = vrot.lane.b32.xlu0 %v1330, 16
          %v1339 = vpop.permute.xlu0 %1338
          %1340 = vrot.lane.b32.xlu0 %v1333, 16
          %v1341 = vpop.permute.xlu0 %1340
          %v1342 = vsel %vm898, %v1335, %v1311
          %v1343 = vsel %vm898, %v1337, %v1313
          %v1344 = vsel %vm898, %v1339, %v1315
          %v1345 = vsel %vm898, %v1341, %v1317
          %v1346 = vmul.f32 %v1342, %v928
          %v1347 = vmul.f32 %v1343, %v930
          %v1348 = vmul.f32 %v1344, %v932
          %v1349 = vmul.f32 %v1345, %v934
          %1354 = vrot.lane.b32.xlu0 %v1346, 24
          %v1355 = vpop.permute.xlu0 %1354
          %1356 = vrot.lane.b32.xlu0 %v1347, 24
          %v1357 = vpop.permute.xlu0 %1356
          %1358 = vrot.lane.b32.xlu0 %v1348, 24
          %v1359 = vpop.permute.xlu0 %1358
          %1360 = vrot.lane.b32.xlu0 %v1349, 24
          %v1361 = vpop.permute.xlu0 %1360
          %v1366 = vadd.f32 %v1306, %v1355
          %v1367 = vadd.f32 %v1307, %v1357
          %v1368 = vadd.f32 %v1308, %v1359
          %v1369 = vadd.f32 %v1309, %v1361
          %v1370 = vpack.c.bf16 %v1367, %v1366
          %v1371 = vpack.c.bf16 %v1369, %v1368
          %1374 = vrot.lane.b32.xlu0 %v1370, 96
          %v1375 = vpop.permute.xlu0 %1374
          %1376 = vrot.lane.b32.xlu0 %v1371, 96
          %v1377 = vpop.permute.xlu0 %1376
          %s1380 = scalar_lea.vmem [#allocation3], 32
          %1381 = vst.msk [vmem:[%s1380] sm:$0xff] %vm965, %v1375
          %1382 = vst.msk [vmem:[%s1380 + $0x8] sm:$0xff] %vm965, %v1377
          %1383 = vrot.lane.b32.xlu0 %v1024, 96
          %v1384 = vpop.permute.xlu0 %1383
          %1385 = vrot.lane.b32.xlu0 %v1025, 96
          %v1386 = vpop.permute.xlu0 %1385
          %s1389 = scalar_lea.vmem [#allocation4], 32
          %1390 = vst.msk [vmem:[%s1389] sm:$0xff] %vm965, %v1384
          %1391 = vst.msk [vmem:[%s1389 + $0x8] sm:$0xff] %vm965, %v1386
          %1392 = vrot.lane.b32.xlu0 %v886, 48
          %v1393 = vpop.permute.xlu0 %1392
          %1394 = vrot.lane.b32.xlu0 %v887, 48
          %v1395 = vpop.permute.xlu0 %1394
          %1396 = vrot.lane.b32.xlu0 %v888, 48
          %v1397 = vpop.permute.xlu0 %1396
          %1398 = vrot.lane.b32.xlu0 %v889, 48
          %v1399 = vpop.permute.xlu0 %1398
          %v1404 = vmul.f32 %v710, %v1393
          %v1405 = vmul.f32 %v713, %v1395
          %v1406 = vmul.f32 %v718, %v1397
          %v1407 = vmul.f32 %v721, %v1399
          %1408 = vrot.lane.b32.xlu0 %v710, 80
          %v1409 = vpop.permute.xlu0 %1408
          %1410 = vrot.lane.b32.xlu0 %v713, 80
          %v1411 = vpop.permute.xlu0 %1410
          %1412 = vrot.lane.b32.xlu0 %v718, 80
          %v1413 = vpop.permute.xlu0 %1412
          %1414 = vrot.lane.b32.xlu0 %v721, 80
          %v1415 = vpop.permute.xlu0 %1414
          %1420 = vrot.lane.b32.xlu0 %v1409, 16
          %v1421 = vpop.permute.xlu0 %1420
          %v1422 = vsel %vm898, %v1421, %v1409
          %1423 = vrot.lane.b32.xlu0 %v1411, 16
          %v1424 = vpop.permute.xlu0 %1423
          %v1425 = vsel %vm898, %v1424, %v1411
          %1426 = vrot.lane.b32.xlu0 %v1413, 16
          %v1427 = vpop.permute.xlu0 %1426
          %v1428 = vsel %vm898, %v1427, %v1413
          %1429 = vrot.lane.b32.xlu0 %v1415, 16
          %v1430 = vpop.permute.xlu0 %1429
          %v1431 = vsel %vm898, %v1430, %v1415
          %1432 = vrot.lane.b32.xlu0 %v1422, 16
          %v1433 = vpop.permute.xlu0 %1432
          %1434 = vrot.lane.b32.xlu0 %v1425, 16
          %v1435 = vpop.permute.xlu0 %1434
          %1436 = vrot.lane.b32.xlu0 %v1428, 16
          %v1437 = vpop.permute.xlu0 %1436
          %1438 = vrot.lane.b32.xlu0 %v1431, 16
          %v1439 = vpop.permute.xlu0 %1438
          %v1440 = vsel %vm898, %v1433, %v1409
          %v1441 = vsel %vm898, %v1435, %v1411
          %v1442 = vsel %vm898, %v1437, %v1413
          %v1443 = vsel %vm898, %v1439, %v1415
          %v1444 = vmul.f32 %v1440, %v928
          %v1445 = vmul.f32 %v1441, %v930
          %v1446 = vmul.f32 %v1442, %v932
          %v1447 = vmul.f32 %v1443, %v934
          %1452 = vrot.lane.b32.xlu0 %v1444, 40
          %v1453 = vpop.permute.xlu0 %1452
          %1454 = vrot.lane.b32.xlu0 %v1445, 40
          %v1455 = vpop.permute.xlu0 %1454
          %1456 = vrot.lane.b32.xlu0 %v1446, 40
          %v1457 = vpop.permute.xlu0 %1456
          %1458 = vrot.lane.b32.xlu0 %v1447, 40
          %v1459 = vpop.permute.xlu0 %1458
          %v1464 = vadd.f32 %v1404, %v1453
          %v1465 = vadd.f32 %v1405, %v1455
          %v1466 = vadd.f32 %v1406, %v1457
          %v1467 = vadd.f32 %v1407, %v1459
          %v1468 = vpack.c.bf16 %v1465, %v1464
          %v1469 = vpack.c.bf16 %v1467, %v1466
          %1472 = vrot.lane.b32.xlu0 %v1468, 80
          %v1473 = vpop.permute.xlu0 %1472
          %1474 = vrot.lane.b32.xlu0 %v1469, 80
          %v1475 = vpop.permute.xlu0 %1474
          %s1478 = scalar_lea.vmem [#allocation2], 48
          %1479 = vst.msk [vmem:[%s1478] sm:$0xff] %vm965, %v1473
          %1480 = vst.msk [vmem:[%s1478 + $0x8] sm:$0xff] %vm965, %v1475
          %v1481 = vmul.f32 %v791, %v1393
          %v1482 = vmul.f32 %v794, %v1395
          %v1483 = vmul.f32 %v799, %v1397
          %v1484 = vmul.f32 %v802, %v1399
          %1485 = vrot.lane.b32.xlu0 %v791, 80
          %v1486 = vpop.permute.xlu0 %1485
          %1487 = vrot.lane.b32.xlu0 %v794, 80
          %v1488 = vpop.permute.xlu0 %1487
          %1489 = vrot.lane.b32.xlu0 %v799, 80
          %v1490 = vpop.permute.xlu0 %1489
          %1491 = vrot.lane.b32.xlu0 %v802, 80
          %v1492 = vpop.permute.xlu0 %1491
          %1497 = vrot.lane.b32.xlu0 %v1486, 16
          %v1498 = vpop.permute.xlu0 %1497
          %v1499 = vsel %vm898, %v1498, %v1486
          %1500 = vrot.lane.b32.xlu0 %v1488, 16
          %v1501 = vpop.permute.xlu0 %1500
          %v1502 = vsel %vm898, %v1501, %v1488
          %1503 = vrot.lane.b32.xlu0 %v1490, 16
          %v1504 = vpop.permute.xlu0 %1503
          %v1505 = vsel %vm898, %v1504, %v1490
          %1506 = vrot.lane.b32.xlu0 %v1492, 16
          %v1507 = vpop.permute.xlu0 %1506
          %v1508 = vsel %vm898, %v1507, %v1492
          %1509 = vrot.lane.b32.xlu0 %v1499, 16
          %v1510 = vpop.permute.xlu0 %1509
          %1511 = vrot.lane.b32.xlu0 %v1502, 16
          %v1512 = vpop.permute.xlu0 %1511
          %1513 = vrot.lane.b32.xlu0 %v1505, 16
          %v1514 = vpop.permute.xlu0 %1513
          %1515 = vrot.lane.b32.xlu0 %v1508, 16
          %v1516 = vpop.permute.xlu0 %1515
          %v1517 = vsel %vm898, %v1510, %v1486
          %v1518 = vsel %vm898, %v1512, %v1488
          %v1519 = vsel %vm898, %v1514, %v1490
          %v1520 = vsel %vm898, %v1516, %v1492
          %v1521 = vmul.f32 %v1517, %v928
          %v1522 = vmul.f32 %v1518, %v930
          %v1523 = vmul.f32 %v1519, %v932
          %v1524 = vmul.f32 %v1520, %v934
          %1529 = vrot.lane.b32.xlu0 %v1521, 40
          %v1530 = vpop.permute.xlu0 %1529
          %1531 = vrot.lane.b32.xlu0 %v1522, 40
          %v1532 = vpop.permute.xlu0 %1531
          %1533 = vrot.lane.b32.xlu0 %v1523, 40
          %v1534 = vpop.permute.xlu0 %1533
          %1535 = vrot.lane.b32.xlu0 %v1524, 40
          %v1536 = vpop.permute.xlu0 %1535
          %v1541 = vadd.f32 %v1481, %v1530
          %v1542 = vadd.f32 %v1482, %v1532
          %v1543 = vadd.f32 %v1483, %v1534
          %v1544 = vadd.f32 %v1484, %v1536
          %v1545 = vpack.c.bf16 %v1542, %v1541
          %v1546 = vpack.c.bf16 %v1544, %v1543
          %1549 = vrot.lane.b32.xlu0 %v1545, 80
          %v1550 = vpop.permute.xlu0 %1549
          %1551 = vrot.lane.b32.xlu0 %v1546, 80
          %v1552 = vpop.permute.xlu0 %1551
          %s1555 = scalar_lea.vmem [#allocation3], 48
          %1556 = vst.msk [vmem:[%s1555] sm:$0xff] %vm965, %v1550
          %1557 = vst.msk [vmem:[%s1555 + $0x8] sm:$0xff] %vm965, %v1552
          %1558 = vrot.lane.b32.xlu0 %v1024, 80
          %v1559 = vpop.permute.xlu0 %1558
          %1560 = vrot.lane.b32.xlu0 %v1025, 80
          %v1561 = vpop.permute.xlu0 %1560
          %s1564 = scalar_lea.vmem [#allocation4], 48
          %1565 = vst.msk [vmem:[%s1564] sm:$0xff] %vm965, %v1559
          %1566 = vst.msk [vmem:[%s1564 + $0x8] sm:$0xff] %vm965, %v1561
        $region92: #{tpu_custom_call.1} parent=83 // pred_fallthru
          _
        %s1567 = smul.u32 %s36, 16
        %s1568 = scalar_lea.vmem %s548, %s1567
        %v1569 = vld [vmem:[%s1568] sm:$0xff]
        %v1570 = vld [vmem:[%s1568 + $0x8] sm:$0xff]
        %s1571 = sshra.s32 %s1567, 4
        %s1572 = sand.u32 %s1567, 15
        %s1573 = smul.addr %s1571, 8
        %s1574 = scalar_lea.vmem [#allocation2], %s1573
        %v1575 = vld [vmem:[%s1574] sm:$0xff]
        %v1576 = vld [vmem:[%s1574 + $0x10] sm:$0xff]
        %v1577 = vld [vmem:[%s1574 + $0x20] sm:$0xff]
        %v1578 = vld [vmem:[%s1574 + $0x30] sm:$0xff]
        %v1579 = vld [vmem:[#allocation3] sm:$0xff]
        %v1580 = vld [vmem:[#allocation3 + $0x8] sm:$0xff]
        %v1581 = vld [vmem:[#allocation3 + $0x10] sm:$0xff]
        %v1582 = vld [vmem:[#allocation3 + $0x18] sm:$0xff]
        %v1583 = vld [vmem:[#allocation3 + $0x20] sm:$0xff]
        %v1584 = vld [vmem:[#allocation3 + $0x28] sm:$0xff]
        %v1585 = vld [vmem:[#allocation3 + $0x30] sm:$0xff]
        %v1586 = vld [vmem:[#allocation3 + $0x38] sm:$0xff]
        %vm1587 = vcmask 130048
        %v1589 = vsel %vm1587, %v1575, 0
        %v1592 = vsel %vm1587, %v1579, 0
        %v1595 = vsel %vm1587, %v1580, 0
        %1597 = vmatprep.subr.bf16.mxu0 0
        %1598 = vmatpush1.bf16.xpose.msra.mxu0 %v1592
        %1599 = vmatprep.subr.bf16.mxu0 0
        %1600 = vmatpush1.bf16.xpose.msra.mxu0 %v1595
        %1601 = vmatprep.subr.bf16.mxu0 0
        %1602 = vmatpush1.bf16.xpose.msra.mxu0 0
        %1603 = vmatprep.subr.bf16.mxu0 0
        %1604 = vmatpush1.bf16.xpose.msra.mxu0 0
        %1605 = vmatprep.subr.bf16.mxu0 0
        %1606 = vmatpush1.bf16.xpose.msra.mxu0 0
        %1607 = vmatprep.subr.bf16.mxu0 0
        %1608 = vmatpush1.bf16.xpose.msra.mxu0 0
        %1609 = vmatprep.subr.bf16.mxu0 0
        %1610 = vmatpush1.bf16.xpose.msra.mxu0 0
        %1611 = vmatprep.subr.bf16.mxu0 0
        %1612 = vmatpush1.bf16.xpose.msra.mxu0 0
        %1613 = vmatprep.subr.bf16.mxu0 0
        %1614 = vmatpush1.bf16.xpose.msra.mxu0 0
        %1615 = vmatprep.subr.bf16.mxu0 0
        %1616 = vmatpush1.bf16.xpose.msra.mxu0 0
        %1617 = vmatprep.subr.bf16.mxu0 0
        %1618 = vmatpush1.bf16.xpose.msra.mxu0 0
        %1619 = vmatprep.subr.bf16.mxu0 0
        %1620 = vmatpush1.bf16.xpose.msra.mxu0 0
        %1621 = vmatprep.subr.bf16.mxu0 0
        %1622 = vmatpush1.bf16.xpose.msra.mxu0 0
        %1623 = vmatprep.subr.bf16.mxu0 0
        %1624 = vmatpush1.bf16.xpose.msra.mxu0 0
        %1625 = vmatprep.subr.bf16.mxu0 0
        %1626 = vmatpush1.bf16.xpose.msra.mxu0 0
        %1627 = vmatprep.subr.bf16.mxu0 0
        %1628 = vmatpush1.bf16.xpose.msra.mxu0 0
        %1629 = vmatprep.mubr.bf16.mxu0 0
        %1630 = vmatmul.mubr.bf16.gmra.mrb[0].mxu0 %v1589
        %v1631 = vpop.f32.mrb[0].mxu0
        %v1632 = vadd.f32 0.0, %v1631
        %v1633 = vpop.f32.mrb[0].mxu0
        %v1634 = vpop.f32.mrb[0].mxu0
        %v1635 = vadd.f32 0.0, %v1634
        %v1636 = vpop.f32.mrb[0].mxu0
        %1637 = vdwg.mxu0
        %v1639 = vsel %vm1587, %v1576, 0
        %v1642 = vsel %vm1587, %v1581, 0
        %v1645 = vsel %vm1587, %v1582, 0
        %1647 = vmatprep.subr.bf16.mxu0 0
        %1648 = vmatpush1.bf16.xpose.msra.mxu0 %v1642
        %1649 = vmatprep.subr.bf16.mxu0 0
        %1650 = vmatpush1.bf16.xpose.msra.mxu0 %v1645
        %1651 = vmatprep.subr.bf16.mxu0 0
        %1652 = vmatpush1.bf16.xpose.msra.mxu0 0
        %1653 = vmatprep.subr.bf16.mxu0 0
        %1654 = vmatpush1.bf16.xpose.msra.mxu0 0
        %1655 = vmatprep.subr.bf16.mxu0 0
        %1656 = vmatpush1.bf16.xpose.msra.mxu0 0
        %1657 = vmatprep.subr.bf16.mxu0 0
        %1658 = vmatpush1.bf16.xpose.msra.mxu0 0
        %1659 = vmatprep.subr.bf16.mxu0 0
        %1660 = vmatpush1.bf16.xpose.msra.mxu0 0
        %1661 = vmatprep.subr.bf16.mxu0 0
        %1662 = vmatpush1.bf16.xpose.msra.mxu0 0
        %1663 = vmatprep.subr.bf16.mxu0 0
        %1664 = vmatpush1.bf16.xpose.msra.mxu0 0
        %1665 = vmatprep.subr.bf16.mxu0 0
        %1666 = vmatpush1.bf16.xpose.msra.mxu0 0
        %1667 = vmatprep.subr.bf16.mxu0 0
        %1668 = vmatpush1.bf16.xpose.msra.mxu0 0
        %1669 = vmatprep.subr.bf16.mxu0 0
        %1670 = vmatpush1.bf16.xpose.msra.mxu0 0
        %1671 = vmatprep.subr.bf16.mxu0 0
        %1672 = vmatpush1.bf16.xpose.msra.mxu0 0
        %1673 = vmatprep.subr.bf16.mxu0 0
        %1674 = vmatpush1.bf16.xpose.msra.mxu0 0
        %1675 = vmatprep.subr.bf16.mxu0 0
        %1676 = vmatpush1.bf16.xpose.msra.mxu0 0
        %1677 = vmatprep.subr.bf16.mxu0 0
        %1678 = vmatpush1.bf16.xpose.msra.mxu0 0
        %1679 = vmatprep.mubr.bf16.mxu0 0
        %1680 = vmatmul.mubr.bf16.gmra.mrb[0].mxu0 %v1639
        %v1681 = vpop.f32.mrb[0].mxu0
        %v1682 = vadd.f32 0.0, %v1681
        %v1683 = vpop.f32.mrb[0].mxu0
        %v1684 = vpop.f32.mrb[0].mxu0
        %v1685 = vadd.f32 0.0, %v1684
        %v1686 = vpop.f32.mrb[0].mxu0
        %1687 = vdwg.mxu0
        %v1689 = vsel %vm1587, %v1577, 0
        %v1692 = vsel %vm1587, %v1583, 0
        %v1695 = vsel %vm1587, %v1584, 0
        %1697 = vmatprep.subr.bf16.mxu0 0
        %1698 = vmatpush1.bf16.xpose.msra.mxu0 %v1692
        %1699 = vmatprep.subr.bf16.mxu0 0
        %1700 = vmatpush1.bf16.xpose.msra.mxu0 %v1695
        %1701 = vmatprep.subr.bf16.mxu0 0
        %1702 = vmatpush1.bf16.xpose.msra.mxu0 0
        %1703 = vmatprep.subr.bf16.mxu0 0
        %1704 = vmatpush1.bf16.xpose.msra.mxu0 0
        %1705 = vmatprep.subr.bf16.mxu0 0
        %1706 = vmatpush1.bf16.xpose.msra.mxu0 0
        %1707 = vmatprep.subr.bf16.mxu0 0
        %1708 = vmatpush1.bf16.xpose.msra.mxu0 0
        %1709 = vmatprep.subr.bf16.mxu0 0
        %1710 = vmatpush1.bf16.xpose.msra.mxu0 0
        %1711 = vmatprep.subr.bf16.mxu0 0
        %1712 = vmatpush1.bf16.xpose.msra.mxu0 0
        %1713 = vmatprep.subr.bf16.mxu0 0
        %1714 = vmatpush1.bf16.xpose.msra.mxu0 0
        %1715 = vmatprep.subr.bf16.mxu0 0
        %1716 = vmatpush1.bf16.xpose.msra.mxu0 0
        %1717 = vmatprep.subr.bf16.mxu0 0
        %1718 = vmatpush1.bf16.xpose.msra.mxu0 0
        %1719 = vmatprep.subr.bf16.mxu0 0
        %1720 = vmatpush1.bf16.xpose.msra.mxu0 0
        %1721 = vmatprep.subr.bf16.mxu0 0
        %1722 = vmatpush1.bf16.xpose.msra.mxu0 0
        %1723 = vmatprep.subr.bf16.mxu0 0
        %1724 = vmatpush1.bf16.xpose.msra.mxu0 0
        %1725 = vmatprep.subr.bf16.mxu0 0
        %1726 = vmatpush1.bf16.xpose.msra.mxu0 0
        %1727 = vmatprep.subr.bf16.mxu0 0
        %1728 = vmatpush1.bf16.xpose.msra.mxu0 0
        %1729 = vmatprep.mubr.bf16.mxu0 0
        %1730 = vmatmul.mubr.bf16.gmra.mrb[0].mxu0 %v1689
        %v1731 = vpop.f32.mrb[0].mxu0
        %v1732 = vadd.f32 0.0, %v1731
        %v1733 = vpop.f32.mrb[0].mxu0
        %v1734 = vpop.f32.mrb[0].mxu0
        %v1735 = vadd.f32 0.0, %v1734
        %v1736 = vpop.f32.mrb[0].mxu0
        %1737 = vdwg.mxu0
        %v1739 = vsel %vm1587, %v1578, 0
        %v1742 = vsel %vm1587, %v1585, 0
        %v1745 = vsel %vm1587, %v1586, 0
        %1747 = vmatprep.subr.bf16.mxu0 0
        %1748 = vmatpush1.bf16.xpose.msra.mxu0 %v1742
        %1749 = vmatprep.subr.bf16.mxu0 0
        %1750 = vmatpush1.bf16.xpose.msra.mxu0 %v1745
        %1751 = vmatprep.subr.bf16.mxu0 0
        %1752 = vmatpush1.bf16.xpose.msra.mxu0 0
        %1753 = vmatprep.subr.bf16.mxu0 0
        %1754 = vmatpush1.bf16.xpose.msra.mxu0 0
        %1755 = vmatprep.subr.bf16.mxu0 0
        %1756 = vmatpush1.bf16.xpose.msra.mxu0 0
        %1757 = vmatprep.subr.bf16.mxu0 0
        %1758 = vmatpush1.bf16.xpose.msra.mxu0 0
        %1759 = vmatprep.subr.bf16.mxu0 0
        %1760 = vmatpush1.bf16.xpose.msra.mxu0 0
        %1761 = vmatprep.subr.bf16.mxu0 0
        %1762 = vmatpush1.bf16.xpose.msra.mxu0 0
        %1763 = vmatprep.subr.bf16.mxu0 0
        %1764 = vmatpush1.bf16.xpose.msra.mxu0 0
        %1765 = vmatprep.subr.bf16.mxu0 0
        %1766 = vmatpush1.bf16.xpose.msra.mxu0 0
        %1767 = vmatprep.subr.bf16.mxu0 0
        %1768 = vmatpush1.bf16.xpose.msra.mxu0 0
        %1769 = vmatprep.subr.bf16.mxu0 0
        %1770 = vmatpush1.bf16.xpose.msra.mxu0 0
        %1771 = vmatprep.subr.bf16.mxu0 0
        %1772 = vmatpush1.bf16.xpose.msra.mxu0 0
        %1773 = vmatprep.subr.bf16.mxu0 0
        %1774 = vmatpush1.bf16.xpose.msra.mxu0 0
        %1775 = vmatprep.subr.bf16.mxu0 0
        %1776 = vmatpush1.bf16.xpose.msra.mxu0 0
        %1777 = vmatprep.subr.bf16.mxu0 0
        %1778 = vmatpush1.bf16.xpose.msra.mxu0 0
        %1779 = vmatprep.mubr.bf16.mxu0 0
        %1780 = vmatmul.mubr.bf16.gmra.mrb[0].mxu0 %v1739
        %v1781 = vpop.f32.mrb[0].mxu0
        %v1782 = vadd.f32 0.0, %v1781
        %v1783 = vpop.f32.mrb[0].mxu0
        %v1784 = vpop.f32.mrb[0].mxu0
        %v1785 = vadd.f32 0.0, %v1784
        %v1786 = vpop.f32.mrb[0].mxu0
        %1787 = vdwg.mxu0
        %vm1788 = vcmask 261120
        %v1789 = vsel %vm1788, %v1632, -inf
        %1790 = vmax.xlane.f32.xlu0 %v1789
        %v1791 = vpop.xlane.xlu0 %1790
        %v1792 = vsel %vm1788, %v1635, -inf
        %1793 = vmax.xlane.f32.xlu0 %v1792
        %v1794 = vpop.xlane.xlu0 %1793
        %v1795 = vsel %vm1788, %v1682, -inf
        %1796 = vmax.xlane.f32.xlu0 %v1795
        %v1797 = vpop.xlane.xlu0 %1796
        %v1798 = vsel %vm1788, %v1685, -inf
        %1799 = vmax.xlane.f32.xlu0 %v1798
        %v1800 = vpop.xlane.xlu0 %1799
        %v1801 = vsel %vm1788, %v1732, -inf
        %1802 = vmax.xlane.f32.xlu0 %v1801
        %v1803 = vpop.xlane.xlu0 %1802
        %v1804 = vsel %vm1788, %v1735, -inf
        %1805 = vmax.xlane.f32.xlu0 %v1804
        %v1806 = vpop.xlane.xlu0 %1805
        %v1807 = vsel %vm1788, %v1782, -inf
        %1808 = vmax.xlane.f32.xlu0 %v1807
        %v1809 = vpop.xlane.xlu0 %1808
        %v1810 = vsel %vm1788, %v1785, -inf
        %1811 = vmax.xlane.f32.xlu0 %v1810
        %v1812 = vpop.xlane.xlu0 %1811
        %v1813 = vsub.f32 %v1632, %v1791
        %v1814 = vsub.f32 %v1635, %v1794
        %v1815 = vsub.f32 %v1682, %v1797
        %v1816 = vsub.f32 %v1685, %v1800
        %v1817 = vsub.f32 %v1732, %v1803
        %v1818 = vsub.f32 %v1735, %v1806
        %v1819 = vsub.f32 %v1782, %v1809
        %v1820 = vsub.f32 %v1785, %v1812
        %v1821 = vmul.f32 %v1813, 1.442695
        %v1822 = vpow.pop %v1821
        %v1823 = vmul.f32 %v1814, 1.442695
        %v1824 = vpow.pop %v1823
        %v1825 = vmul.f32 %v1815, 1.442695
        %v1826 = vpow.pop %v1825
        %v1827 = vmul.f32 %v1816, 1.442695
        %v1828 = vpow.pop %v1827
        %v1829 = vmul.f32 %v1817, 1.442695
        %v1830 = vpow.pop %v1829
        %v1831 = vmul.f32 %v1818, 1.442695
        %v1832 = vpow.pop %v1831
        %v1833 = vmul.f32 %v1819, 1.442695
        %v1834 = vpow.pop %v1833
        %v1835 = vmul.f32 %v1820, 1.442695
        %v1836 = vpow.pop %v1835
        %v1837 = vsel %vm1788, %v1822, 0.0
        %1838 = vadd.xlane.f32.xlu0 %v1837
        %v1839 = vpop.xlane.xlu0 %1838
        %v1840 = vsel %vm1788, %v1824, 0.0
        %1841 = vadd.xlane.f32.xlu0 %v1840
        %v1842 = vpop.xlane.xlu0 %1841
        %v1843 = vsel %vm1788, %v1826, 0.0
        %1844 = vadd.xlane.f32.xlu0 %v1843
        %v1845 = vpop.xlane.xlu0 %1844
        %v1846 = vsel %vm1788, %v1828, 0.0
        %1847 = vadd.xlane.f32.xlu0 %v1846
        %v1848 = vpop.xlane.xlu0 %1847
        %v1849 = vsel %vm1788, %v1830, 0.0
        %1850 = vadd.xlane.f32.xlu0 %v1849
        %v1851 = vpop.xlane.xlu0 %1850
        %v1852 = vsel %vm1788, %v1832, 0.0
        %1853 = vadd.xlane.f32.xlu0 %v1852
        %v1854 = vpop.xlane.xlu0 %1853
        %v1855 = vsel %vm1788, %v1834, 0.0
        %1856 = vadd.xlane.f32.xlu0 %v1855
        %v1857 = vpop.xlane.xlu0 %1856
        %v1858 = vsel %vm1788, %v1836, 0.0
        %1859 = vadd.xlane.f32.xlu0 %v1858
        %v1860 = vpop.xlane.xlu0 %1859
        %v1861 = vrcp.pop %v1839
        %v1862 = vrcp.pop %v1842
        %v1863 = vrcp.pop %v1845
        %v1864 = vrcp.pop %v1848
        %v1865 = vrcp.pop %v1851
        %v1866 = vrcp.pop %v1854
        %v1867 = vrcp.pop %v1857
        %v1868 = vrcp.pop %v1860
        %v1869 = vpack.c.bf16 %v1824, %v1822
        %v1870 = vpack.c.bf16 %v1828, %v1826
        %v1871 = vpack.c.bf16 %v1832, %v1830
        %v1872 = vpack.c.bf16 %v1836, %v1834
        %v1873 = vld [vmem:[#allocation4] sm:$0xff]
        %v1874 = vld [vmem:[#allocation4 + $0x8] sm:$0xff]
        %v1875 = vld [vmem:[#allocation4 + $0x10] sm:$0xff]
        %v1876 = vld [vmem:[#allocation4 + $0x18] sm:$0xff]
        %v1877 = vld [vmem:[#allocation4 + $0x20] sm:$0xff]
        %v1878 = vld [vmem:[#allocation4 + $0x28] sm:$0xff]
        %v1879 = vld [vmem:[#allocation4 + $0x30] sm:$0xff]
        %v1880 = vld [vmem:[#allocation4 + $0x38] sm:$0xff]
        %v1882 = vsel %vm1788, %v1869, 0
        %1884 = vmatprep.subr.bf16.mxu0 0
        %1885 = vmatpush1.bf16.msra.mxu0 %v1873
        %1886 = vmatprep.subr.bf16.mxu0 0
        %1887 = vmatpush1.bf16.msra.mxu0 %v1874
        %1888 = vmatprep.subr.bf16.mxu0 0
        %1889 = vmatpush1.bf16.msra.mxu0 0
        %1890 = vmatprep.subr.bf16.mxu0 0
        %1891 = vmatpush1.bf16.msra.mxu0 0
        %1892 = vmatprep.subr.bf16.mxu0 0
        %1893 = vmatpush1.bf16.msra.mxu0 0
        %1894 = vmatprep.subr.bf16.mxu0 0
        %1895 = vmatpush1.bf16.msra.mxu0 0
        %1896 = vmatprep.subr.bf16.mxu0 0
        %1897 = vmatpush1.bf16.msra.mxu0 0
        %1898 = vmatprep.subr.bf16.mxu0 0
        %1899 = vmatpush1.bf16.msra.mxu0 0
        %1900 = vmatprep.subr.bf16.mxu0 0
        %1901 = vmatpush1.bf16.msra.mxu0 0
        %1902 = vmatprep.subr.bf16.mxu0 0
        %1903 = vmatpush1.bf16.msra.mxu0 0
        %1904 = vmatprep.subr.bf16.mxu0 0
        %1905 = vmatpush1.bf16.msra.mxu0 0
        %1906 = vmatprep.subr.bf16.mxu0 0
        %1907 = vmatpush1.bf16.msra.mxu0 0
        %1908 = vmatprep.subr.bf16.mxu0 0
        %1909 = vmatpush1.bf16.msra.mxu0 0
        %1910 = vmatprep.subr.bf16.mxu0 0
        %1911 = vmatpush1.bf16.msra.mxu0 0
        %1912 = vmatprep.subr.bf16.mxu0 0
        %1913 = vmatpush1.bf16.msra.mxu0 0
        %1914 = vmatprep.subr.bf16.mxu0 0
        %1915 = vmatpush1.bf16.msra.mxu0 0
        %1916 = vmatprep.mubr.bf16.mxu0 0
        %1917 = vmatmul.mubr.bf16.gmra.mrb[0].mxu0 %v1882
        %v1918 = vpop.f32.mrb[0].mxu0
        %v1919 = vadd.f32 0.0, %v1918
        %v1920 = vpop.f32.mrb[0].mxu0
        %v1921 = vpop.f32.mrb[0].mxu0
        %v1922 = vadd.f32 0.0, %v1921
        %v1923 = vpop.f32.mrb[0].mxu0
        %1924 = vdwg.mxu0
        %v1926 = vsel %vm1788, %v1870, 0
        %1928 = vmatprep.subr.bf16.mxu0 0
        %1929 = vmatpush1.bf16.msra.mxu0 %v1875
        %1930 = vmatprep.subr.bf16.mxu0 0
        %1931 = vmatpush1.bf16.msra.mxu0 %v1876
        %1932 = vmatprep.subr.bf16.mxu0 0
        %1933 = vmatpush1.bf16.msra.mxu0 0
        %1934 = vmatprep.subr.bf16.mxu0 0
        %1935 = vmatpush1.bf16.msra.mxu0 0
        %1936 = vmatprep.subr.bf16.mxu0 0
        %1937 = vmatpush1.bf16.msra.mxu0 0
        %1938 = vmatprep.subr.bf16.mxu0 0
        %1939 = vmatpush1.bf16.msra.mxu0 0
        %1940 = vmatprep.subr.bf16.mxu0 0
        %1941 = vmatpush1.bf16.msra.mxu0 0
        %1942 = vmatprep.subr.bf16.mxu0 0
        %1943 = vmatpush1.bf16.msra.mxu0 0
        %1944 = vmatprep.subr.bf16.mxu0 0
        %1945 = vmatpush1.bf16.msra.mxu0 0
        %1946 = vmatprep.subr.bf16.mxu0 0
        %1947 = vmatpush1.bf16.msra.mxu0 0
        %1948 = vmatprep.subr.bf16.mxu0 0
        %1949 = vmatpush1.bf16.msra.mxu0 0
        %1950 = vmatprep.subr.bf16.mxu0 0
        %1951 = vmatpush1.bf16.msra.mxu0 0
        %1952 = vmatprep.subr.bf16.mxu0 0
        %1953 = vmatpush1.bf16.msra.mxu0 0
        %1954 = vmatprep.subr.bf16.mxu0 0
        %1955 = vmatpush1.bf16.msra.mxu0 0
        %1956 = vmatprep.subr.bf16.mxu0 0
        %1957 = vmatpush1.bf16.msra.mxu0 0
        %1958 = vmatprep.subr.bf16.mxu0 0
        %1959 = vmatpush1.bf16.msra.mxu0 0
        %1960 = vmatprep.mubr.bf16.mxu0 0
        %1961 = vmatmul.mubr.bf16.gmra.mrb[0].mxu0 %v1926
        %v1962 = vpop.f32.mrb[0].mxu0
        %v1963 = vadd.f32 0.0, %v1962
        %v1964 = vpop.f32.mrb[0].mxu0
        %v1965 = vpop.f32.mrb[0].mxu0
        %v1966 = vadd.f32 0.0, %v1965
        %v1967 = vpop.f32.mrb[0].mxu0
        %1968 = vdwg.mxu0
        %v1970 = vsel %vm1788, %v1871, 0
        %1972 = vmatprep.subr.bf16.mxu0 0
        %1973 = vmatpush1.bf16.msra.mxu0 %v1877
        %1974 = vmatprep.subr.bf16.mxu0 0
        %1975 = vmatpush1.bf16.msra.mxu0 %v1878
        %1976 = vmatprep.subr.bf16.mxu0 0
        %1977 = vmatpush1.bf16.msra.mxu0 0
        %1978 = vmatprep.subr.bf16.mxu0 0
        %1979 = vmatpush1.bf16.msra.mxu0 0
        %1980 = vmatprep.subr.bf16.mxu0 0
        %1981 = vmatpush1.bf16.msra.mxu0 0
        %1982 = vmatprep.subr.bf16.mxu0 0
        %1983 = vmatpush1.bf16.msra.mxu0 0
        %1984 = vmatprep.subr.bf16.mxu0 0
        %1985 = vmatpush1.bf16.msra.mxu0 0
        %1986 = vmatprep.subr.bf16.mxu0 0
        %1987 = vmatpush1.bf16.msra.mxu0 0
        %1988 = vmatprep.subr.bf16.mxu0 0
        %1989 = vmatpush1.bf16.msra.mxu0 0
        %1990 = vmatprep.subr.bf16.mxu0 0
        %1991 = vmatpush1.bf16.msra.mxu0 0
        %1992 = vmatprep.subr.bf16.mxu0 0
        %1993 = vmatpush1.bf16.msra.mxu0 0
        %1994 = vmatprep.subr.bf16.mxu0 0
        %1995 = vmatpush1.bf16.msra.mxu0 0
        %1996 = vmatprep.subr.bf16.mxu0 0
        %1997 = vmatpush1.bf16.msra.mxu0 0
        %1998 = vmatprep.subr.bf16.mxu0 0
        %1999 = vmatpush1.bf16.msra.mxu0 0
        %2000 = vmatprep.subr.bf16.mxu0 0
        %2001 = vmatpush1.bf16.msra.mxu0 0
        %2002 = vmatprep.subr.bf16.mxu0 0
        %2003 = vmatpush1.bf16.msra.mxu0 0
        %2004 = vmatprep.mubr.bf16.mxu0 0
        %2005 = vmatmul.mubr.bf16.gmra.mrb[0].mxu0 %v1970
        %v2006 = vpop.f32.mrb[0].mxu0
        %v2007 = vadd.f32 0.0, %v2006
        %v2008 = vpop.f32.mrb[0].mxu0
        %v2009 = vpop.f32.mrb[0].mxu0
        %v2010 = vadd.f32 0.0, %v2009
        %v2011 = vpop.f32.mrb[0].mxu0
        %2012 = vdwg.mxu0
        %v2014 = vsel %vm1788, %v1872, 0
        %2016 = vmatprep.subr.bf16.mxu0 0
        %2017 = vmatpush1.bf16.msra.mxu0 %v1879
        %2018 = vmatprep.subr.bf16.mxu0 0
        %2019 = vmatpush1.bf16.msra.mxu0 %v1880
        %2020 = vmatprep.subr.bf16.mxu0 0
        %2021 = vmatpush1.bf16.msra.mxu0 0
        %2022 = vmatprep.subr.bf16.mxu0 0
        %2023 = vmatpush1.bf16.msra.mxu0 0
        %2024 = vmatprep.subr.bf16.mxu0 0
        %2025 = vmatpush1.bf16.msra.mxu0 0
        %2026 = vmatprep.subr.bf16.mxu0 0
        %2027 = vmatpush1.bf16.msra.mxu0 0
        %2028 = vmatprep.subr.bf16.mxu0 0
        %2029 = vmatpush1.bf16.msra.mxu0 0
        %2030 = vmatprep.subr.bf16.mxu0 0
        %2031 = vmatpush1.bf16.msra.mxu0 0
        %2032 = vmatprep.subr.bf16.mxu0 0
        %2033 = vmatpush1.bf16.msra.mxu0 0
        %2034 = vmatprep.subr.bf16.mxu0 0
        %2035 = vmatpush1.bf16.msra.mxu0 0
        %2036 = vmatprep.subr.bf16.mxu0 0
        %2037 = vmatpush1.bf16.msra.mxu0 0
        %2038 = vmatprep.subr.bf16.mxu0 0
        %2039 = vmatpush1.bf16.msra.mxu0 0
        %2040 = vmatprep.subr.bf16.mxu0 0
        %2041 = vmatpush1.bf16.msra.mxu0 0
        %2042 = vmatprep.subr.bf16.mxu0 0
        %2043 = vmatpush1.bf16.msra.mxu0 0
        %2044 = vmatprep.subr.bf16.mxu0 0
        %2045 = vmatpush1.bf16.msra.mxu0 0
        %2046 = vmatprep.subr.bf16.mxu0 0
        %2047 = vmatpush1.bf16.msra.mxu0 0
        %2048 = vmatprep.mubr.bf16.mxu0 0
        %2049 = vmatmul.mubr.bf16.gmra.mrb[0].mxu0 %v2014
        %v2050 = vpop.f32.mrb[0].mxu0
        %v2051 = vadd.f32 0.0, %v2050
        %v2052 = vpop.f32.mrb[0].mxu0
        %v2053 = vpop.f32.mrb[0].mxu0
        %v2054 = vadd.f32 0.0, %v2053
        %v2055 = vpop.f32.mrb[0].mxu0
        %2056 = vdwg.mxu0
        %v2057 = vmul.f32 %v1919, %v1861
        %v2058 = vmul.f32 %v1922, %v1862
        %v2059 = vmul.f32 %v1963, %v1863
        %v2060 = vmul.f32 %v1966, %v1864
        %v2061 = vmul.f32 %v2007, %v1865
        %v2062 = vmul.f32 %v2010, %v1866
        %v2063 = vmul.f32 %v2051, %v1867
        %v2064 = vmul.f32 %v2054, %v1868
        %v2065 = vpack.c.bf16 %v2058, %v2057
        %2066 = vst.msk [vmem:[#allocation5] sm:$0xff] %vm1587, %v2065
        %v2067 = vpack.c.bf16 %v2060, %v2059
        %2069 = vrot.lane.b32.xlu0 %v2067, 16
        %v2070 = vpop.permute.xlu0 %2069
        %vm2072 = vcmask 261248
        %2073 = vst.msk [vmem:[#allocation5] sm:$0xff] %vm2072, %v2070
        %v2074 = vpack.c.bf16 %v2062, %v2061
        %2076 = vrot.lane.b32.xlu0 %v2074, 32
        %v2077 = vpop.permute.xlu0 %2076
        %vm2079 = vcmask 392448
        %2080 = vst.msk [vmem:[#allocation5] sm:$0xff] %vm2079, %v2077
        %v2081 = vpack.c.bf16 %v2064, %v2063
        %2083 = vrot.lane.b32.xlu0 %v2081, 48
        %v2084 = vpop.permute.xlu0 %2083
        %vm2086 = vcmask 523648
        %2087 = vst.msk [vmem:[#allocation5] sm:$0xff] %vm2086, %v2084
        %v2088 = vld [vmem:[#allocation5] sm:$0xff]
        %v2089 = vld [vmem:[#allocation6] sm:$0xf]
        %v2090 = vld [vmem:[#allocation6 + $0x4] sm:$0xf]
        %v2091 = vld [vmem:[#allocation6 + $0x8] sm:$0xf]
        %v2092 = vld [vmem:[#allocation6 + $0xc] sm:$0xf]
        %v2093 = vld [vmem:[#allocation6 + $0x10] sm:$0xf]
        %v2094 = vld [vmem:[#allocation6 + $0x14] sm:$0xf]
        %v2095 = vld [vmem:[#allocation6 + $0x18] sm:$0xf]
        %v2096 = vld [vmem:[#allocation6 + $0x1c] sm:$0xf]
        %v2097 = vld [vmem:[%s9] sm:$0x1]
        %v2099 = vlaneseq
        %v2100 = vshrl.u32 %v2099, 7
        %v2101 = vsub.s32 0, %v2100
        %v2102 = vrot.slane %v2097, %v2101
        %v2112 = vunpack.c.l.b16 %v2089
        %v2113 = vunpack.c.l.b16 %v2090
        %v2114 = vunpack.c.l.b16 %v2091
        %v2115 = vunpack.c.l.b16 %v2092
        %v2116 = vunpack.c.l.b16 %v2093
        %v2117 = vunpack.c.l.b16 %v2094
        %v2118 = vunpack.c.l.b16 %v2095
        %v2119 = vunpack.c.l.b16 %v2096
        %v2120 = vpack.c.b16 %v2113, %v2112
        %v2121 = vpack.c.b16 %v2115, %v2114
        %v2122 = vpack.c.b16 %v2117, %v2116
        %v2123 = vpack.c.b16 %v2119, %v2118
        %vm2128 = vcmask 523264
        %v2130 = vsel %vm2128, %v2088, 0
        %2132 = vmatprep.subr.bf16.mxu0 0
        %2133 = vmatpush1.bf16.msra.mxu0 %v2120
        %2134 = vmatprep.subr.bf16.mxu0 0
        %2135 = vmatpush1.bf16.msra.mxu0 %v2121
        %2136 = vmatprep.subr.bf16.mxu0 0
        %2137 = vmatpush1.bf16.msra.mxu0 %v2122
        %2138 = vmatprep.subr.bf16.mxu0 0
        %2139 = vmatpush1.bf16.msra.mxu0 %v2123
        %2140 = vmatprep.subr.bf16.mxu0 0
        %2141 = vmatpush1.bf16.msra.mxu0 0
        %2142 = vmatprep.subr.bf16.mxu0 0
        %2143 = vmatpush1.bf16.msra.mxu0 0
        %2144 = vmatprep.subr.bf16.mxu0 0
        %2145 = vmatpush1.bf16.msra.mxu0 0
        %2146 = vmatprep.subr.bf16.mxu0 0
        %2147 = vmatpush1.bf16.msra.mxu0 0
        %2148 = vmatprep.subr.bf16.mxu0 0
        %2149 = vmatpush1.bf16.msra.mxu0 0
        %2150 = vmatprep.subr.bf16.mxu0 0
        %2151 = vmatpush1.bf16.msra.mxu0 0
        %2152 = vmatprep.subr.bf16.mxu0 0
        %2153 = vmatpush1.bf16.msra.mxu0 0
        %2154 = vmatprep.subr.bf16.mxu0 0
        %2155 = vmatpush1.bf16.msra.mxu0 0
        %2156 = vmatprep.subr.bf16.mxu0 0
        %2157 = vmatpush1.bf16.msra.mxu0 0
        %2158 = vmatprep.subr.bf16.mxu0 0
        %2159 = vmatpush1.bf16.msra.mxu0 0
        %2160 = vmatprep.subr.bf16.mxu0 0
        %2161 = vmatpush1.bf16.msra.mxu0 0
        %2162 = vmatprep.subr.bf16.mxu0 0
        %2163 = vmatpush1.bf16.msra.mxu0 0
        %2164 = vmatprep.mubr.bf16.mxu0 0
        %2165 = vmatmul.mubr.bf16.gmra.mrb[0].mxu0 %v2130
        %v2166 = vpop.f32.mrb[0].mxu0
        %v2167 = vadd.f32 %v2102, %v2166
        %v2168 = vpop.f32.mrb[0].mxu0
        %v2169 = vpop.f32.mrb[0].mxu0
        %v2170 = vadd.f32 %v2102, %v2169
        %v2171 = vpop.f32.mrb[0].mxu0
        %2172 = vdwg.mxu0
        %v2173 = vadd.f32 %v1569, %v2167
        %v2174 = vadd.f32 %v1570, %v2170
        %v2175 = vld [vmem:[%s10] sm:$0x1]
        %v2176 = vld [vmem:[%s11] sm:$0x1]
        %v2177 = vsel %vm2128, %v2173, 0.0
        %2178 = vadd.xlane.f32.xlu0 %v2177
        %v2179 = vpop.xlane.xlu0 %2178
        %v2180 = vsel %vm2128, %v2174, 0.0
        %2181 = vadd.xlane.f32.xlu0 %v2180
        %v2182 = vpop.xlane.xlu0 %2181
        %v2183 = vrcp.pop 64.0
        %v2184 = vmul.f32 %v2179, %v2183
        %v2185 = vmul.f32 %v2182, %v2183
        %v2186 = vsub.f32 %v2173, %v2184
        %v2187 = vsub.f32 %v2174, %v2185
        %v2188 = vmul.f32 %v2186, %v2186
        %v2189 = vmul.f32 %v2187, %v2187
        %v2190 = vsel %vm2128, %v2188, 0.0
        %2191 = vadd.xlane.f32.xlu0 %v2190
        %v2192 = vpop.xlane.xlu0 %2191
        %v2193 = vsel %vm2128, %v2189, 0.0
        %2194 = vadd.xlane.f32.xlu0 %v2193
        %v2195 = vpop.xlane.xlu0 %2194
        %v2196 = vmul.f32 %v2192, %v2183
        %v2197 = vmul.f32 %v2195, %v2183
        %v2198 = vadd.f32 %v2196, 1e-06
        %v2199 = vadd.f32 %v2197, 1e-06
        %v2200 = vrsqrt.pop %v2198
        %v2201 = vrsqrt.pop %v2199
        %v2202 = vmul.f32 %v2186, %v2200
        %v2203 = vmul.f32 %v2187, %v2201
        %v2205 = vlaneseq
        %v2206 = vshrl.u32 %v2205, 7
        %v2207 = vsub.s32 0, %v2206
        %v2208 = vrot.slane %v2175, %v2207
        %v2210 = vmul.f32 %v2202, %v2208
        %v2211 = vmul.f32 %v2203, %v2208
        %v2213 = vlaneseq
        %v2214 = vshrl.u32 %v2213, 7
        %v2215 = vsub.s32 0, %v2214
        %v2216 = vrot.slane %v2176, %v2215
        %v2218 = vadd.f32 %v2210, %v2216
        %v2219 = vadd.f32 %v2211, %v2216
        %v2220 = vpack.c.bf16 %v2219, %v2218
        %v2221 = vld [vmem:[%s12] sm:$0xff]
        %v2222 = vld [vmem:[%s12 + $0x8] sm:$0xff]
        %v2223 = vld [vmem:[%s12 + $0x10] sm:$0xff]
        %v2224 = vld [vmem:[%s12 + $0x18] sm:$0xff]
        %v2225 = vld [vmem:[%s12 + $0x20] sm:$0xff]
        %v2226 = vld [vmem:[%s12 + $0x28] sm:$0xff]
        %v2227 = vld [vmem:[%s12 + $0x30] sm:$0xff]
        %v2228 = vld [vmem:[%s12 + $0x38] sm:$0xff]
        %v2229 = vld [vmem:[%s13] sm:$0x3]
        %v2231 = vlaneseq
        %v2232 = vshrl.u32 %v2231, 7
        %v2233 = vsub.s32 0, %v2232
        %v2234 = vrot.slane %v2229, %v2233
        %v2235 = vlaneseq
        %v2236 = vshrl.u32 %v2235, 7
        %v2237 = vsub.s32 1, %v2236
        %v2238 = vrot.slane %v2229, %v2237
        %v2249 = vunpack.c.l.b16 %v2221
        %v2250 = vunpack.c.h.b16 %v2221
        %v2251 = vunpack.c.l.b16 %v2222
        %v2252 = vunpack.c.h.b16 %v2222
        %v2253 = vunpack.c.l.b16 %v2223
        %v2254 = vunpack.c.h.b16 %v2223
        %v2255 = vunpack.c.l.b16 %v2224
        %v2256 = vunpack.c.h.b16 %v2224
        %v2257 = vunpack.c.l.b16 %v2225
        %v2258 = vunpack.c.h.b16 %v2225
        %v2259 = vunpack.c.l.b16 %v2226
        %v2260 = vunpack.c.h.b16 %v2226
        %v2261 = vunpack.c.l.b16 %v2227
        %v2262 = vunpack.c.h.b16 %v2227
        %v2263 = vunpack.c.l.b16 %v2228
        %v2264 = vunpack.c.h.b16 %v2228
        %v2265 = vpack.c.b16 %v2251, %v2249
        %v2266 = vpack.c.b16 %v2252, %v2250
        %v2267 = vpack.c.b16 %v2255, %v2253
        %v2268 = vpack.c.b16 %v2256, %v2254
        %v2269 = vpack.c.b16 %v2259, %v2257
        %v2270 = vpack.c.b16 %v2260, %v2258
        %v2271 = vpack.c.b16 %v2263, %v2261
        %v2272 = vpack.c.b16 %v2264, %v2262
        %v2282 = vsel %vm2128, %v2220, 0
        %2284 = vmatprep.subr.bf16.mxu0 %v2266
        %2285 = vmatpush1.bf16.msra.mxu0 %v2265
        %2286 = vmatprep.subr.bf16.mxu0 %v2268
        %2287 = vmatpush1.bf16.msra.mxu0 %v2267
        %2288 = vmatprep.subr.bf16.mxu0 %v2270
        %2289 = vmatpush1.bf16.msra.mxu0 %v2269
        %2290 = vmatprep.subr.bf16.mxu0 %v2272
        %2291 = vmatpush1.bf16.msra.mxu0 %v2271
        %2292 = vmatprep.subr.bf16.mxu0 0
        %2293 = vmatpush1.bf16.msra.mxu0 0
        %2294 = vmatprep.subr.bf16.mxu0 0
        %2295 = vmatpush1.bf16.msra.mxu0 0
        %2296 = vmatprep.subr.bf16.mxu0 0
        %2297 = vmatpush1.bf16.msra.mxu0 0
        %2298 = vmatprep.subr.bf16.mxu0 0
        %2299 = vmatpush1.bf16.msra.mxu0 0
        %2300 = vmatprep.subr.bf16.mxu0 0
        %2301 = vmatpush1.bf16.msra.mxu0 0
        %2302 = vmatprep.subr.bf16.mxu0 0
        %2303 = vmatpush1.bf16.msra.mxu0 0
        %2304 = vmatprep.subr.bf16.mxu0 0
        %2305 = vmatpush1.bf16.msra.mxu0 0
        %2306 = vmatprep.subr.bf16.mxu0 0
        %2307 = vmatpush1.bf16.msra.mxu0 0
        %2308 = vmatprep.subr.bf16.mxu0 0
        %2309 = vmatpush1.bf16.msra.mxu0 0
        %2310 = vmatprep.subr.bf16.mxu0 0
        %2311 = vmatpush1.bf16.msra.mxu0 0
        %2312 = vmatprep.subr.bf16.mxu0 0
        %2313 = vmatpush1.bf16.msra.mxu0 0
        %2314 = vmatprep.subr.bf16.mxu0 0
        %2315 = vmatpush1.bf16.msra.mxu0 0
        %2316 = vmatprep.mubr.bf16.mxu0 0
        %2317 = vmatmul.mubr.bf16.gmra.mrb[0].mxu0 %v2282
        %v2318 = vpop.f32.mrb[0].mxu0
        %v2319 = vadd.f32 %v2234, %v2318
        %v2320 = vpop.f32.mrb[0].mxu0
        %v2321 = vadd.f32 %v2238, %v2320
        %v2322 = vpop.f32.mrb[0].mxu0
        %v2323 = vadd.f32 %v2234, %v2322
        %v2324 = vpop.f32.mrb[0].mxu0
        %v2325 = vadd.f32 %v2238, %v2324
        %2326 = vdwg.mxu0
        %v2327 = vmul.f32 %v2319, 0.5
        %v2328 = vmul.f32 %v2321, 0.5
        %v2329 = vmul.f32 %v2323, 0.5
        %v2330 = vmul.f32 %v2325, 0.5
        %v2331 = vmul.f32 %v2319, 0.70710677
        %v2332 = vmul.f32 %v2321, 0.70710677
        %v2333 = vmul.f32 %v2323, 0.70710677
        %v2334 = vmul.f32 %v2325, 0.70710677
        %v2335 = verf.f32.pop %v2331
        %v2336 = verf.f32.pop %v2332
        %v2337 = verf.f32.pop %v2333
        %v2338 = verf.f32.pop %v2334
        %v2339 = vadd.f32 %v2335, 1.0
        %v2340 = vadd.f32 %v2336, 1.0
        %v2341 = vadd.f32 %v2337, 1.0
        %v2342 = vadd.f32 %v2338, 1.0
        %v2343 = vmul.f32 %v2327, %v2339
        %v2344 = vmul.f32 %v2328, %v2340
        %v2345 = vmul.f32 %v2329, %v2341
        %v2346 = vmul.f32 %v2330, %v2342
        %v2347 = vpack.c.bf16 %v2345, %v2343
        %v2348 = vpack.c.bf16 %v2346, %v2344
        %v2349 = vld [vmem:[%s14] sm:$0xf]
        %v2350 = vld [vmem:[%s14 + $0x4] sm:$0xf]
        %v2351 = vld [vmem:[%s14 + $0x8] sm:$0xf]
        %v2352 = vld [vmem:[%s14 + $0xc] sm:$0xf]
        %v2353 = vld [vmem:[%s14 + $0x10] sm:$0xf]
        %v2354 = vld [vmem:[%s14 + $0x14] sm:$0xf]
        %v2355 = vld [vmem:[%s14 + $0x18] sm:$0xf]
        %v2356 = vld [vmem:[%s14 + $0x1c] sm:$0xf]
        %v2357 = vld [vmem:[%s14 + $0x20] sm:$0xf]
        %v2358 = vld [vmem:[%s14 + $0x24] sm:$0xf]
        %v2359 = vld [vmem:[%s14 + $0x28] sm:$0xf]
        %v2360 = vld [vmem:[%s14 + $0x2c] sm:$0xf]
        %v2361 = vld [vmem:[%s14 + $0x30] sm:$0xf]
        %v2362 = vld [vmem:[%s14 + $0x34] sm:$0xf]
        %v2363 = vld [vmem:[%s14 + $0x38] sm:$0xf]
        %v2364 = vld [vmem:[%s14 + $0x3c] sm:$0xf]
        %v2365 = vld [vmem:[%s14 + $0x40] sm:$0xf]
        %v2366 = vld [vmem:[%s14 + $0x44] sm:$0xf]
        %v2367 = vld [vmem:[%s14 + $0x48] sm:$0xf]
        %v2368 = vld [vmem:[%s14 + $0x4c] sm:$0xf]
        %v2369 = vld [vmem:[%s14 + $0x50] sm:$0xf]
        %v2370 = vld [vmem:[%s14 + $0x54] sm:$0xf]
        %v2371 = vld [vmem:[%s14 + $0x58] sm:$0xf]
        %v2372 = vld [vmem:[%s14 + $0x5c] sm:$0xf]
        %v2373 = vld [vmem:[%s14 + $0x60] sm:$0xf]
        %v2374 = vld [vmem:[%s14 + $0x64] sm:$0xf]
        %v2375 = vld [vmem:[%s14 + $0x68] sm:$0xf]
        %v2376 = vld [vmem:[%s14 + $0x6c] sm:$0xf]
        %v2377 = vld [vmem:[%s14 + $0x70] sm:$0xf]
        %v2378 = vld [vmem:[%s14 + $0x74] sm:$0xf]
        %v2379 = vld [vmem:[%s14 + $0x78] sm:$0xf]
        %v2380 = vld [vmem:[%s14 + $0x7c] sm:$0xf]
        %v2381 = vld [vmem:[%s15] sm:$0x1]
        %v2383 = vlaneseq
        %v2384 = vshrl.u32 %v2383, 7
        %v2385 = vsub.s32 0, %v2384
        %v2386 = vrot.slane %v2381, %v2385
        %v2420 = vunpack.c.l.b16 %v2349
        %v2421 = vunpack.c.l.b16 %v2350
        %v2422 = vunpack.c.l.b16 %v2351
        %v2423 = vunpack.c.l.b16 %v2352
        %v2424 = vunpack.c.l.b16 %v2353
        %v2425 = vunpack.c.l.b16 %v2354
        %v2426 = vunpack.c.l.b16 %v2355
        %v2427 = vunpack.c.l.b16 %v2356
        %v2428 = vunpack.c.l.b16 %v2357
        %v2429 = vunpack.c.l.b16 %v2358
        %v2430 = vunpack.c.l.b16 %v2359
        %v2431 = vunpack.c.l.b16 %v2360
        %v2432 = vunpack.c.l.b16 %v2361
        %v2433 = vunpack.c.l.b16 %v2362
        %v2434 = vunpack.c.l.b16 %v2363
        %v2435 = vunpack.c.l.b16 %v2364
        %v2436 = vunpack.c.l.b16 %v2365
        %v2437 = vunpack.c.l.b16 %v2366
        %v2438 = vunpack.c.l.b16 %v2367
        %v2439 = vunpack.c.l.b16 %v2368
        %v2440 = vunpack.c.l.b16 %v2369
        %v2441 = vunpack.c.l.b16 %v2370
        %v2442 = vunpack.c.l.b16 %v2371
        %v2443 = vunpack.c.l.b16 %v2372
        %v2444 = vunpack.c.l.b16 %v2373
        %v2445 = vunpack.c.l.b16 %v2374
        %v2446 = vunpack.c.l.b16 %v2375
        %v2447 = vunpack.c.l.b16 %v2376
        %v2448 = vunpack.c.l.b16 %v2377
        %v2449 = vunpack.c.l.b16 %v2378
        %v2450 = vunpack.c.l.b16 %v2379
        %v2451 = vunpack.c.l.b16 %v2380
        %v2452 = vpack.c.b16 %v2421, %v2420
        %v2453 = vpack.c.b16 %v2423, %v2422
        %v2454 = vpack.c.b16 %v2425, %v2424
        %v2455 = vpack.c.b16 %v2427, %v2426
        %v2456 = vpack.c.b16 %v2429, %v2428
        %v2457 = vpack.c.b16 %v2431, %v2430
        %v2458 = vpack.c.b16 %v2433, %v2432
        %v2459 = vpack.c.b16 %v2435, %v2434
        %v2460 = vpack.c.b16 %v2437, %v2436
        %v2461 = vpack.c.b16 %v2439, %v2438
        %v2462 = vpack.c.b16 %v2441, %v2440
        %v2463 = vpack.c.b16 %v2443, %v2442
        %v2464 = vpack.c.b16 %v2445, %v2444
        %v2465 = vpack.c.b16 %v2447, %v2446
        %v2466 = vpack.c.b16 %v2449, %v2448
        %v2467 = vpack.c.b16 %v2451, %v2450
        %2484 = vmatprep.subr.bf16.mxu0 0
        %2485 = vmatpush1.bf16.msra.mxu0 %v2452
        %2486 = vmatprep.subr.bf16.mxu0 0
        %2487 = vmatpush1.bf16.msra.mxu0 %v2453
        %2488 = vmatprep.subr.bf16.mxu0 0
        %2489 = vmatpush1.bf16.msra.mxu0 %v2454
        %2490 = vmatprep.subr.bf16.mxu0 0
        %2491 = vmatpush1.bf16.msra.mxu0 %v2455
        %2492 = vmatprep.subr.bf16.mxu0 0
        %2493 = vmatpush1.bf16.msra.mxu0 %v2456
        %2494 = vmatprep.subr.bf16.mxu0 0
        %2495 = vmatpush1.bf16.msra.mxu0 %v2457
        %2496 = vmatprep.subr.bf16.mxu0 0
        %2497 = vmatpush1.bf16.msra.mxu0 %v2458
        %2498 = vmatprep.subr.bf16.mxu0 0
        %2499 = vmatpush1.bf16.msra.mxu0 %v2459
        %2500 = vmatprep.subr.bf16.mxu0 0
        %2501 = vmatpush1.bf16.msra.mxu0 %v2460
        %2502 = vmatprep.subr.bf16.mxu0 0
        %2503 = vmatpush1.bf16.msra.mxu0 %v2461
        %2504 = vmatprep.subr.bf16.mxu0 0
        %2505 = vmatpush1.bf16.msra.mxu0 %v2462
        %2506 = vmatprep.subr.bf16.mxu0 0
        %2507 = vmatpush1.bf16.msra.mxu0 %v2463
        %2508 = vmatprep.subr.bf16.mxu0 0
        %2509 = vmatpush1.bf16.msra.mxu0 %v2464
        %2510 = vmatprep.subr.bf16.mxu0 0
        %2511 = vmatpush1.bf16.msra.mxu0 %v2465
        %2512 = vmatprep.subr.bf16.mxu0 0
        %2513 = vmatpush1.bf16.msra.mxu0 %v2466
        %2514 = vmatprep.subr.bf16.mxu0 0
        %2515 = vmatpush1.bf16.msra.mxu0 %v2467
        %2516 = vmatprep.mubr.bf16.mxu0 %v2348
        %2517 = vmatmul.mubr.bf16.gmra.mrb[0].mxu0 %v2347
        %v2518 = vpop.f32.mrb[0].mxu0
        %v2519 = vadd.f32 %v2386, %v2518
        %v2520 = vpop.f32.mrb[0].mxu0
        %v2521 = vpop.f32.mrb[0].mxu0
        %v2522 = vadd.f32 %v2386, %v2521
        %v2523 = vpop.f32.mrb[0].mxu0
        %2524 = vdwg.mxu0
        %v2525 = vadd.f32 %v2173, %v2519
        %v2526 = vadd.f32 %v2174, %v2522
        %2527 = vst.msk [vmem:[%s543] sm:$0xff] %vm2128, %v2525
        %2528 = vst.msk [vmem:[%s543 + $0x8] sm:$0xff] %vm2128, %v2526
        %s2529 = sand.u32 %s394, 1
        %s2530 = scalar_lea.sflag [#allocation8], %s2529
        %s2531 = sand.u32 %s394, 1
        %s2532 = smul.addr %s2531, 16
        %s2533 = scalar_lea.vmem [#allocation9], %s2532
        // Predicated region
        $region93: #{tpu_custom_call.1} parent=83 // pred_check
          %p2534 = pneg %p404
        $region94: #{tpu_custom_call.1} parent=83 // pred_check_branch
          %2536 = sbr.rel (%p2534) target = $region96
        $region95: #{tpu_custom_call.1} parent=83 // pred_region
          %s2537 = smul.u32 2, %s36
          %s2539 = ssub.s32 256, 256
          %2540 = vsyncadd %s2530, %s2539
          %s2541 = smul.addr %s35, 4
          %s2542 = sadd.s32 %s2537, %s2541
          %s2543 = smul.addr %s2542, 128
          %s2544 = scalar_lea.hbm %s16, %s2543
          %s2545 = sshll.u32 %s2533, 4
          %s2546 = int_to_ptr.vmem [resolvable:$true] %s2545
          %2551 = dma.vmem_to_hbm [thread:$0]  %s2546, 256, %s2544, %s2530, 128, 128, 8
        $region96: #{tpu_custom_call.1} parent=83 // pred_fallthru
          _
      $region84: #{tpu_custom_call.1} parent=5 // pred_fallthru
        _
      %p2552 = scmp.le.s32.totalorder 2, %s26
      // Predicated region
      $region97: #{tpu_custom_call.1} parent=5 // pred_check
        %p2553 = pneg %p2552
      $region98: #{tpu_custom_call.1} parent=5 // pred_check_branch
        %2555 = sbr.rel (%p2553) target = $region100
      $region99: #{tpu_custom_call.1} parent=5 // pred_region
        %s2556 = ssub.s32 %s26, 2
        // Predicated region
        $region101: #{tpu_custom_call.1} parent=99 // pred_check
          %p2557 = pneg %p410
        $region102: #{tpu_custom_call.1} parent=99 // pred_check_branch
          %2559 = sbr.rel (%p2557) target = $region104
        $region103: #{tpu_custom_call.1} parent=99 // pred_region
          %s2560 = sand.u32 %s395, 1
          %s2561 = scalar_lea.sflag [#allocation8], %s2560
          %s2562 = sand.u32 %s395, 1
          %s2563 = smul.addr %s2562, 16
          %s2564 = scalar_lea.vmem [#allocation9], %s2563
          %2565 = dma.done %s2561, 256
        $region104: #{tpu_custom_call.1} parent=99 // pred_fallthru
          _
      $region100: #{tpu_custom_call.1} parent=5 // pred_fallthru
        _
    $region6: #{tpu_custom_call.1} parent=1 // loop_footer
      %s30 = sadd.s32 1, %s26
    $region7: #{tpu_custom_call.1} parent=1 // loop_footer_branch
      %25 = sbr.rel target = $region3
    $region8: #{tpu_custom_call.1} parent=1 // loop_exit
      _
    %2566 = vsyncpa [#allocation7], 1
    %s2567 = scalar_lea.sflag [#allocation7], 1
    %2568 = vsyncpa %s2567, 1
    %2569 = vsyncpa [#allocation8], 1
    %s2570 = scalar_lea.sflag [#allocation8], 1
    %2571 = vsyncpa %s2570, 1

</llo_original>
